<compile_context>
chip_gen: v7x
topology: tpu7x:2x2x1
jax: 0.10.0
libtpu: 0.0.40
codegen_flags: <defaults>
</compile_context>

<pallas_src>
import jax
import jax.numpy as jnp
from jax.experimental import pallas as pl
from jax.experimental.pallas import tpu as pltpu


H = 32              # opt.hidden_dim
NS = 4              # chain slots per direction half: lstm01, lstm00, lstm03, dummy
HW = NS * H         # 128 hidden lanes per half
NG = 4 * HW         # 512 gate lanes per half (gate-major: i | f | g | o)
KC = 16 * H         # 512 = im2col K (7 taps * 2H = 448, zero-padded to 512)


# ----------------------------------------------------------------------------
# Fused kernel
# ----------------------------------------------------------------------------
def decoder_kernel(x_ref, st_ref, inp_ref, whh_ref, misc_ref, wc1_ref, sc_ref,
                   out_ref):
    T, B, _ = x_ref.shape

    # initial states, packed [h_f | c_f | h_b | c_b] along lanes (128-aligned)
    h_f = st_ref[:, 0 * HW:1 * HW]
    c_f = st_ref[:, 1 * HW:2 * HW]
    h_b = st_ref[:, 2 * HW:3 * HW]
    c_b = st_ref[:, 3 * HW:4 * HW]

    def cell(gates, c):
        sif = jax.nn.sigmoid(gates[:, 0:2 * HW])        # i|f only (aligned)
        gi = sif[:, 0:HW]
        gf = sif[:, HW:2 * HW]
        gg = jnp.tanh(gates[:, 2 * HW:3 * HW])
        go = jax.nn.sigmoid(gates[:, 3 * HW:4 * HW])
        c_new = gf * c + gi * gg
        return go * jnp.tanh(c_new), c_new

    # fully unrolled T=8 recurrence; fwd half consumes x[t], bwd half x[T-1-t]
    hfs, hbs = [], []
    for t in range(T):
        xt = x_ref[t]                                   # (B, 2)
        xr = x_ref[T - 1 - t]
        # input projection as VPU broadcast-FMA (K=2 -> no MXU, no spills)
        gx_f = (xt[:, 0:1] * inp_ref[0:1, :] + xt[:, 1:2] * inp_ref[1:2, :]
                + inp_ref[4:5, :])
        gx_b = (xr[:, 0:1] * inp_ref[2:3, :] + xr[:, 1:2] * inp_ref[3:4, :]
                + inp_ref[5:6, :])
        gates_f = gx_f + jnp.dot(h_f.astype(jnp.bfloat16), whh_ref[0],
                                 preferred_element_type=jnp.float32)
        gates_b = gx_b + jnp.dot(h_b.astype(jnp.bfloat16), whh_ref[1],
                                 preferred_element_type=jnp.float32)
        h_f, c_f = cell(gates_f, c_f)
        h_b, c_b = cell(gates_b, c_b)
        hfs.append(h_f)
        hbs.append(h_b)

    Hf = jnp.stack(hfs, axis=0)          # (T, B, HW)  fwd hiddens at real time t
    Hbr = jnp.stack(hbs[::-1], axis=0)   # (T, B, HW)  bwd hiddens at real time t

    # --- Linear heads: zero-padded full-HW weights, VPU mul + lane reduce ---
    out0 = (jnp.sum(Hf * misc_ref[0:1, :][None], axis=-1)
            + jnp.sum(Hbr * misc_ref[1:2, :][None], axis=-1) + sc_ref[0])
    out3 = (jnp.sum(Hf * misc_ref[2:3, :][None], axis=-1)
            + jnp.sum(Hbr * misc_ref[3:4, :][None], axis=-1) + sc_ref[1])

    # --- indicator refine: Conv1d(2H->H,k=7,p=3) as ONE im2col matmul -------
    o1 = jnp.concatenate([Hf[:, :, 0:H], Hbr[:, :, 0:H]], axis=-1)   # (T,B,2H)
    z3 = jnp.zeros((3, B, 2 * H), jnp.float32)
    o1p = jnp.concatenate([z3, o1, z3], axis=0)                      # (T+6,B,2H)
    cols = [o1p[k:k + T] for k in range(7)]
    cols.append(jnp.zeros((T, B, KC - 14 * H), jnp.float32))         # pad K->512
    im2col = jnp.concatenate(cols, axis=-1).reshape(T * B, KC)
    acc = jnp.dot(im2col.astype(jnp.bfloat16), wc1_ref[...],
                  preferred_element_type=jnp.float32)                # (T*B, H)
    y = jnp.maximum(acc + misc_ref[4:5, 0:H], 0.0).reshape(T, B, H)

    # --- Conv1d(H->1,k=3,p=1) on the VPU ------------------------------------
    z1 = jnp.zeros((1, B, H), jnp.float32)
    yp = jnp.concatenate([z1, y, z1], axis=0)                        # (T+2,B,H)
    ind = sc_ref[2] + sum(
        jnp.sum(yp[k:k + T] * misc_ref[5 + k:6 + k, 0:H][None], axis=-1)
        for k in range(3))                                           # (T, B)

    # --- sigmoid gate combine (round-half-to-even matches torch.round) ------
    s = jax.nn.sigmoid(ind * 4.0)
    aa = jnp.round(s)
    out4 = (s * aa) * out0 + (1.0 - aa) * out3

    out_ref[...] = jnp.stack(
        [out0.reshape(T * B), ind.reshape(T * B),
         out3.reshape(T * B), out4.reshape(T * B)], axis=0)          # (4, T*B)


# ----------------------------------------------------------------------------
# Wrapper: single pallas_call, no grid, all operands VMEM/SMEM resident.
# ----------------------------------------------------------------------------
@jax.jit
def decoder_lstm_forward(fused, x1, x2, x3, encoder_h, encoder_c):
    del x2, x3                                   # unused, same as PyTorch forward
    B, T, _ = x1.shape
    x_tm = jnp.transpose(x1, (1, 0, 2))          # time-major (T, B, 2)

    # slot order within each half: lstm01, lstm00, lstm03, dummy(zeros)
    pad = jnp.zeros((B, H), jnp.float32)
    h0_f = jnp.concatenate([encoder_h[1][0], encoder_h[0][0], encoder_h[2][0], pad], -1)
    c0_f = jnp.concatenate([encoder_c[1][0], encoder_c[0][0], encoder_c[2][0], pad], -1)
    h0_b = jnp.concatenate([encoder_h[1][1], encoder_h[0][1], encoder_h[2][1], pad], -1)
    c0_b = jnp.concatenate([encoder_c[1][1], encoder_c[0][1], encoder_c[2][1], pad], -1)
    st0 = jnp.concatenate([h0_f, c0_f, h0_b, c0_b], axis=-1)        # (B, 4*HW)

    vmem = pl.BlockSpec(memory_space=pltpu.MemorySpace.VMEM)
    smem = pl.BlockSpec(memory_space=pltpu.MemorySpace.SMEM)
    out_all = pl.pallas_call(
        decoder_kernel,
        out_shape=jax.ShapeDtypeStruct((4, T * B), jnp.float32),
        in_specs=[vmem, vmem, vmem, vmem, vmem, vmem, smem],
        out_specs=vmem,
    )(x_tm, st0, fused["inp"], fused["whh"], fused["misc"], fused["wc1"],
      fused["sc"])

    out_all = jnp.transpose(out_all.reshape(4, T, B), (0, 2, 1))    # (4, B, T)
    out0, ind, out3, out4 = out_all[0], out_all[1], out_all[2], out_all[3]
    return out0, ind[:, :, None], out3, out4     # Ind is (B, T, 1) like PyTorch


# ----------------------------------------------------------------------------
# Deterministic parameter init (PyTorch-style uniform ranges) + fusion prep.
# ----------------------------------------------------------------------------
def init_raw_params(key, H):
    D = 2
    ks = iter(jax.random.split(key, 24))

    def unif(shape, bound):
        return jax.random.uniform(next(ks), shape, jnp.float32, -bound, bound)

    def lstm():
        bd = 1.0 / (H ** 0.5)
        return {"wih": unif((2, 4 * H, D), bd),          # (dirs, 4H, D)
                "whh": unif((2, 4 * H, H), bd),          # (dirs, 4H, H)
                "b": unif((2, 4 * H), bd) + unif((2, 4 * H), bd)}   # bih + bhh

    def linear(fan_in):
        bd = 1.0 / (fan_in ** 0.5)
        return {"w": unif((1, fan_in), bd), "b": unif((1,), bd)}

    def conv(cout, cin, k):
        bd = 1.0 / ((cin * k) ** 0.5)
        return {"w": unif((cout, cin, k), bd), "b": unif((cout,), bd)}

    return {"lstm00": lstm(), "lstm01": lstm(), "lstm03": lstm(),
            "L_out00": linear(2 * H), "L_out03": linear(2 * H),
            "cnn00": conv(H, 2 * H, 7), "cnn01": conv(1, H, 3)}


def build_fused_params(raw):
    names = ["lstm01", "lstm00", "lstm03"]       # slot order inside each half

    def half(d):
        wih = jnp.zeros((2, NG), jnp.float32)
        b = jnp.zeros((1, NG), jnp.float32)
        whh = jnp.zeros((HW, NG), jnp.float32)   # block-diagonal over slots
        for s, name in enumerate(names):
            lw = raw[name]
            for g in range(4):                   # PyTorch gate order i, f, g, o
                col = g * HW + s * H
                wih = wih.at[:, col:col + H].set(lw["wih"][d, g * H:(g + 1) * H, :].T)
                b = b.at[0, col:col + H].set(lw["b"][d, g * H:(g + 1) * H])
                whh = whh.at[s * H:(s + 1) * H, col:col + H].set(
                    lw["whh"][d, g * H:(g + 1) * H, :].T)
        return wih, b, whh

    wih_f, b_f, whh_f = half(0)
    wih_b, b_b, whh_b = half(1)

    inp = jnp.concatenate([wih_f, wih_b, b_f, b_b], axis=0)          # (6, NG) f32
    whh = jnp.stack([whh_f, whh_b], axis=0).astype(jnp.bfloat16)     # (2, HW, NG)

    # heads (zero-padded to HW lanes; lstm00 = slot 1, lstm03 = slot 2),
    # conv1 bias, conv2 taps -> one (8, 128) f32 buffer.
    misc = jnp.zeros((8, 128), jnp.float32)
    misc = misc.at[0, H:2 * H].set(raw["L_out00"]["w"][0, 0:H])
    misc = misc.at[1, H:2 * H].set(raw["L_out00"]["w"][0, H:2 * H])
    misc = misc.at[2, 2 * H:3 * H].set(raw["L_out03"]["w"][0, 0:H])
    misc = misc.at[3, 2 * H:3 * H].set(raw["L_out03"]["w"][0, H:2 * H])
    misc = misc.at[4, 0:H].set(raw["cnn00"]["b"])
    misc = misc.at[5:8, 0:H].set(jnp.transpose(raw["cnn01"]["w"][0], (1, 0)))

    # conv1 weight, tap-major im2col layout (k, cin) rows, zero-padded to KC
    w0 = raw["cnn00"]["w"]                                           # (H, 2H, 7)
    wtap = jnp.transpose(w0, (2, 1, 0)).reshape(14 * H, H)
    wc1 = jnp.concatenate(
        [wtap, jnp.zeros((KC - 14 * H, H), jnp.float32)], axis=0).astype(jnp.bfloat16)

    sc = jnp.stack([raw["L_out00"]["b"][0], raw["L_out03"]["b"][0],
                    raw["cnn01"]["b"][0], jnp.float32(0.0)])         # SMEM scalars

    return {"inp": inp, "whh": whh, "misc": misc, "wc1": wc1, "sc": sc}


if __name__ == "__main__":
    B, T, L = 2, 8, 1       # opt.hidden_dim = 32 (module-level H), opt.layer = 1
    key = jax.random.PRNGKey(0)
    kp, kx1, kx2, kx3, kh, kc = jax.random.split(key, 6)

    raw = init_raw_params(kp, H)
    fused = build_fused_params(raw)

    x1 = jax.random.normal(kx1, (B, T, 2), jnp.float32)
    x2 = jax.random.normal(kx2, (B, T, 2), jnp.float32)   # unused by forward
    x3 = jax.random.normal(kx3, (B, T, 2), jnp.float32)   # unused by forward

    hks = jax.random.split(kh, 3)
    cks = jax.random.split(kc, 3)
    encoder_h = [jax.random.normal(hks[i], (2 * L, B, H), jnp.float32) for i in range(3)]
    encoder_c = [jax.random.normal(cks[i], (2 * L, B, H), jnp.float32) for i in range(3)]

    out0, Ind, out3, out4 = decoder_lstm_forward(
        fused, x1, x2, x3, encoder_h, encoder_c)
    jax.block_until_ready((out0, Ind, out3, out4))

    assert out0.shape == (B, T)
    assert Ind.shape == (B, T, 1)
    assert out3.shape == (B, T)
    assert out4.shape == (B, T)
    assert bool(jnp.all(jnp.isfinite(out0))) and bool(jnp.all(jnp.isfinite(Ind)))
    assert bool(jnp.all(jnp.isfinite(out3))) and bool(jnp.all(jnp.isfinite(out4)))
    print("KERNEL_OK")
</pallas_src>

<mosaic_0001>
module attributes {stable_mosaic.version = 11 : i64} {
  func.func @decoder_kernel(%arg0: memref<8x2x2xf32, #tpu.memory_space<vmem>>, %arg1: memref<2x512xf32, #tpu.memory_space<vmem>>, %arg2: memref<6x512xf32, #tpu.memory_space<vmem>>, %arg3: memref<2x128x512xbf16, #tpu.memory_space<vmem>>, %arg4: memref<8x128xf32, #tpu.memory_space<vmem>>, %arg5: memref<512x32xbf16, #tpu.memory_space<vmem>>, %arg6: memref<4xf32, #tpu.memory_space<smem>>, %arg7: memref<4x16xf32, #tpu.memory_space<vmem>>) attributes {dimension_semantics = [], scalar_prefetch = 0 : i64, scratch_operands = 0 : i64, tpu.core_type = #tpu.core_type<tc>} {
    %c0 = arith.constant 0 : index
    %c0_0 = arith.constant 0 : index
    %0 = vector.load %arg1[%c0, %c0_0] : memref<2x512xf32, #tpu.memory_space<vmem>>, vector<2x128xf32>
    %c0_1 = arith.constant 0 : index
    %c128 = arith.constant 128 : index
    %1 = vector.load %arg1[%c0_1, %c128] : memref<2x512xf32, #tpu.memory_space<vmem>>, vector<2x128xf32>
    %c0_2 = arith.constant 0 : index
    %c256 = arith.constant 256 : index
    %2 = vector.load %arg1[%c0_2, %c256] : memref<2x512xf32, #tpu.memory_space<vmem>>, vector<2x128xf32>
    %c0_3 = arith.constant 0 : index
    %c384 = arith.constant 384 : index
    %3 = vector.load %arg1[%c0_3, %c384] : memref<2x512xf32, #tpu.memory_space<vmem>>, vector<2x128xf32>
    %c0_4 = arith.constant 0 : index
    %c0_5 = arith.constant 0 : index
    %c0_6 = arith.constant 0 : index
    %4 = vector.load %arg0[%c0_4, %c0_5, %c0_6] : memref<8x2x2xf32, #tpu.memory_space<vmem>>, vector<1x2x2xf32>
    %5 = vector.shape_cast %4 : vector<1x2x2xf32> to vector<2x2xf32>
    %c7 = arith.constant 7 : index
    %c0_7 = arith.constant 0 : index
    %c0_8 = arith.constant 0 : index
    %6 = vector.load %arg0[%c7, %c0_7, %c0_8] : memref<8x2x2xf32, #tpu.memory_space<vmem>>, vector<1x2x2xf32>
    %7 = vector.shape_cast %6 : vector<1x2x2xf32> to vector<2x2xf32>
    %8 = vector.extract_strided_slice %5 {offsets = [0, 0], sizes = [2, 1], strides = [1, 1]} : vector<2x2xf32> to vector<2x1xf32>
    %c0_9 = arith.constant 0 : index
    %c0_10 = arith.constant 0 : index
    %9 = vector.load %arg2[%c0_9, %c0_10] : memref<6x512xf32, #tpu.memory_space<vmem>>, vector<1x512xf32>
    %10 = vector.broadcast %8 : vector<2x1xf32> to vector<2x512xf32>
    %11 = vector.broadcast %9 : vector<1x512xf32> to vector<2x512xf32>
    %12 = arith.mulf %10, %11 : vector<2x512xf32>
    %13 = vector.extract_strided_slice %5 {offsets = [0, 1], sizes = [2, 1], strides = [1, 1]} : vector<2x2xf32> to vector<2x1xf32>
    %c1 = arith.constant 1 : index
    %c0_11 = arith.constant 0 : index
    %14 = vector.load %arg2[%c1, %c0_11] : memref<6x512xf32, #tpu.memory_space<vmem>>, vector<1x512xf32>
    %15 = vector.broadcast %13 : vector<2x1xf32> to vector<2x512xf32>
    %16 = vector.broadcast %14 : vector<1x512xf32> to vector<2x512xf32>
    %17 = arith.mulf %15, %16 : vector<2x512xf32>
    %18 = arith.addf %12, %17 : vector<2x512xf32>
    %c4 = arith.constant 4 : index
    %c0_12 = arith.constant 0 : index
    %19 = vector.load %arg2[%c4, %c0_12] : memref<6x512xf32, #tpu.memory_space<vmem>>, vector<1x512xf32>
    %20 = vector.broadcast %19 : vector<1x512xf32> to vector<2x512xf32>
    %21 = arith.addf %18, %20 : vector<2x512xf32>
    %22 = vector.extract_strided_slice %7 {offsets = [0, 0], sizes = [2, 1], strides = [1, 1]} : vector<2x2xf32> to vector<2x1xf32>
    %c2 = arith.constant 2 : index
    %c0_13 = arith.constant 0 : index
    %23 = vector.load %arg2[%c2, %c0_13] : memref<6x512xf32, #tpu.memory_space<vmem>>, vector<1x512xf32>
    %24 = vector.broadcast %22 : vector<2x1xf32> to vector<2x512xf32>
    %25 = vector.broadcast %23 : vector<1x512xf32> to vector<2x512xf32>
    %26 = arith.mulf %24, %25 : vector<2x512xf32>
    %27 = vector.extract_strided_slice %7 {offsets = [0, 1], sizes = [2, 1], strides = [1, 1]} : vector<2x2xf32> to vector<2x1xf32>
    %c3 = arith.constant 3 : index
    %c0_14 = arith.constant 0 : index
    %28 = vector.load %arg2[%c3, %c0_14] : memref<6x512xf32, #tpu.memory_space<vmem>>, vector<1x512xf32>
    %29 = vector.broadcast %27 : vector<2x1xf32> to vector<2x512xf32>
    %30 = vector.broadcast %28 : vector<1x512xf32> to vector<2x512xf32>
    %31 = arith.mulf %29, %30 : vector<2x512xf32>
    %32 = arith.addf %26, %31 : vector<2x512xf32>
    %c5 = arith.constant 5 : index
    %c0_15 = arith.constant 0 : index
    %33 = vector.load %arg2[%c5, %c0_15] : memref<6x512xf32, #tpu.memory_space<vmem>>, vector<1x512xf32>
    %34 = vector.broadcast %33 : vector<1x512xf32> to vector<2x512xf32>
    %35 = arith.addf %32, %34 : vector<2x512xf32>
    %36 = arith.truncf %0 : vector<2x128xf32> to vector<2x128xbf16>
    %c0_16 = arith.constant 0 : index
    %c0_17 = arith.constant 0 : index
    %c0_18 = arith.constant 0 : index
    %37 = vector.load %arg3[%c0_16, %c0_17, %c0_18] : memref<2x128x512xbf16, #tpu.memory_space<vmem>>, vector<1x128x512xbf16>
    %38 = vector.shape_cast %37 : vector<1x128x512xbf16> to vector<128x512xbf16>
    %cst = arith.constant dense<0.000000e+00> : vector<2x512xf32>
    %39 = tpu.matmul %36, %38, %cst {dimension_numbers = #tpu.dot_dimension_numbers<[1], [0], [0], [1], [0, 0, 1, 1], [], []>} : vector<2x128xbf16>, vector<128x512xbf16>, vector<2x512xf32> -> vector<2x512xf32>
    %40 = arith.addf %21, %39 : vector<2x512xf32>
    %41 = arith.truncf %2 : vector<2x128xf32> to vector<2x128xbf16>
    %c1_19 = arith.constant 1 : index
    %c0_20 = arith.constant 0 : index
    %c0_21 = arith.constant 0 : index
    %42 = vector.load %arg3[%c1_19, %c0_20, %c0_21] : memref<2x128x512xbf16, #tpu.memory_space<vmem>>, vector<1x128x512xbf16>
    %43 = vector.shape_cast %42 : vector<1x128x512xbf16> to vector<128x512xbf16>
    %cst_22 = arith.constant dense<0.000000e+00> : vector<2x512xf32>
    %44 = tpu.matmul %41, %43, %cst_22 {dimension_numbers = #tpu.dot_dimension_numbers<[1], [0], [0], [1], [0, 0, 1, 1], [], []>} : vector<2x128xbf16>, vector<128x512xbf16>, vector<2x512xf32> -> vector<2x512xf32>
    %45 = arith.addf %35, %44 : vector<2x512xf32>
    %46 = vector.extract_strided_slice %40 {offsets = [0, 0], sizes = [2, 256], strides = [1, 1]} : vector<2x512xf32> to vector<2x256xf32>
    %47 = arith.negf %46 : vector<2x256xf32>
    %48 = math.exp %47 : vector<2x256xf32>
    %cst_23 = arith.constant 1.000000e+00 : f32
    %49 = vector.broadcast %cst_23 : f32 to vector<2x256xf32>
    %50 = arith.addf %49, %48 : vector<2x256xf32>
    %51 = arith.divf %49, %50 : vector<2x256xf32>
    %52 = vector.extract_strided_slice %51 {offsets = [0, 0], sizes = [2, 128], strides = [1, 1]} : vector<2x256xf32> to vector<2x128xf32>
    %53 = vector.extract_strided_slice %51 {offsets = [0, 128], sizes = [2, 128], strides = [1, 1]} : vector<2x256xf32> to vector<2x128xf32>
    %54 = vector.extract_strided_slice %40 {offsets = [0, 256], sizes = [2, 128], strides = [1, 1]} : vector<2x512xf32> to vector<2x128xf32>
    %55 = math.tanh %54 : vector<2x128xf32>
    %56 = vector.extract_strided_slice %40 {offsets = [0, 384], sizes = [2, 128], strides = [1, 1]} : vector<2x512xf32> to vector<2x128xf32>
    %57 = arith.negf %56 : vector<2x128xf32>
    %58 = math.exp %57 : vector<2x128xf32>
    %cst_24 = arith.constant 1.000000e+00 : f32
    %59 = vector.broadcast %cst_24 : f32 to vector<2x128xf32>
    %60 = arith.addf %59, %58 : vector<2x128xf32>
    %61 = arith.divf %59, %60 : vector<2x128xf32>
    %62 = arith.mulf %53, %1 : vector<2x128xf32>
    %63 = arith.mulf %52, %55 : vector<2x128xf32>
    %64 = arith.addf %62, %63 : vector<2x128xf32>
    %65 = math.tanh %64 : vector<2x128xf32>
    %66 = arith.mulf %61, %65 : vector<2x128xf32>
    %67 = vector.extract_strided_slice %45 {offsets = [0, 0], sizes = [2, 256], strides = [1, 1]} : vector<2x512xf32> to vector<2x256xf32>
    %68 = arith.negf %67 : vector<2x256xf32>
    %69 = math.exp %68 : vector<2x256xf32>
    %cst_25 = arith.constant 1.000000e+00 : f32
    %70 = vector.broadcast %cst_25 : f32 to vector<2x256xf32>
    %71 = arith.addf %70, %69 : vector<2x256xf32>
    %72 = arith.divf %70, %71 : vector<2x256xf32>
    %73 = vector.extract_strided_slice %72 {offsets = [0, 0], sizes = [2, 128], strides = [1, 1]} : vector<2x256xf32> to vector<2x128xf32>
    %74 = vector.extract_strided_slice %72 {offsets = [0, 128], sizes = [2, 128], strides = [1, 1]} : vector<2x256xf32> to vector<2x128xf32>
    %75 = vector.extract_strided_slice %45 {offsets = [0, 256], sizes = [2, 128], strides = [1, 1]} : vector<2x512xf32> to vector<2x128xf32>
    %76 = math.tanh %75 : vector<2x128xf32>
    %77 = vector.extract_strided_slice %45 {offsets = [0, 384], sizes = [2, 128], strides = [1, 1]} : vector<2x512xf32> to vector<2x128xf32>
    %78 = arith.negf %77 : vector<2x128xf32>
    %79 = math.exp %78 : vector<2x128xf32>
    %cst_26 = arith.constant 1.000000e+00 : f32
    %80 = vector.broadcast %cst_26 : f32 to vector<2x128xf32>
    %81 = arith.addf %80, %79 : vector<2x128xf32>
    %82 = arith.divf %80, %81 : vector<2x128xf32>
    %83 = arith.mulf %74, %3 : vector<2x128xf32>
    %84 = arith.mulf %73, %76 : vector<2x128xf32>
    %85 = arith.addf %83, %84 : vector<2x128xf32>
    %86 = math.tanh %85 : vector<2x128xf32>
    %87 = arith.mulf %82, %86 : vector<2x128xf32>
    %c1_27 = arith.constant 1 : index
    %c0_28 = arith.constant 0 : index
    %c0_29 = arith.constant 0 : index
    %88 = vector.load %arg0[%c1_27, %c0_28, %c0_29] : memref<8x2x2xf32, #tpu.memory_space<vmem>>, vector<1x2x2xf32>
    %89 = vector.shape_cast %88 : vector<1x2x2xf32> to vector<2x2xf32>
    %c6 = arith.constant 6 : index
    %c0_30 = arith.constant 0 : index
    %c0_31 = arith.constant 0 : index
    %90 = vector.load %arg0[%c6, %c0_30, %c0_31] : memref<8x2x2xf32, #tpu.memory_space<vmem>>, vector<1x2x2xf32>
    %91 = vector.shape_cast %90 : vector<1x2x2xf32> to vector<2x2xf32>
    %92 = vector.extract_strided_slice %89 {offsets = [0, 0], sizes = [2, 1], strides = [1, 1]} : vector<2x2xf32> to vector<2x1xf32>
    %c0_32 = arith.constant 0 : index
    %c0_33 = arith.constant 0 : index
    %93 = vector.load %arg2[%c0_32, %c0_33] : memref<6x512xf32, #tpu.memory_space<vmem>>, vector<1x512xf32>
    %94 = vector.broadcast %92 : vector<2x1xf32> to vector<2x512xf32>
    %95 = vector.broadcast %93 : vector<1x512xf32> to vector<2x512xf32>
    %96 = arith.mulf %94, %95 : vector<2x512xf32>
    %97 = vector.extract_strided_slice %89 {offsets = [0, 1], sizes = [2, 1], strides = [1, 1]} : vector<2x2xf32> to vector<2x1xf32>
    %c1_34 = arith.constant 1 : index
    %c0_35 = arith.constant 0 : index
    %98 = vector.load %arg2[%c1_34, %c0_35] : memref<6x512xf32, #tpu.memory_space<vmem>>, vector<1x512xf32>
    %99 = vector.broadcast %97 : vector<2x1xf32> to vector<2x512xf32>
    %100 = vector.broadcast %98 : vector<1x512xf32> to vector<2x512xf32>
    %101 = arith.mulf %99, %100 : vector<2x512xf32>
    %102 = arith.addf %96, %101 : vector<2x512xf32>
    %c4_36 = arith.constant 4 : index
    %c0_37 = arith.constant 0 : index
    %103 = vector.load %arg2[%c4_36, %c0_37] : memref<6x512xf32, #tpu.memory_space<vmem>>, vector<1x512xf32>
    %104 = vector.broadcast %103 : vector<1x512xf32> to vector<2x512xf32>
    %105 = arith.addf %102, %104 : vector<2x512xf32>
    %106 = vector.extract_strided_slice %91 {offsets = [0, 0], sizes = [2, 1], strides = [1, 1]} : vector<2x2xf32> to vector<2x1xf32>
    %c2_38 = arith.constant 2 : index
    %c0_39 = arith.constant 0 : index
    %107 = vector.load %arg2[%c2_38, %c0_39] : memref<6x512xf32, #tpu.memory_space<vmem>>, vector<1x512xf32>
    %108 = vector.broadcast %106 : vector<2x1xf32> to vector<2x512xf32>
    %109 = vector.broadcast %107 : vector<1x512xf32> to vector<2x512xf32>
    %110 = arith.mulf %108, %109 : vector<2x512xf32>
    %111 = vector.extract_strided_slice %91 {offsets = [0, 1], sizes = [2, 1], strides = [1, 1]} : vector<2x2xf32> to vector<2x1xf32>
    %c3_40 = arith.constant 3 : index
    %c0_41 = arith.constant 0 : index
    %112 = vector.load %arg2[%c3_40, %c0_41] : memref<6x512xf32, #tpu.memory_space<vmem>>, vector<1x512xf32>
    %113 = vector.broadcast %111 : vector<2x1xf32> to vector<2x512xf32>
    %114 = vector.broadcast %112 : vector<1x512xf32> to vector<2x512xf32>
    %115 = arith.mulf %113, %114 : vector<2x512xf32>
    %116 = arith.addf %110, %115 : vector<2x512xf32>
    %c5_42 = arith.constant 5 : index
    %c0_43 = arith.constant 0 : index
    %117 = vector.load %arg2[%c5_42, %c0_43] : memref<6x512xf32, #tpu.memory_space<vmem>>, vector<1x512xf32>
    %118 = vector.broadcast %117 : vector<1x512xf32> to vector<2x512xf32>
    %119 = arith.addf %116, %118 : vector<2x512xf32>
    %120 = arith.truncf %66 : vector<2x128xf32> to vector<2x128xbf16>
    %c0_44 = arith.constant 0 : index
    %c0_45 = arith.constant 0 : index
    %c0_46 = arith.constant 0 : index
    %121 = vector.load %arg3[%c0_44, %c0_45, %c0_46] : memref<2x128x512xbf16, #tpu.memory_space<vmem>>, vector<1x128x512xbf16>
    %122 = vector.shape_cast %121 : vector<1x128x512xbf16> to vector<128x512xbf16>
    %cst_47 = arith.constant dense<0.000000e+00> : vector<2x512xf32>
    %123 = tpu.matmul %120, %122, %cst_47 {dimension_numbers = #tpu.dot_dimension_numbers<[1], [0], [0], [1], [0, 0, 1, 1], [], []>} : vector<2x128xbf16>, vector<128x512xbf16>, vector<2x512xf32> -> vector<2x512xf32>
    %124 = arith.addf %105, %123 : vector<2x512xf32>
    %125 = arith.truncf %87 : vector<2x128xf32> to vector<2x128xbf16>
    %c1_48 = arith.constant 1 : index
    %c0_49 = arith.constant 0 : index
    %c0_50 = arith.constant 0 : index
    %126 = vector.load %arg3[%c1_48, %c0_49, %c0_50] : memref<2x128x512xbf16, #tpu.memory_space<vmem>>, vector<1x128x512xbf16>
    %127 = vector.shape_cast %126 : vector<1x128x512xbf16> to vector<128x512xbf16>
    %cst_51 = arith.constant dense<0.000000e+00> : vector<2x512xf32>
    %128 = tpu.matmul %125, %127, %cst_51 {dimension_numbers = #tpu.dot_dimension_numbers<[1], [0], [0], [1], [0, 0, 1, 1], [], []>} : vector<2x128xbf16>, vector<128x512xbf16>, vector<2x512xf32> -> vector<2x512xf32>
    %129 = arith.addf %119, %128 : vector<2x512xf32>
    %130 = vector.extract_strided_slice %124 {offsets = [0, 0], sizes = [2, 256], strides = [1, 1]} : vector<2x512xf32> to vector<2x256xf32>
    %131 = arith.negf %130 : vector<2x256xf32>
    %132 = math.exp %131 : vector<2x256xf32>
    %cst_52 = arith.constant 1.000000e+00 : f32
    %133 = vector.broadcast %cst_52 : f32 to vector<2x256xf32>
    %134 = arith.addf %133, %132 : vector<2x256xf32>
    %135 = arith.divf %133, %134 : vector<2x256xf32>
    %136 = vector.extract_strided_slice %135 {offsets = [0, 0], sizes = [2, 128], strides = [1, 1]} : vector<2x256xf32> to vector<2x128xf32>
    %137 = vector.extract_strided_slice %135 {offsets = [0, 128], sizes = [2, 128], strides = [1, 1]} : vector<2x256xf32> to vector<2x128xf32>
    %138 = vector.extract_strided_slice %124 {offsets = [0, 256], sizes = [2, 128], strides = [1, 1]} : vector<2x512xf32> to vector<2x128xf32>
    %139 = math.tanh %138 : vector<2x128xf32>
    %140 = vector.extract_strided_slice %124 {offsets = [0, 384], sizes = [2, 128], strides = [1, 1]} : vector<2x512xf32> to vector<2x128xf32>
    %141 = arith.negf %140 : vector<2x128xf32>
    %142 = math.exp %141 : vector<2x128xf32>
    %cst_53 = arith.constant 1.000000e+00 : f32
    %143 = vector.broadcast %cst_53 : f32 to vector<2x128xf32>
    %144 = arith.addf %143, %142 : vector<2x128xf32>
    %145 = arith.divf %143, %144 : vector<2x128xf32>
    %146 = arith.mulf %137, %64 : vector<2x128xf32>
    %147 = arith.mulf %136, %139 : vector<2x128xf32>
    %148 = arith.addf %146, %147 : vector<2x128xf32>
    %149 = math.tanh %148 : vector<2x128xf32>
    %150 = arith.mulf %145, %149 : vector<2x128xf32>
    %151 = vector.extract_strided_slice %129 {offsets = [0, 0], sizes = [2, 256], strides = [1, 1]} : vector<2x512xf32> to vector<2x256xf32>
    %152 = arith.negf %151 : vector<2x256xf32>
    %153 = math.exp %152 : vector<2x256xf32>
    %cst_54 = arith.constant 1.000000e+00 : f32
    %154 = vector.broadcast %cst_54 : f32 to vector<2x256xf32>
    %155 = arith.addf %154, %153 : vector<2x256xf32>
    %156 = arith.divf %154, %155 : vector<2x256xf32>
    %157 = vector.extract_strided_slice %156 {offsets = [0, 0], sizes = [2, 128], strides = [1, 1]} : vector<2x256xf32> to vector<2x128xf32>
    %158 = vector.extract_strided_slice %156 {offsets = [0, 128], sizes = [2, 128], strides = [1, 1]} : vector<2x256xf32> to vector<2x128xf32>
    %159 = vector.extract_strided_slice %129 {offsets = [0, 256], sizes = [2, 128], strides = [1, 1]} : vector<2x512xf32> to vector<2x128xf32>
    %160 = math.tanh %159 : vector<2x128xf32>
    %161 = vector.extract_strided_slice %129 {offsets = [0, 384], sizes = [2, 128], strides = [1, 1]} : vector<2x512xf32> to vector<2x128xf32>
    %162 = arith.negf %161 : vector<2x128xf32>
    %163 = math.exp %162 : vector<2x128xf32>
    %cst_55 = arith.constant 1.000000e+00 : f32
    %164 = vector.broadcast %cst_55 : f32 to vector<2x128xf32>
    %165 = arith.addf %164, %163 : vector<2x128xf32>
    %166 = arith.divf %164, %165 : vector<2x128xf32>
    %167 = arith.mulf %158, %85 : vector<2x128xf32>
    %168 = arith.mulf %157, %160 : vector<2x128xf32>
    %169 = arith.addf %167, %168 : vector<2x128xf32>
    %170 = math.tanh %169 : vector<2x128xf32>
    %171 = arith.mulf %166, %170 : vector<2x128xf32>
    %c2_56 = arith.constant 2 : index
    %c0_57 = arith.constant 0 : index
    %c0_58 = arith.constant 0 : index
    %172 = vector.load %arg0[%c2_56, %c0_57, %c0_58] : memref<8x2x2xf32, #tpu.memory_space<vmem>>, vector<1x2x2xf32>
    %173 = vector.shape_cast %172 : vector<1x2x2xf32> to vector<2x2xf32>
    %c5_59 = arith.constant 5 : index
    %c0_60 = arith.constant 0 : index
    %c0_61 = arith.constant 0 : index
    %174 = vector.load %arg0[%c5_59, %c0_60, %c0_61] : memref<8x2x2xf32, #tpu.memory_space<vmem>>, vector<1x2x2xf32>
    %175 = vector.shape_cast %174 : vector<1x2x2xf32> to vector<2x2xf32>
    %176 = vector.extract_strided_slice %173 {offsets = [0, 0], sizes = [2, 1], strides = [1, 1]} : vector<2x2xf32> to vector<2x1xf32>
    %c0_62 = arith.constant 0 : index
    %c0_63 = arith.constant 0 : index
    %177 = vector.load %arg2[%c0_62, %c0_63] : memref<6x512xf32, #tpu.memory_space<vmem>>, vector<1x512xf32>
    %178 = vector.broadcast %176 : vector<2x1xf32> to vector<2x512xf32>
    %179 = vector.broadcast %177 : vector<1x512xf32> to vector<2x512xf32>
    %180 = arith.mulf %178, %179 : vector<2x512xf32>
    %181 = vector.extract_strided_slice %173 {offsets = [0, 1], sizes = [2, 1], strides = [1, 1]} : vector<2x2xf32> to vector<2x1xf32>
    %c1_64 = arith.constant 1 : index
    %c0_65 = arith.constant 0 : index
    %182 = vector.load %arg2[%c1_64, %c0_65] : memref<6x512xf32, #tpu.memory_space<vmem>>, vector<1x512xf32>
    %183 = vector.broadcast %181 : vector<2x1xf32> to vector<2x512xf32>
    %184 = vector.broadcast %182 : vector<1x512xf32> to vector<2x512xf32>
    %185 = arith.mulf %183, %184 : vector<2x512xf32>
    %186 = arith.addf %180, %185 : vector<2x512xf32>
    %c4_66 = arith.constant 4 : index
    %c0_67 = arith.constant 0 : index
    %187 = vector.load %arg2[%c4_66, %c0_67] : memref<6x512xf32, #tpu.memory_space<vmem>>, vector<1x512xf32>
    %188 = vector.broadcast %187 : vector<1x512xf32> to vector<2x512xf32>
    %189 = arith.addf %186, %188 : vector<2x512xf32>
    %190 = vector.extract_strided_slice %175 {offsets = [0, 0], sizes = [2, 1], strides = [1, 1]} : vector<2x2xf32> to vector<2x1xf32>
    %c2_68 = arith.constant 2 : index
    %c0_69 = arith.constant 0 : index
    %191 = vector.load %arg2[%c2_68, %c0_69] : memref<6x512xf32, #tpu.memory_space<vmem>>, vector<1x512xf32>
    %192 = vector.broadcast %190 : vector<2x1xf32> to vector<2x512xf32>
    %193 = vector.broadcast %191 : vector<1x512xf32> to vector<2x512xf32>
    %194 = arith.mulf %192, %193 : vector<2x512xf32>
    %195 = vector.extract_strided_slice %175 {offsets = [0, 1], sizes = [2, 1], strides = [1, 1]} : vector<2x2xf32> to vector<2x1xf32>
    %c3_70 = arith.constant 3 : index
    %c0_71 = arith.constant 0 : index
    %196 = vector.load %arg2[%c3_70, %c0_71] : memref<6x512xf32, #tpu.memory_space<vmem>>, vector<1x512xf32>
    %197 = vector.broadcast %195 : vector<2x1xf32> to vector<2x512xf32>
    %198 = vector.broadcast %196 : vector<1x512xf32> to vector<2x512xf32>
    %199 = arith.mulf %197, %198 : vector<2x512xf32>
    %200 = arith.addf %194, %199 : vector<2x512xf32>
    %c5_72 = arith.constant 5 : index
    %c0_73 = arith.constant 0 : index
    %201 = vector.load %arg2[%c5_72, %c0_73] : memref<6x512xf32, #tpu.memory_space<vmem>>, vector<1x512xf32>
    %202 = vector.broadcast %201 : vector<1x512xf32> to vector<2x512xf32>
    %203 = arith.addf %200, %202 : vector<2x512xf32>
    %204 = arith.truncf %150 : vector<2x128xf32> to vector<2x128xbf16>
    %c0_74 = arith.constant 0 : index
    %c0_75 = arith.constant 0 : index
    %c0_76 = arith.constant 0 : index
    %205 = vector.load %arg3[%c0_74, %c0_75, %c0_76] : memref<2x128x512xbf16, #tpu.memory_space<vmem>>, vector<1x128x512xbf16>
    %206 = vector.shape_cast %205 : vector<1x128x512xbf16> to vector<128x512xbf16>
    %cst_77 = arith.constant dense<0.000000e+00> : vector<2x512xf32>
    %207 = tpu.matmul %204, %206, %cst_77 {dimension_numbers = #tpu.dot_dimension_numbers<[1], [0], [0], [1], [0, 0, 1, 1], [], []>} : vector<2x128xbf16>, vector<128x512xbf16>, vector<2x512xf32> -> vector<2x512xf32>
    %208 = arith.addf %189, %207 : vector<2x512xf32>
    %209 = arith.truncf %171 : vector<2x128xf32> to vector<2x128xbf16>
    %c1_78 = arith.constant 1 : index
    %c0_79 = arith.constant 0 : index
    %c0_80 = arith.constant 0 : index
    %210 = vector.load %arg3[%c1_78, %c0_79, %c0_80] : memref<2x128x512xbf16, #tpu.memory_space<vmem>>, vector<1x128x512xbf16>
    %211 = vector.shape_cast %210 : vector<1x128x512xbf16> to vector<128x512xbf16>
    %cst_81 = arith.constant dense<0.000000e+00> : vector<2x512xf32>
    %212 = tpu.matmul %209, %211, %cst_81 {dimension_numbers = #tpu.dot_dimension_numbers<[1], [0], [0], [1], [0, 0, 1, 1], [], []>} : vector<2x128xbf16>, vector<128x512xbf16>, vector<2x512xf32> -> vector<2x512xf32>
    %213 = arith.addf %203, %212 : vector<2x512xf32>
    %214 = vector.extract_strided_slice %208 {offsets = [0, 0], sizes = [2, 256], strides = [1, 1]} : vector<2x512xf32> to vector<2x256xf32>
    %215 = arith.negf %214 : vector<2x256xf32>
    %216 = math.exp %215 : vector<2x256xf32>
    %cst_82 = arith.constant 1.000000e+00 : f32
    %217 = vector.broadcast %cst_82 : f32 to vector<2x256xf32>
    %218 = arith.addf %217, %216 : vector<2x256xf32>
    %219 = arith.divf %217, %218 : vector<2x256xf32>
    %220 = vector.extract_strided_slice %219 {offsets = [0, 0], sizes = [2, 128], strides = [1, 1]} : vector<2x256xf32> to vector<2x128xf32>
    %221 = vector.extract_strided_slice %219 {offsets = [0, 128], sizes = [2, 128], strides = [1, 1]} : vector<2x256xf32> to vector<2x128xf32>
    %222 = vector.extract_strided_slice %208 {offsets = [0, 256], sizes = [2, 128], strides = [1, 1]} : vector<2x512xf32> to vector<2x128xf32>
    %223 = math.tanh %222 : vector<2x128xf32>
    %224 = vector.extract_strided_slice %208 {offsets = [0, 384], sizes = [2, 128], strides = [1, 1]} : vector<2x512xf32> to vector<2x128xf32>
    %225 = arith.negf %224 : vector<2x128xf32>
    %226 = math.exp %225 : vector<2x128xf32>
    %cst_83 = arith.constant 1.000000e+00 : f32
    %227 = vector.broadcast %cst_83 : f32 to vector<2x128xf32>
    %228 = arith.addf %227, %226 : vector<2x128xf32>
    %229 = arith.divf %227, %228 : vector<2x128xf32>
    %230 = arith.mulf %221, %148 : vector<2x128xf32>
    %231 = arith.mulf %220, %223 : vector<2x128xf32>
    %232 = arith.addf %230, %231 : vector<2x128xf32>
    %233 = math.tanh %232 : vector<2x128xf32>
    %234 = arith.mulf %229, %233 : vector<2x128xf32>
    %235 = vector.extract_strided_slice %213 {offsets = [0, 0], sizes = [2, 256], strides = [1, 1]} : vector<2x512xf32> to vector<2x256xf32>
    %236 = arith.negf %235 : vector<2x256xf32>
    %237 = math.exp %236 : vector<2x256xf32>
    %cst_84 = arith.constant 1.000000e+00 : f32
    %238 = vector.broadcast %cst_84 : f32 to vector<2x256xf32>
    %239 = arith.addf %238, %237 : vector<2x256xf32>
    %240 = arith.divf %238, %239 : vector<2x256xf32>
    %241 = vector.extract_strided_slice %240 {offsets = [0, 0], sizes = [2, 128], strides = [1, 1]} : vector<2x256xf32> to vector<2x128xf32>
    %242 = vector.extract_strided_slice %240 {offsets = [0, 128], sizes = [2, 128], strides = [1, 1]} : vector<2x256xf32> to vector<2x128xf32>
    %243 = vector.extract_strided_slice %213 {offsets = [0, 256], sizes = [2, 128], strides = [1, 1]} : vector<2x512xf32> to vector<2x128xf32>
    %244 = math.tanh %243 : vector<2x128xf32>
    %245 = vector.extract_strided_slice %213 {offsets = [0, 384], sizes = [2, 128], strides = [1, 1]} : vector<2x512xf32> to vector<2x128xf32>
    %246 = arith.negf %245 : vector<2x128xf32>
    %247 = math.exp %246 : vector<2x128xf32>
    %cst_85 = arith.constant 1.000000e+00 : f32
    %248 = vector.broadcast %cst_85 : f32 to vector<2x128xf32>
    %249 = arith.addf %248, %247 : vector<2x128xf32>
    %250 = arith.divf %248, %249 : vector<2x128xf32>
    %251 = arith.mulf %242, %169 : vector<2x128xf32>
    %252 = arith.mulf %241, %244 : vector<2x128xf32>
    %253 = arith.addf %251, %252 : vector<2x128xf32>
    %254 = math.tanh %253 : vector<2x128xf32>
    %255 = arith.mulf %250, %254 : vector<2x128xf32>
    %c3_86 = arith.constant 3 : index
    %c0_87 = arith.constant 0 : index
    %c0_88 = arith.constant 0 : index
    %256 = vector.load %arg0[%c3_86, %c0_87, %c0_88] : memref<8x2x2xf32, #tpu.memory_space<vmem>>, vector<1x2x2xf32>
    %257 = vector.shape_cast %256 : vector<1x2x2xf32> to vector<2x2xf32>
    %c4_89 = arith.constant 4 : index
    %c0_90 = arith.constant 0 : index
    %c0_91 = arith.constant 0 : index
    %258 = vector.load %arg0[%c4_89, %c0_90, %c0_91] : memref<8x2x2xf32, #tpu.memory_space<vmem>>, vector<1x2x2xf32>
    %259 = vector.shape_cast %258 : vector<1x2x2xf32> to vector<2x2xf32>
    %260 = vector.extract_strided_slice %257 {offsets = [0, 0], sizes = [2, 1], strides = [1, 1]} : vector<2x2xf32> to vector<2x1xf32>
    %c0_92 = arith.constant 0 : index
    %c0_93 = arith.constant 0 : index
    %261 = vector.load %arg2[%c0_92, %c0_93] : memref<6x512xf32, #tpu.memory_space<vmem>>, vector<1x512xf32>
    %262 = vector.broadcast %260 : vector<2x1xf32> to vector<2x512xf32>
    %263 = vector.broadcast %261 : vector<1x512xf32> to vector<2x512xf32>
    %264 = arith.mulf %262, %263 : vector<2x512xf32>
    %265 = vector.extract_strided_slice %257 {offsets = [0, 1], sizes = [2, 1], strides = [1, 1]} : vector<2x2xf32> to vector<2x1xf32>
    %c1_94 = arith.constant 1 : index
    %c0_95 = arith.constant 0 : index
    %266 = vector.load %arg2[%c1_94, %c0_95] : memref<6x512xf32, #tpu.memory_space<vmem>>, vector<1x512xf32>
    %267 = vector.broadcast %265 : vector<2x1xf32> to vector<2x512xf32>
    %268 = vector.broadcast %266 : vector<1x512xf32> to vector<2x512xf32>
    %269 = arith.mulf %267, %268 : vector<2x512xf32>
    %270 = arith.addf %264, %269 : vector<2x512xf32>
    %c4_96 = arith.constant 4 : index
    %c0_97 = arith.constant 0 : index
    %271 = vector.load %arg2[%c4_96, %c0_97] : memref<6x512xf32, #tpu.memory_space<vmem>>, vector<1x512xf32>
    %272 = vector.broadcast %271 : vector<1x512xf32> to vector<2x512xf32>
    %273 = arith.addf %270, %272 : vector<2x512xf32>
    %274 = vector.extract_strided_slice %259 {offsets = [0, 0], sizes = [2, 1], strides = [1, 1]} : vector<2x2xf32> to vector<2x1xf32>
    %c2_98 = arith.constant 2 : index
    %c0_99 = arith.constant 0 : index
    %275 = vector.load %arg2[%c2_98, %c0_99] : memref<6x512xf32, #tpu.memory_space<vmem>>, vector<1x512xf32>
    %276 = vector.broadcast %274 : vector<2x1xf32> to vector<2x512xf32>
    %277 = vector.broadcast %275 : vector<1x512xf32> to vector<2x512xf32>
    %278 = arith.mulf %276, %277 : vector<2x512xf32>
    %279 = vector.extract_strided_slice %259 {offsets = [0, 1], sizes = [2, 1], strides = [1, 1]} : vector<2x2xf32> to vector<2x1xf32>
    %c3_100 = arith.constant 3 : index
    %c0_101 = arith.constant 0 : index
    %280 = vector.load %arg2[%c3_100, %c0_101] : memref<6x512xf32, #tpu.memory_space<vmem>>, vector<1x512xf32>
    %281 = vector.broadcast %279 : vector<2x1xf32> to vector<2x512xf32>
    %282 = vector.broadcast %280 : vector<1x512xf32> to vector<2x512xf32>
    %283 = arith.mulf %281, %282 : vector<2x512xf32>
    %284 = arith.addf %278, %283 : vector<2x512xf32>
    %c5_102 = arith.constant 5 : index
    %c0_103 = arith.constant 0 : index
    %285 = vector.load %arg2[%c5_102, %c0_103] : memref<6x512xf32, #tpu.memory_space<vmem>>, vector<1x512xf32>
    %286 = vector.broadcast %285 : vector<1x512xf32> to vector<2x512xf32>
    %287 = arith.addf %284, %286 : vector<2x512xf32>
    %288 = arith.truncf %234 : vector<2x128xf32> to vector<2x128xbf16>
    %c0_104 = arith.constant 0 : index
    %c0_105 = arith.constant 0 : index
    %c0_106 = arith.constant 0 : index
    %289 = vector.load %arg3[%c0_104, %c0_105, %c0_106] : memref<2x128x512xbf16, #tpu.memory_space<vmem>>, vector<1x128x512xbf16>
    %290 = vector.shape_cast %289 : vector<1x128x512xbf16> to vector<128x512xbf16>
    %cst_107 = arith.constant dense<0.000000e+00> : vector<2x512xf32>
    %291 = tpu.matmul %288, %290, %cst_107 {dimension_numbers = #tpu.dot_dimension_numbers<[1], [0], [0], [1], [0, 0, 1, 1], [], []>} : vector<2x128xbf16>, vector<128x512xbf16>, vector<2x512xf32> -> vector<2x512xf32>
    %292 = arith.addf %273, %291 : vector<2x512xf32>
    %293 = arith.truncf %255 : vector<2x128xf32> to vector<2x128xbf16>
    %c1_108 = arith.constant 1 : index
    %c0_109 = arith.constant 0 : index
    %c0_110 = arith.constant 0 : index
    %294 = vector.load %arg3[%c1_108, %c0_109, %c0_110] : memref<2x128x512xbf16, #tpu.memory_space<vmem>>, vector<1x128x512xbf16>
    %295 = vector.shape_cast %294 : vector<1x128x512xbf16> to vector<128x512xbf16>
    %cst_111 = arith.constant dense<0.000000e+00> : vector<2x512xf32>
    %296 = tpu.matmul %293, %295, %cst_111 {dimension_numbers = #tpu.dot_dimension_numbers<[1], [0], [0], [1], [0, 0, 1, 1], [], []>} : vector<2x128xbf16>, vector<128x512xbf16>, vector<2x512xf32> -> vector<2x512xf32>
    %297 = arith.addf %287, %296 : vector<2x512xf32>
    %298 = vector.extract_strided_slice %292 {offsets = [0, 0], sizes = [2, 256], strides = [1, 1]} : vector<2x512xf32> to vector<2x256xf32>
    %299 = arith.negf %298 : vector<2x256xf32>
    %300 = math.exp %299 : vector<2x256xf32>
    %cst_112 = arith.constant 1.000000e+00 : f32
    %301 = vector.broadcast %cst_112 : f32 to vector<2x256xf32>
    %302 = arith.addf %301, %300 : vector<2x256xf32>
    %303 = arith.divf %301, %302 : vector<2x256xf32>
    %304 = vector.extract_strided_slice %303 {offsets = [0, 0], sizes = [2, 128], strides = [1, 1]} : vector<2x256xf32> to vector<2x128xf32>
    %305 = vector.extract_strided_slice %303 {offsets = [0, 128], sizes = [2, 128], strides = [1, 1]} : vector<2x256xf32> to vector<2x128xf32>
    %306 = vector.extract_strided_slice %292 {offsets = [0, 256], sizes = [2, 128], strides = [1, 1]} : vector<2x512xf32> to vector<2x128xf32>
    %307 = math.tanh %306 : vector<2x128xf32>
    %308 = vector.extract_strided_slice %292 {offsets = [0, 384], sizes = [2, 128], strides = [1, 1]} : vector<2x512xf32> to vector<2x128xf32>
    %309 = arith.negf %308 : vector<2x128xf32>
    %310 = math.exp %309 : vector<2x128xf32>
    %cst_113 = arith.constant 1.000000e+00 : f32
    %311 = vector.broadcast %cst_113 : f32 to vector<2x128xf32>
    %312 = arith.addf %311, %310 : vector<2x128xf32>
    %313 = arith.divf %311, %312 : vector<2x128xf32>
    %314 = arith.mulf %305, %232 : vector<2x128xf32>
    %315 = arith.mulf %304, %307 : vector<2x128xf32>
    %316 = arith.addf %314, %315 : vector<2x128xf32>
    %317 = math.tanh %316 : vector<2x128xf32>
    %318 = arith.mulf %313, %317 : vector<2x128xf32>
    %319 = vector.extract_strided_slice %297 {offsets = [0, 0], sizes = [2, 256], strides = [1, 1]} : vector<2x512xf32> to vector<2x256xf32>
    %320 = arith.negf %319 : vector<2x256xf32>
    %321 = math.exp %320 : vector<2x256xf32>
    %cst_114 = arith.constant 1.000000e+00 : f32
    %322 = vector.broadcast %cst_114 : f32 to vector<2x256xf32>
    %323 = arith.addf %322, %321 : vector<2x256xf32>
    %324 = arith.divf %322, %323 : vector<2x256xf32>
    %325 = vector.extract_strided_slice %324 {offsets = [0, 0], sizes = [2, 128], strides = [1, 1]} : vector<2x256xf32> to vector<2x128xf32>
    %326 = vector.extract_strided_slice %324 {offsets = [0, 128], sizes = [2, 128], strides = [1, 1]} : vector<2x256xf32> to vector<2x128xf32>
    %327 = vector.extract_strided_slice %297 {offsets = [0, 256], sizes = [2, 128], strides = [1, 1]} : vector<2x512xf32> to vector<2x128xf32>
    %328 = math.tanh %327 : vector<2x128xf32>
    %329 = vector.extract_strided_slice %297 {offsets = [0, 384], sizes = [2, 128], strides = [1, 1]} : vector<2x512xf32> to vector<2x128xf32>
    %330 = arith.negf %329 : vector<2x128xf32>
    %331 = math.exp %330 : vector<2x128xf32>
    %cst_115 = arith.constant 1.000000e+00 : f32
    %332 = vector.broadcast %cst_115 : f32 to vector<2x128xf32>
    %333 = arith.addf %332, %331 : vector<2x128xf32>
    %334 = arith.divf %332, %333 : vector<2x128xf32>
    %335 = arith.mulf %326, %253 : vector<2x128xf32>
    %336 = arith.mulf %325, %328 : vector<2x128xf32>
    %337 = arith.addf %335, %336 : vector<2x128xf32>
    %338 = math.tanh %337 : vector<2x128xf32>
    %339 = arith.mulf %334, %338 : vector<2x128xf32>
    %c4_116 = arith.constant 4 : index
    %c0_117 = arith.constant 0 : index
    %c0_118 = arith.constant 0 : index
    %340 = vector.load %arg0[%c4_116, %c0_117, %c0_118] : memref<8x2x2xf32, #tpu.memory_space<vmem>>, vector<1x2x2xf32>
    %341 = vector.shape_cast %340 : vector<1x2x2xf32> to vector<2x2xf32>
    %c3_119 = arith.constant 3 : index
    %c0_120 = arith.constant 0 : index
    %c0_121 = arith.constant 0 : index
    %342 = vector.load %arg0[%c3_119, %c0_120, %c0_121] : memref<8x2x2xf32, #tpu.memory_space<vmem>>, vector<1x2x2xf32>
    %343 = vector.shape_cast %342 : vector<1x2x2xf32> to vector<2x2xf32>
    %344 = vector.extract_strided_slice %341 {offsets = [0, 0], sizes = [2, 1], strides = [1, 1]} : vector<2x2xf32> to vector<2x1xf32>
    %c0_122 = arith.constant 0 : index
    %c0_123 = arith.constant 0 : index
    %345 = vector.load %arg2[%c0_122, %c0_123] : memref<6x512xf32, #tpu.memory_space<vmem>>, vector<1x512xf32>
    %346 = vector.broadcast %344 : vector<2x1xf32> to vector<2x512xf32>
    %347 = vector.broadcast %345 : vector<1x512xf32> to vector<2x512xf32>
    %348 = arith.mulf %346, %347 : vector<2x512xf32>
    %349 = vector.extract_strided_slice %341 {offsets = [0, 1], sizes = [2, 1], strides = [1, 1]} : vector<2x2xf32> to vector<2x1xf32>
    %c1_124 = arith.constant 1 : index
    %c0_125 = arith.constant 0 : index
    %350 = vector.load %arg2[%c1_124, %c0_125] : memref<6x512xf32, #tpu.memory_space<vmem>>, vector<1x512xf32>
    %351 = vector.broadcast %349 : vector<2x1xf32> to vector<2x512xf32>
    %352 = vector.broadcast %350 : vector<1x512xf32> to vector<2x512xf32>
    %353 = arith.mulf %351, %352 : vector<2x512xf32>
    %354 = arith.addf %348, %353 : vector<2x512xf32>
    %c4_126 = arith.constant 4 : index
    %c0_127 = arith.constant 0 : index
    %355 = vector.load %arg2[%c4_126, %c0_127] : memref<6x512xf32, #tpu.memory_space<vmem>>, vector<1x512xf32>
    %356 = vector.broadcast %355 : vector<1x512xf32> to vector<2x512xf32>
    %357 = arith.addf %354, %356 : vector<2x512xf32>
    %358 = vector.extract_strided_slice %343 {offsets = [0, 0], sizes = [2, 1], strides = [1, 1]} : vector<2x2xf32> to vector<2x1xf32>
    %c2_128 = arith.constant 2 : index
    %c0_129 = arith.constant 0 : index
    %359 = vector.load %arg2[%c2_128, %c0_129] : memref<6x512xf32, #tpu.memory_space<vmem>>, vector<1x512xf32>
    %360 = vector.broadcast %358 : vector<2x1xf32> to vector<2x512xf32>
    %361 = vector.broadcast %359 : vector<1x512xf32> to vector<2x512xf32>
    %362 = arith.mulf %360, %361 : vector<2x512xf32>
    %363 = vector.extract_strided_slice %343 {offsets = [0, 1], sizes = [2, 1], strides = [1, 1]} : vector<2x2xf32> to vector<2x1xf32>
    %c3_130 = arith.constant 3 : index
    %c0_131 = arith.constant 0 : index
    %364 = vector.load %arg2[%c3_130, %c0_131] : memref<6x512xf32, #tpu.memory_space<vmem>>, vector<1x512xf32>
    %365 = vector.broadcast %363 : vector<2x1xf32> to vector<2x512xf32>
    %366 = vector.broadcast %364 : vector<1x512xf32> to vector<2x512xf32>
    %367 = arith.mulf %365, %366 : vector<2x512xf32>
    %368 = arith.addf %362, %367 : vector<2x512xf32>
    %c5_132 = arith.constant 5 : index
    %c0_133 = arith.constant 0 : index
    %369 = vector.load %arg2[%c5_132, %c0_133] : memref<6x512xf32, #tpu.memory_space<vmem>>, vector<1x512xf32>
    %370 = vector.broadcast %369 : vector<1x512xf32> to vector<2x512xf32>
    %371 = arith.addf %368, %370 : vector<2x512xf32>
    %372 = arith.truncf %318 : vector<2x128xf32> to vector<2x128xbf16>
    %c0_134 = arith.constant 0 : index
    %c0_135 = arith.constant 0 : index
    %c0_136 = arith.constant 0 : index
    %373 = vector.load %arg3[%c0_134, %c0_135, %c0_136] : memref<2x128x512xbf16, #tpu.memory_space<vmem>>, vector<1x128x512xbf16>
    %374 = vector.shape_cast %373 : vector<1x128x512xbf16> to vector<128x512xbf16>
    %cst_137 = arith.constant dense<0.000000e+00> : vector<2x512xf32>
    %375 = tpu.matmul %372, %374, %cst_137 {dimension_numbers = #tpu.dot_dimension_numbers<[1], [0], [0], [1], [0, 0, 1, 1], [], []>} : vector<2x128xbf16>, vector<128x512xbf16>, vector<2x512xf32> -> vector<2x512xf32>
    %376 = arith.addf %357, %375 : vector<2x512xf32>
    %377 = arith.truncf %339 : vector<2x128xf32> to vector<2x128xbf16>
    %c1_138 = arith.constant 1 : index
    %c0_139 = arith.constant 0 : index
    %c0_140 = arith.constant 0 : index
    %378 = vector.load %arg3[%c1_138, %c0_139, %c0_140] : memref<2x128x512xbf16, #tpu.memory_space<vmem>>, vector<1x128x512xbf16>
    %379 = vector.shape_cast %378 : vector<1x128x512xbf16> to vector<128x512xbf16>
    %cst_141 = arith.constant dense<0.000000e+00> : vector<2x512xf32>
    %380 = tpu.matmul %377, %379, %cst_141 {dimension_numbers = #tpu.dot_dimension_numbers<[1], [0], [0], [1], [0, 0, 1, 1], [], []>} : vector<2x128xbf16>, vector<128x512xbf16>, vector<2x512xf32> -> vector<2x512xf32>
    %381 = arith.addf %371, %380 : vector<2x512xf32>
    %382 = vector.extract_strided_slice %376 {offsets = [0, 0], sizes = [2, 256], strides = [1, 1]} : vector<2x512xf32> to vector<2x256xf32>
    %383 = arith.negf %382 : vector<2x256xf32>
    %384 = math.exp %383 : vector<2x256xf32>
    %cst_142 = arith.constant 1.000000e+00 : f32
    %385 = vector.broadcast %cst_142 : f32 to vector<2x256xf32>
    %386 = arith.addf %385, %384 : vector<2x256xf32>
    %387 = arith.divf %385, %386 : vector<2x256xf32>
    %388 = vector.extract_strided_slice %387 {offsets = [0, 0], sizes = [2, 128], strides = [1, 1]} : vector<2x256xf32> to vector<2x128xf32>
    %389 = vector.extract_strided_slice %387 {offsets = [0, 128], sizes = [2, 128], strides = [1, 1]} : vector<2x256xf32> to vector<2x128xf32>
    %390 = vector.extract_strided_slice %376 {offsets = [0, 256], sizes = [2, 128], strides = [1, 1]} : vector<2x512xf32> to vector<2x128xf32>
    %391 = math.tanh %390 : vector<2x128xf32>
    %392 = vector.extract_strided_slice %376 {offsets = [0, 384], sizes = [2, 128], strides = [1, 1]} : vector<2x512xf32> to vector<2x128xf32>
    %393 = arith.negf %392 : vector<2x128xf32>
    %394 = math.exp %393 : vector<2x128xf32>
    %cst_143 = arith.constant 1.000000e+00 : f32
    %395 = vector.broadcast %cst_143 : f32 to vector<2x128xf32>
    %396 = arith.addf %395, %394 : vector<2x128xf32>
    %397 = arith.divf %395, %396 : vector<2x128xf32>
    %398 = arith.mulf %389, %316 : vector<2x128xf32>
    %399 = arith.mulf %388, %391 : vector<2x128xf32>
    %400 = arith.addf %398, %399 : vector<2x128xf32>
    %401 = math.tanh %400 : vector<2x128xf32>
    %402 = arith.mulf %397, %401 : vector<2x128xf32>
    %403 = vector.extract_strided_slice %381 {offsets = [0, 0], sizes = [2, 256], strides = [1, 1]} : vector<2x512xf32> to vector<2x256xf32>
    %404 = arith.negf %403 : vector<2x256xf32>
    %405 = math.exp %404 : vector<2x256xf32>
    %cst_144 = arith.constant 1.000000e+00 : f32
    %406 = vector.broadcast %cst_144 : f32 to vector<2x256xf32>
    %407 = arith.addf %406, %405 : vector<2x256xf32>
    %408 = arith.divf %406, %407 : vector<2x256xf32>
    %409 = vector.extract_strided_slice %408 {offsets = [0, 0], sizes = [2, 128], strides = [1, 1]} : vector<2x256xf32> to vector<2x128xf32>
    %410 = vector.extract_strided_slice %408 {offsets = [0, 128], sizes = [2, 128], strides = [1, 1]} : vector<2x256xf32> to vector<2x128xf32>
    %411 = vector.extract_strided_slice %381 {offsets = [0, 256], sizes = [2, 128], strides = [1, 1]} : vector<2x512xf32> to vector<2x128xf32>
    %412 = math.tanh %411 : vector<2x128xf32>
    %413 = vector.extract_strided_slice %381 {offsets = [0, 384], sizes = [2, 128], strides = [1, 1]} : vector<2x512xf32> to vector<2x128xf32>
    %414 = arith.negf %413 : vector<2x128xf32>
    %415 = math.exp %414 : vector<2x128xf32>
    %cst_145 = arith.constant 1.000000e+00 : f32
    %416 = vector.broadcast %cst_145 : f32 to vector<2x128xf32>
    %417 = arith.addf %416, %415 : vector<2x128xf32>
    %418 = arith.divf %416, %417 : vector<2x128xf32>
    %419 = arith.mulf %410, %337 : vector<2x128xf32>
    %420 = arith.mulf %409, %412 : vector<2x128xf32>
    %421 = arith.addf %419, %420 : vector<2x128xf32>
    %422 = math.tanh %421 : vector<2x128xf32>
    %423 = arith.mulf %418, %422 : vector<2x128xf32>
    %c5_146 = arith.constant 5 : index
    %c0_147 = arith.constant 0 : index
    %c0_148 = arith.constant 0 : index
    %424 = vector.load %arg0[%c5_146, %c0_147, %c0_148] : memref<8x2x2xf32, #tpu.memory_space<vmem>>, vector<1x2x2xf32>
    %425 = vector.shape_cast %424 : vector<1x2x2xf32> to vector<2x2xf32>
    %c2_149 = arith.constant 2 : index
    %c0_150 = arith.constant 0 : index
    %c0_151 = arith.constant 0 : index
    %426 = vector.load %arg0[%c2_149, %c0_150, %c0_151] : memref<8x2x2xf32, #tpu.memory_space<vmem>>, vector<1x2x2xf32>
    %427 = vector.shape_cast %426 : vector<1x2x2xf32> to vector<2x2xf32>
    %428 = vector.extract_strided_slice %425 {offsets = [0, 0], sizes = [2, 1], strides = [1, 1]} : vector<2x2xf32> to vector<2x1xf32>
    %c0_152 = arith.constant 0 : index
    %c0_153 = arith.constant 0 : index
    %429 = vector.load %arg2[%c0_152, %c0_153] : memref<6x512xf32, #tpu.memory_space<vmem>>, vector<1x512xf32>
    %430 = vector.broadcast %428 : vector<2x1xf32> to vector<2x512xf32>
    %431 = vector.broadcast %429 : vector<1x512xf32> to vector<2x512xf32>
    %432 = arith.mulf %430, %431 : vector<2x512xf32>
    %433 = vector.extract_strided_slice %425 {offsets = [0, 1], sizes = [2, 1], strides = [1, 1]} : vector<2x2xf32> to vector<2x1xf32>
    %c1_154 = arith.constant 1 : index
    %c0_155 = arith.constant 0 : index
    %434 = vector.load %arg2[%c1_154, %c0_155] : memref<6x512xf32, #tpu.memory_space<vmem>>, vector<1x512xf32>
    %435 = vector.broadcast %433 : vector<2x1xf32> to vector<2x512xf32>
    %436 = vector.broadcast %434 : vector<1x512xf32> to vector<2x512xf32>
    %437 = arith.mulf %435, %436 : vector<2x512xf32>
    %438 = arith.addf %432, %437 : vector<2x512xf32>
    %c4_156 = arith.constant 4 : index
    %c0_157 = arith.constant 0 : index
    %439 = vector.load %arg2[%c4_156, %c0_157] : memref<6x512xf32, #tpu.memory_space<vmem>>, vector<1x512xf32>
    %440 = vector.broadcast %439 : vector<1x512xf32> to vector<2x512xf32>
    %441 = arith.addf %438, %440 : vector<2x512xf32>
    %442 = vector.extract_strided_slice %427 {offsets = [0, 0], sizes = [2, 1], strides = [1, 1]} : vector<2x2xf32> to vector<2x1xf32>
    %c2_158 = arith.constant 2 : index
    %c0_159 = arith.constant 0 : index
    %443 = vector.load %arg2[%c2_158, %c0_159] : memref<6x512xf32, #tpu.memory_space<vmem>>, vector<1x512xf32>
    %444 = vector.broadcast %442 : vector<2x1xf32> to vector<2x512xf32>
    %445 = vector.broadcast %443 : vector<1x512xf32> to vector<2x512xf32>
    %446 = arith.mulf %444, %445 : vector<2x512xf32>
    %447 = vector.extract_strided_slice %427 {offsets = [0, 1], sizes = [2, 1], strides = [1, 1]} : vector<2x2xf32> to vector<2x1xf32>
    %c3_160 = arith.constant 3 : index
    %c0_161 = arith.constant 0 : index
    %448 = vector.load %arg2[%c3_160, %c0_161] : memref<6x512xf32, #tpu.memory_space<vmem>>, vector<1x512xf32>
    %449 = vector.broadcast %447 : vector<2x1xf32> to vector<2x512xf32>
    %450 = vector.broadcast %448 : vector<1x512xf32> to vector<2x512xf32>
    %451 = arith.mulf %449, %450 : vector<2x512xf32>
    %452 = arith.addf %446, %451 : vector<2x512xf32>
    %c5_162 = arith.constant 5 : index
    %c0_163 = arith.constant 0 : index
    %453 = vector.load %arg2[%c5_162, %c0_163] : memref<6x512xf32, #tpu.memory_space<vmem>>, vector<1x512xf32>
    %454 = vector.broadcast %453 : vector<1x512xf32> to vector<2x512xf32>
    %455 = arith.addf %452, %454 : vector<2x512xf32>
    %456 = arith.truncf %402 : vector<2x128xf32> to vector<2x128xbf16>
    %c0_164 = arith.constant 0 : index
    %c0_165 = arith.constant 0 : index
    %c0_166 = arith.constant 0 : index
    %457 = vector.load %arg3[%c0_164, %c0_165, %c0_166] : memref<2x128x512xbf16, #tpu.memory_space<vmem>>, vector<1x128x512xbf16>
    %458 = vector.shape_cast %457 : vector<1x128x512xbf16> to vector<128x512xbf16>
    %cst_167 = arith.constant dense<0.000000e+00> : vector<2x512xf32>
    %459 = tpu.matmul %456, %458, %cst_167 {dimension_numbers = #tpu.dot_dimension_numbers<[1], [0], [0], [1], [0, 0, 1, 1], [], []>} : vector<2x128xbf16>, vector<128x512xbf16>, vector<2x512xf32> -> vector<2x512xf32>
    %460 = arith.addf %441, %459 : vector<2x512xf32>
    %461 = arith.truncf %423 : vector<2x128xf32> to vector<2x128xbf16>
    %c1_168 = arith.constant 1 : index
    %c0_169 = arith.constant 0 : index
    %c0_170 = arith.constant 0 : index
    %462 = vector.load %arg3[%c1_168, %c0_169, %c0_170] : memref<2x128x512xbf16, #tpu.memory_space<vmem>>, vector<1x128x512xbf16>
    %463 = vector.shape_cast %462 : vector<1x128x512xbf16> to vector<128x512xbf16>
    %cst_171 = arith.constant dense<0.000000e+00> : vector<2x512xf32>
    %464 = tpu.matmul %461, %463, %cst_171 {dimension_numbers = #tpu.dot_dimension_numbers<[1], [0], [0], [1], [0, 0, 1, 1], [], []>} : vector<2x128xbf16>, vector<128x512xbf16>, vector<2x512xf32> -> vector<2x512xf32>
    %465 = arith.addf %455, %464 : vector<2x512xf32>
    %466 = vector.extract_strided_slice %460 {offsets = [0, 0], sizes = [2, 256], strides = [1, 1]} : vector<2x512xf32> to vector<2x256xf32>
    %467 = arith.negf %466 : vector<2x256xf32>
    %468 = math.exp %467 : vector<2x256xf32>
    %cst_172 = arith.constant 1.000000e+00 : f32
    %469 = vector.broadcast %cst_172 : f32 to vector<2x256xf32>
    %470 = arith.addf %469, %468 : vector<2x256xf32>
    %471 = arith.divf %469, %470 : vector<2x256xf32>
    %472 = vector.extract_strided_slice %471 {offsets = [0, 0], sizes = [2, 128], strides = [1, 1]} : vector<2x256xf32> to vector<2x128xf32>
    %473 = vector.extract_strided_slice %471 {offsets = [0, 128], sizes = [2, 128], strides = [1, 1]} : vector<2x256xf32> to vector<2x128xf32>
    %474 = vector.extract_strided_slice %460 {offsets = [0, 256], sizes = [2, 128], strides = [1, 1]} : vector<2x512xf32> to vector<2x128xf32>
    %475 = math.tanh %474 : vector<2x128xf32>
    %476 = vector.extract_strided_slice %460 {offsets = [0, 384], sizes = [2, 128], strides = [1, 1]} : vector<2x512xf32> to vector<2x128xf32>
    %477 = arith.negf %476 : vector<2x128xf32>
    %478 = math.exp %477 : vector<2x128xf32>
    %cst_173 = arith.constant 1.000000e+00 : f32
    %479 = vector.broadcast %cst_173 : f32 to vector<2x128xf32>
    %480 = arith.addf %479, %478 : vector<2x128xf32>
    %481 = arith.divf %479, %480 : vector<2x128xf32>
    %482 = arith.mulf %473, %400 : vector<2x128xf32>
    %483 = arith.mulf %472, %475 : vector<2x128xf32>
    %484 = arith.addf %482, %483 : vector<2x128xf32>
    %485 = math.tanh %484 : vector<2x128xf32>
    %486 = arith.mulf %481, %485 : vector<2x128xf32>
    %487 = vector.extract_strided_slice %465 {offsets = [0, 0], sizes = [2, 256], strides = [1, 1]} : vector<2x512xf32> to vector<2x256xf32>
    %488 = arith.negf %487 : vector<2x256xf32>
    %489 = math.exp %488 : vector<2x256xf32>
    %cst_174 = arith.constant 1.000000e+00 : f32
    %490 = vector.broadcast %cst_174 : f32 to vector<2x256xf32>
    %491 = arith.addf %490, %489 : vector<2x256xf32>
    %492 = arith.divf %490, %491 : vector<2x256xf32>
    %493 = vector.extract_strided_slice %492 {offsets = [0, 0], sizes = [2, 128], strides = [1, 1]} : vector<2x256xf32> to vector<2x128xf32>
    %494 = vector.extract_strided_slice %492 {offsets = [0, 128], sizes = [2, 128], strides = [1, 1]} : vector<2x256xf32> to vector<2x128xf32>
    %495 = vector.extract_strided_slice %465 {offsets = [0, 256], sizes = [2, 128], strides = [1, 1]} : vector<2x512xf32> to vector<2x128xf32>
    %496 = math.tanh %495 : vector<2x128xf32>
    %497 = vector.extract_strided_slice %465 {offsets = [0, 384], sizes = [2, 128], strides = [1, 1]} : vector<2x512xf32> to vector<2x128xf32>
    %498 = arith.negf %497 : vector<2x128xf32>
    %499 = math.exp %498 : vector<2x128xf32>
    %cst_175 = arith.constant 1.000000e+00 : f32
    %500 = vector.broadcast %cst_175 : f32 to vector<2x128xf32>
    %501 = arith.addf %500, %499 : vector<2x128xf32>
    %502 = arith.divf %500, %501 : vector<2x128xf32>
    %503 = arith.mulf %494, %421 : vector<2x128xf32>
    %504 = arith.mulf %493, %496 : vector<2x128xf32>
    %505 = arith.addf %503, %504 : vector<2x128xf32>
    %506 = math.tanh %505 : vector<2x128xf32>
    %507 = arith.mulf %502, %506 : vector<2x128xf32>
    %c6_176 = arith.constant 6 : index
    %c0_177 = arith.constant 0 : index
    %c0_178 = arith.constant 0 : index
    %508 = vector.load %arg0[%c6_176, %c0_177, %c0_178] : memref<8x2x2xf32, #tpu.memory_space<vmem>>, vector<1x2x2xf32>
    %509 = vector.shape_cast %508 : vector<1x2x2xf32> to vector<2x2xf32>
    %c1_179 = arith.constant 1 : index
    %c0_180 = arith.constant 0 : index
    %c0_181 = arith.constant 0 : index
    %510 = vector.load %arg0[%c1_179, %c0_180, %c0_181] : memref<8x2x2xf32, #tpu.memory_space<vmem>>, vector<1x2x2xf32>
    %511 = vector.shape_cast %510 : vector<1x2x2xf32> to vector<2x2xf32>
    %512 = vector.extract_strided_slice %509 {offsets = [0, 0], sizes = [2, 1], strides = [1, 1]} : vector<2x2xf32> to vector<2x1xf32>
    %c0_182 = arith.constant 0 : index
    %c0_183 = arith.constant 0 : index
    %513 = vector.load %arg2[%c0_182, %c0_183] : memref<6x512xf32, #tpu.memory_space<vmem>>, vector<1x512xf32>
    %514 = vector.broadcast %512 : vector<2x1xf32> to vector<2x512xf32>
    %515 = vector.broadcast %513 : vector<1x512xf32> to vector<2x512xf32>
    %516 = arith.mulf %514, %515 : vector<2x512xf32>
    %517 = vector.extract_strided_slice %509 {offsets = [0, 1], sizes = [2, 1], strides = [1, 1]} : vector<2x2xf32> to vector<2x1xf32>
    %c1_184 = arith.constant 1 : index
    %c0_185 = arith.constant 0 : index
    %518 = vector.load %arg2[%c1_184, %c0_185] : memref<6x512xf32, #tpu.memory_space<vmem>>, vector<1x512xf32>
    %519 = vector.broadcast %517 : vector<2x1xf32> to vector<2x512xf32>
    %520 = vector.broadcast %518 : vector<1x512xf32> to vector<2x512xf32>
    %521 = arith.mulf %519, %520 : vector<2x512xf32>
    %522 = arith.addf %516, %521 : vector<2x512xf32>
    %c4_186 = arith.constant 4 : index
    %c0_187 = arith.constant 0 : index
    %523 = vector.load %arg2[%c4_186, %c0_187] : memref<6x512xf32, #tpu.memory_space<vmem>>, vector<1x512xf32>
    %524 = vector.broadcast %523 : vector<1x512xf32> to vector<2x512xf32>
    %525 = arith.addf %522, %524 : vector<2x512xf32>
    %526 = vector.extract_strided_slice %511 {offsets = [0, 0], sizes = [2, 1], strides = [1, 1]} : vector<2x2xf32> to vector<2x1xf32>
    %c2_188 = arith.constant 2 : index
    %c0_189 = arith.constant 0 : index
    %527 = vector.load %arg2[%c2_188, %c0_189] : memref<6x512xf32, #tpu.memory_space<vmem>>, vector<1x512xf32>
    %528 = vector.broadcast %526 : vector<2x1xf32> to vector<2x512xf32>
    %529 = vector.broadcast %527 : vector<1x512xf32> to vector<2x512xf32>
    %530 = arith.mulf %528, %529 : vector<2x512xf32>
    %531 = vector.extract_strided_slice %511 {offsets = [0, 1], sizes = [2, 1], strides = [1, 1]} : vector<2x2xf32> to vector<2x1xf32>
    %c3_190 = arith.constant 3 : index
    %c0_191 = arith.constant 0 : index
    %532 = vector.load %arg2[%c3_190, %c0_191] : memref<6x512xf32, #tpu.memory_space<vmem>>, vector<1x512xf32>
    %533 = vector.broadcast %531 : vector<2x1xf32> to vector<2x512xf32>
    %534 = vector.broadcast %532 : vector<1x512xf32> to vector<2x512xf32>
    %535 = arith.mulf %533, %534 : vector<2x512xf32>
    %536 = arith.addf %530, %535 : vector<2x512xf32>
    %c5_192 = arith.constant 5 : index
    %c0_193 = arith.constant 0 : index
    %537 = vector.load %arg2[%c5_192, %c0_193] : memref<6x512xf32, #tpu.memory_space<vmem>>, vector<1x512xf32>
    %538 = vector.broadcast %537 : vector<1x512xf32> to vector<2x512xf32>
    %539 = arith.addf %536, %538 : vector<2x512xf32>
    %540 = arith.truncf %486 : vector<2x128xf32> to vector<2x128xbf16>
    %c0_194 = arith.constant 0 : index
    %c0_195 = arith.constant 0 : index
    %c0_196 = arith.constant 0 : index
    %541 = vector.load %arg3[%c0_194, %c0_195, %c0_196] : memref<2x128x512xbf16, #tpu.memory_space<vmem>>, vector<1x128x512xbf16>
    %542 = vector.shape_cast %541 : vector<1x128x512xbf16> to vector<128x512xbf16>
    %cst_197 = arith.constant dense<0.000000e+00> : vector<2x512xf32>
    %543 = tpu.matmul %540, %542, %cst_197 {dimension_numbers = #tpu.dot_dimension_numbers<[1], [0], [0], [1], [0, 0, 1, 1], [], []>} : vector<2x128xbf16>, vector<128x512xbf16>, vector<2x512xf32> -> vector<2x512xf32>
    %544 = arith.addf %525, %543 : vector<2x512xf32>
    %545 = arith.truncf %507 : vector<2x128xf32> to vector<2x128xbf16>
    %c1_198 = arith.constant 1 : index
    %c0_199 = arith.constant 0 : index
    %c0_200 = arith.constant 0 : index
    %546 = vector.load %arg3[%c1_198, %c0_199, %c0_200] : memref<2x128x512xbf16, #tpu.memory_space<vmem>>, vector<1x128x512xbf16>
    %547 = vector.shape_cast %546 : vector<1x128x512xbf16> to vector<128x512xbf16>
    %cst_201 = arith.constant dense<0.000000e+00> : vector<2x512xf32>
    %548 = tpu.matmul %545, %547, %cst_201 {dimension_numbers = #tpu.dot_dimension_numbers<[1], [0], [0], [1], [0, 0, 1, 1], [], []>} : vector<2x128xbf16>, vector<128x512xbf16>, vector<2x512xf32> -> vector<2x512xf32>
    %549 = arith.addf %539, %548 : vector<2x512xf32>
    %550 = vector.extract_strided_slice %544 {offsets = [0, 0], sizes = [2, 256], strides = [1, 1]} : vector<2x512xf32> to vector<2x256xf32>
    %551 = arith.negf %550 : vector<2x256xf32>
    %552 = math.exp %551 : vector<2x256xf32>
    %cst_202 = arith.constant 1.000000e+00 : f32
    %553 = vector.broadcast %cst_202 : f32 to vector<2x256xf32>
    %554 = arith.addf %553, %552 : vector<2x256xf32>
    %555 = arith.divf %553, %554 : vector<2x256xf32>
    %556 = vector.extract_strided_slice %555 {offsets = [0, 0], sizes = [2, 128], strides = [1, 1]} : vector<2x256xf32> to vector<2x128xf32>
    %557 = vector.extract_strided_slice %555 {offsets = [0, 128], sizes = [2, 128], strides = [1, 1]} : vector<2x256xf32> to vector<2x128xf32>
    %558 = vector.extract_strided_slice %544 {offsets = [0, 256], sizes = [2, 128], strides = [1, 1]} : vector<2x512xf32> to vector<2x128xf32>
    %559 = math.tanh %558 : vector<2x128xf32>
    %560 = vector.extract_strided_slice %544 {offsets = [0, 384], sizes = [2, 128], strides = [1, 1]} : vector<2x512xf32> to vector<2x128xf32>
    %561 = arith.negf %560 : vector<2x128xf32>
    %562 = math.exp %561 : vector<2x128xf32>
    %cst_203 = arith.constant 1.000000e+00 : f32
    %563 = vector.broadcast %cst_203 : f32 to vector<2x128xf32>
    %564 = arith.addf %563, %562 : vector<2x128xf32>
    %565 = arith.divf %563, %564 : vector<2x128xf32>
    %566 = arith.mulf %557, %484 : vector<2x128xf32>
    %567 = arith.mulf %556, %559 : vector<2x128xf32>
    %568 = arith.addf %566, %567 : vector<2x128xf32>
    %569 = math.tanh %568 : vector<2x128xf32>
    %570 = arith.mulf %565, %569 : vector<2x128xf32>
    %571 = vector.extract_strided_slice %549 {offsets = [0, 0], sizes = [2, 256], strides = [1, 1]} : vector<2x512xf32> to vector<2x256xf32>
    %572 = arith.negf %571 : vector<2x256xf32>
    %573 = math.exp %572 : vector<2x256xf32>
    %cst_204 = arith.constant 1.000000e+00 : f32
    %574 = vector.broadcast %cst_204 : f32 to vector<2x256xf32>
    %575 = arith.addf %574, %573 : vector<2x256xf32>
    %576 = arith.divf %574, %575 : vector<2x256xf32>
    %577 = vector.extract_strided_slice %576 {offsets = [0, 0], sizes = [2, 128], strides = [1, 1]} : vector<2x256xf32> to vector<2x128xf32>
    %578 = vector.extract_strided_slice %576 {offsets = [0, 128], sizes = [2, 128], strides = [1, 1]} : vector<2x256xf32> to vector<2x128xf32>
    %579 = vector.extract_strided_slice %549 {offsets = [0, 256], sizes = [2, 128], strides = [1, 1]} : vector<2x512xf32> to vector<2x128xf32>
    %580 = math.tanh %579 : vector<2x128xf32>
    %581 = vector.extract_strided_slice %549 {offsets = [0, 384], sizes = [2, 128], strides = [1, 1]} : vector<2x512xf32> to vector<2x128xf32>
    %582 = arith.negf %581 : vector<2x128xf32>
    %583 = math.exp %582 : vector<2x128xf32>
    %cst_205 = arith.constant 1.000000e+00 : f32
    %584 = vector.broadcast %cst_205 : f32 to vector<2x128xf32>
    %585 = arith.addf %584, %583 : vector<2x128xf32>
    %586 = arith.divf %584, %585 : vector<2x128xf32>
    %587 = arith.mulf %578, %505 : vector<2x128xf32>
    %588 = arith.mulf %577, %580 : vector<2x128xf32>
    %589 = arith.addf %587, %588 : vector<2x128xf32>
    %590 = math.tanh %589 : vector<2x128xf32>
    %591 = arith.mulf %586, %590 : vector<2x128xf32>
    %c7_206 = arith.constant 7 : index
    %c0_207 = arith.constant 0 : index
    %c0_208 = arith.constant 0 : index
    %592 = vector.load %arg0[%c7_206, %c0_207, %c0_208] : memref<8x2x2xf32, #tpu.memory_space<vmem>>, vector<1x2x2xf32>
    %593 = vector.shape_cast %592 : vector<1x2x2xf32> to vector<2x2xf32>
    %c0_209 = arith.constant 0 : index
    %c0_210 = arith.constant 0 : index
    %c0_211 = arith.constant 0 : index
    %594 = vector.load %arg0[%c0_209, %c0_210, %c0_211] : memref<8x2x2xf32, #tpu.memory_space<vmem>>, vector<1x2x2xf32>
    %595 = vector.shape_cast %594 : vector<1x2x2xf32> to vector<2x2xf32>
    %596 = vector.extract_strided_slice %593 {offsets = [0, 0], sizes = [2, 1], strides = [1, 1]} : vector<2x2xf32> to vector<2x1xf32>
    %c0_212 = arith.constant 0 : index
    %c0_213 = arith.constant 0 : index
    %597 = vector.load %arg2[%c0_212, %c0_213] : memref<6x512xf32, #tpu.memory_space<vmem>>, vector<1x512xf32>
    %598 = vector.broadcast %596 : vector<2x1xf32> to vector<2x512xf32>
    %599 = vector.broadcast %597 : vector<1x512xf32> to vector<2x512xf32>
    %600 = arith.mulf %598, %599 : vector<2x512xf32>
    %601 = vector.extract_strided_slice %593 {offsets = [0, 1], sizes = [2, 1], strides = [1, 1]} : vector<2x2xf32> to vector<2x1xf32>
    %c1_214 = arith.constant 1 : index
    %c0_215 = arith.constant 0 : index
    %602 = vector.load %arg2[%c1_214, %c0_215] : memref<6x512xf32, #tpu.memory_space<vmem>>, vector<1x512xf32>
    %603 = vector.broadcast %601 : vector<2x1xf32> to vector<2x512xf32>
    %604 = vector.broadcast %602 : vector<1x512xf32> to vector<2x512xf32>
    %605 = arith.mulf %603, %604 : vector<2x512xf32>
    %606 = arith.addf %600, %605 : vector<2x512xf32>
    %c4_216 = arith.constant 4 : index
    %c0_217 = arith.constant 0 : index
    %607 = vector.load %arg2[%c4_216, %c0_217] : memref<6x512xf32, #tpu.memory_space<vmem>>, vector<1x512xf32>
    %608 = vector.broadcast %607 : vector<1x512xf32> to vector<2x512xf32>
    %609 = arith.addf %606, %608 : vector<2x512xf32>
    %610 = vector.extract_strided_slice %595 {offsets = [0, 0], sizes = [2, 1], strides = [1, 1]} : vector<2x2xf32> to vector<2x1xf32>
    %c2_218 = arith.constant 2 : index
    %c0_219 = arith.constant 0 : index
    %611 = vector.load %arg2[%c2_218, %c0_219] : memref<6x512xf32, #tpu.memory_space<vmem>>, vector<1x512xf32>
    %612 = vector.broadcast %610 : vector<2x1xf32> to vector<2x512xf32>
    %613 = vector.broadcast %611 : vector<1x512xf32> to vector<2x512xf32>
    %614 = arith.mulf %612, %613 : vector<2x512xf32>
    %615 = vector.extract_strided_slice %595 {offsets = [0, 1], sizes = [2, 1], strides = [1, 1]} : vector<2x2xf32> to vector<2x1xf32>
    %c3_220 = arith.constant 3 : index
    %c0_221 = arith.constant 0 : index
    %616 = vector.load %arg2[%c3_220, %c0_221] : memref<6x512xf32, #tpu.memory_space<vmem>>, vector<1x512xf32>
    %617 = vector.broadcast %615 : vector<2x1xf32> to vector<2x512xf32>
    %618 = vector.broadcast %616 : vector<1x512xf32> to vector<2x512xf32>
    %619 = arith.mulf %617, %618 : vector<2x512xf32>
    %620 = arith.addf %614, %619 : vector<2x512xf32>
    %c5_222 = arith.constant 5 : index
    %c0_223 = arith.constant 0 : index
    %621 = vector.load %arg2[%c5_222, %c0_223] : memref<6x512xf32, #tpu.memory_space<vmem>>, vector<1x512xf32>
    %622 = vector.broadcast %621 : vector<1x512xf32> to vector<2x512xf32>
    %623 = arith.addf %620, %622 : vector<2x512xf32>
    %624 = arith.truncf %570 : vector<2x128xf32> to vector<2x128xbf16>
    %c0_224 = arith.constant 0 : index
    %c0_225 = arith.constant 0 : index
    %c0_226 = arith.constant 0 : index
    %625 = vector.load %arg3[%c0_224, %c0_225, %c0_226] : memref<2x128x512xbf16, #tpu.memory_space<vmem>>, vector<1x128x512xbf16>
    %626 = vector.shape_cast %625 : vector<1x128x512xbf16> to vector<128x512xbf16>
    %cst_227 = arith.constant dense<0.000000e+00> : vector<2x512xf32>
    %627 = tpu.matmul %624, %626, %cst_227 {dimension_numbers = #tpu.dot_dimension_numbers<[1], [0], [0], [1], [0, 0, 1, 1], [], []>} : vector<2x128xbf16>, vector<128x512xbf16>, vector<2x512xf32> -> vector<2x512xf32>
    %628 = arith.addf %609, %627 : vector<2x512xf32>
    %629 = arith.truncf %591 : vector<2x128xf32> to vector<2x128xbf16>
    %c1_228 = arith.constant 1 : index
    %c0_229 = arith.constant 0 : index
    %c0_230 = arith.constant 0 : index
    %630 = vector.load %arg3[%c1_228, %c0_229, %c0_230] : memref<2x128x512xbf16, #tpu.memory_space<vmem>>, vector<1x128x512xbf16>
    %631 = vector.shape_cast %630 : vector<1x128x512xbf16> to vector<128x512xbf16>
    %cst_231 = arith.constant dense<0.000000e+00> : vector<2x512xf32>
    %632 = tpu.matmul %629, %631, %cst_231 {dimension_numbers = #tpu.dot_dimension_numbers<[1], [0], [0], [1], [0, 0, 1, 1], [], []>} : vector<2x128xbf16>, vector<128x512xbf16>, vector<2x512xf32> -> vector<2x512xf32>
    %633 = arith.addf %623, %632 : vector<2x512xf32>
    %634 = vector.extract_strided_slice %628 {offsets = [0, 0], sizes = [2, 256], strides = [1, 1]} : vector<2x512xf32> to vector<2x256xf32>
    %635 = arith.negf %634 : vector<2x256xf32>
    %636 = math.exp %635 : vector<2x256xf32>
    %cst_232 = arith.constant 1.000000e+00 : f32
    %637 = vector.broadcast %cst_232 : f32 to vector<2x256xf32>
    %638 = arith.addf %637, %636 : vector<2x256xf32>
    %639 = arith.divf %637, %638 : vector<2x256xf32>
    %640 = vector.extract_strided_slice %639 {offsets = [0, 0], sizes = [2, 128], strides = [1, 1]} : vector<2x256xf32> to vector<2x128xf32>
    %641 = vector.extract_strided_slice %639 {offsets = [0, 128], sizes = [2, 128], strides = [1, 1]} : vector<2x256xf32> to vector<2x128xf32>
    %642 = vector.extract_strided_slice %628 {offsets = [0, 256], sizes = [2, 128], strides = [1, 1]} : vector<2x512xf32> to vector<2x128xf32>
    %643 = math.tanh %642 : vector<2x128xf32>
    %644 = vector.extract_strided_slice %628 {offsets = [0, 384], sizes = [2, 128], strides = [1, 1]} : vector<2x512xf32> to vector<2x128xf32>
    %645 = arith.negf %644 : vector<2x128xf32>
    %646 = math.exp %645 : vector<2x128xf32>
    %cst_233 = arith.constant 1.000000e+00 : f32
    %647 = vector.broadcast %cst_233 : f32 to vector<2x128xf32>
    %648 = arith.addf %647, %646 : vector<2x128xf32>
    %649 = arith.divf %647, %648 : vector<2x128xf32>
    %650 = arith.mulf %641, %568 : vector<2x128xf32>
    %651 = arith.mulf %640, %643 : vector<2x128xf32>
    %652 = arith.addf %650, %651 : vector<2x128xf32>
    %653 = math.tanh %652 : vector<2x128xf32>
    %654 = arith.mulf %649, %653 : vector<2x128xf32>
    %655 = vector.extract_strided_slice %633 {offsets = [0, 0], sizes = [2, 256], strides = [1, 1]} : vector<2x512xf32> to vector<2x256xf32>
    %656 = arith.negf %655 : vector<2x256xf32>
    %657 = math.exp %656 : vector<2x256xf32>
    %cst_234 = arith.constant 1.000000e+00 : f32
    %658 = vector.broadcast %cst_234 : f32 to vector<2x256xf32>
    %659 = arith.addf %658, %657 : vector<2x256xf32>
    %660 = arith.divf %658, %659 : vector<2x256xf32>
    %661 = vector.extract_strided_slice %660 {offsets = [0, 0], sizes = [2, 128], strides = [1, 1]} : vector<2x256xf32> to vector<2x128xf32>
    %662 = vector.extract_strided_slice %660 {offsets = [0, 128], sizes = [2, 128], strides = [1, 1]} : vector<2x256xf32> to vector<2x128xf32>
    %663 = vector.extract_strided_slice %633 {offsets = [0, 256], sizes = [2, 128], strides = [1, 1]} : vector<2x512xf32> to vector<2x128xf32>
    %664 = math.tanh %663 : vector<2x128xf32>
    %665 = vector.extract_strided_slice %633 {offsets = [0, 384], sizes = [2, 128], strides = [1, 1]} : vector<2x512xf32> to vector<2x128xf32>
    %666 = arith.negf %665 : vector<2x128xf32>
    %667 = math.exp %666 : vector<2x128xf32>
    %cst_235 = arith.constant 1.000000e+00 : f32
    %668 = vector.broadcast %cst_235 : f32 to vector<2x128xf32>
    %669 = arith.addf %668, %667 : vector<2x128xf32>
    %670 = arith.divf %668, %669 : vector<2x128xf32>
    %671 = arith.mulf %662, %589 : vector<2x128xf32>
    %672 = arith.mulf %661, %664 : vector<2x128xf32>
    %673 = arith.addf %671, %672 : vector<2x128xf32>
    %674 = math.tanh %673 : vector<2x128xf32>
    %675 = arith.mulf %670, %674 : vector<2x128xf32>
    %676 = vector.shape_cast %66 : vector<2x128xf32> to vector<1x2x128xf32>
    %677 = vector.shape_cast %150 : vector<2x128xf32> to vector<1x2x128xf32>
    %678 = vector.shape_cast %234 : vector<2x128xf32> to vector<1x2x128xf32>
    %679 = vector.shape_cast %318 : vector<2x128xf32> to vector<1x2x128xf32>
    %680 = vector.shape_cast %402 : vector<2x128xf32> to vector<1x2x128xf32>
    %681 = vector.shape_cast %486 : vector<2x128xf32> to vector<1x2x128xf32>
    %682 = vector.shape_cast %570 : vector<2x128xf32> to vector<1x2x128xf32>
    %683 = vector.shape_cast %654 : vector<2x128xf32> to vector<1x2x128xf32>
    %684 = tpu.concatenate %676, %677, %678, %679, %680, %681, %682, %683 in 0 : vector<1x2x128xf32>, vector<1x2x128xf32>, vector<1x2x128xf32>, vector<1x2x128xf32>, vector<1x2x128xf32>, vector<1x2x128xf32>, vector<1x2x128xf32>, vector<1x2x128xf32> -> vector<8x2x128xf32>
    %685 = vector.shape_cast %675 : vector<2x128xf32> to vector<1x2x128xf32>
    %686 = vector.shape_cast %591 : vector<2x128xf32> to vector<1x2x128xf32>
    %687 = vector.shape_cast %507 : vector<2x128xf32> to vector<1x2x128xf32>
    %688 = vector.shape_cast %423 : vector<2x128xf32> to vector<1x2x128xf32>
    %689 = vector.shape_cast %339 : vector<2x128xf32> to vector<1x2x128xf32>
    %690 = vector.shape_cast %255 : vector<2x128xf32> to vector<1x2x128xf32>
    %691 = vector.shape_cast %171 : vector<2x128xf32> to vector<1x2x128xf32>
    %692 = vector.shape_cast %87 : vector<2x128xf32> to vector<1x2x128xf32>
    %693 = tpu.concatenate %685, %686, %687, %688, %689, %690, %691, %692 in 0 : vector<1x2x128xf32>, vector<1x2x128xf32>, vector<1x2x128xf32>, vector<1x2x128xf32>, vector<1x2x128xf32>, vector<1x2x128xf32>, vector<1x2x128xf32>, vector<1x2x128xf32> -> vector<8x2x128xf32>
    %c0_236 = arith.constant 0 : index
    %c0_237 = arith.constant 0 : index
    %694 = vector.load %arg4[%c0_236, %c0_237] : memref<8x128xf32, #tpu.memory_space<vmem>>, vector<1x128xf32>
    %695 = vector.shape_cast %694 : vector<1x128xf32> to vector<1x1x128xf32>
    %696 = vector.broadcast %695 : vector<1x1x128xf32> to vector<8x2x128xf32>
    %697 = arith.mulf %684, %696 : vector<8x2x128xf32>
    %cst_238 = arith.constant dense<0.000000e+00> : vector<8x2xf32>
    %698 = vector.multi_reduction <add>, %697, %cst_238 [2] : vector<8x2x128xf32> to vector<8x2xf32>
    %c1_239 = arith.constant 1 : index
    %c0_240 = arith.constant 0 : index
    %699 = vector.load %arg4[%c1_239, %c0_240] : memref<8x128xf32, #tpu.memory_space<vmem>>, vector<1x128xf32>
    %700 = vector.shape_cast %699 : vector<1x128xf32> to vector<1x1x128xf32>
    %701 = vector.broadcast %700 : vector<1x1x128xf32> to vector<8x2x128xf32>
    %702 = arith.mulf %693, %701 : vector<8x2x128xf32>
    %cst_241 = arith.constant dense<0.000000e+00> : vector<8x2xf32>
    %703 = vector.multi_reduction <add>, %702, %cst_241 [2] : vector<8x2x128xf32> to vector<8x2xf32>
    %704 = arith.addf %698, %703 : vector<8x2xf32>
    %c0_242 = arith.constant 0 : index
    %705 = memref.load %arg6[%c0_242] : memref<4xf32, #tpu.memory_space<smem>>
    %706 = vector.broadcast %705 : f32 to vector<8x2xf32>
    %707 = arith.addf %704, %706 : vector<8x2xf32>
    %c2_243 = arith.constant 2 : index
    %c0_244 = arith.constant 0 : index
    %708 = vector.load %arg4[%c2_243, %c0_244] : memref<8x128xf32, #tpu.memory_space<vmem>>, vector<1x128xf32>
    %709 = vector.shape_cast %708 : vector<1x128xf32> to vector<1x1x128xf32>
    %710 = vector.broadcast %709 : vector<1x1x128xf32> to vector<8x2x128xf32>
    %711 = arith.mulf %684, %710 : vector<8x2x128xf32>
    %cst_245 = arith.constant dense<0.000000e+00> : vector<8x2xf32>
    %712 = vector.multi_reduction <add>, %711, %cst_245 [2] : vector<8x2x128xf32> to vector<8x2xf32>
    %c3_246 = arith.constant 3 : index
    %c0_247 = arith.constant 0 : index
    %713 = vector.load %arg4[%c3_246, %c0_247] : memref<8x128xf32, #tpu.memory_space<vmem>>, vector<1x128xf32>
    %714 = vector.shape_cast %713 : vector<1x128xf32> to vector<1x1x128xf32>
    %715 = vector.broadcast %714 : vector<1x1x128xf32> to vector<8x2x128xf32>
    %716 = arith.mulf %693, %715 : vector<8x2x128xf32>
    %cst_248 = arith.constant dense<0.000000e+00> : vector<8x2xf32>
    %717 = vector.multi_reduction <add>, %716, %cst_248 [2] : vector<8x2x128xf32> to vector<8x2xf32>
    %718 = arith.addf %712, %717 : vector<8x2xf32>
    %c1_249 = arith.constant 1 : index
    %719 = memref.load %arg6[%c1_249] : memref<4xf32, #tpu.memory_space<smem>>
    %720 = vector.broadcast %719 : f32 to vector<8x2xf32>
    %721 = arith.addf %718, %720 : vector<8x2xf32>
    %722 = vector.extract_strided_slice %684 {offsets = [0, 0, 0], sizes = [8, 2, 32], strides = [1, 1, 1]} : vector<8x2x128xf32> to vector<8x2x32xf32>
    %723 = vector.extract_strided_slice %693 {offsets = [0, 0, 0], sizes = [8, 2, 32], strides = [1, 1, 1]} : vector<8x2x128xf32> to vector<8x2x32xf32>
    %724 = tpu.concatenate %722, %723 in 2 : vector<8x2x32xf32>, vector<8x2x32xf32> -> vector<8x2x64xf32>
    %cst_250 = arith.constant 0.000000e+00 : f32
    %725 = vector.broadcast %cst_250 : f32 to vector<3x2x64xf32>
    %726 = tpu.concatenate %725, %724, %725 in 0 : vector<3x2x64xf32>, vector<8x2x64xf32>, vector<3x2x64xf32> -> vector<14x2x64xf32>
    %727 = vector.extract_strided_slice %726 {offsets = [0, 0, 0], sizes = [8, 2, 64], strides = [1, 1, 1]} : vector<14x2x64xf32> to vector<8x2x64xf32>
    %728 = vector.extract_strided_slice %726 {offsets = [1, 0, 0], sizes = [8, 2, 64], strides = [1, 1, 1]} : vector<14x2x64xf32> to vector<8x2x64xf32>
    %729 = vector.extract_strided_slice %726 {offsets = [2, 0, 0], sizes = [8, 2, 64], strides = [1, 1, 1]} : vector<14x2x64xf32> to vector<8x2x64xf32>
    %730 = vector.extract_strided_slice %726 {offsets = [3, 0, 0], sizes = [8, 2, 64], strides = [1, 1, 1]} : vector<14x2x64xf32> to vector<8x2x64xf32>
    %731 = vector.extract_strided_slice %726 {offsets = [4, 0, 0], sizes = [8, 2, 64], strides = [1, 1, 1]} : vector<14x2x64xf32> to vector<8x2x64xf32>
    %732 = vector.extract_strided_slice %726 {offsets = [5, 0, 0], sizes = [8, 2, 64], strides = [1, 1, 1]} : vector<14x2x64xf32> to vector<8x2x64xf32>
    %733 = vector.extract_strided_slice %726 {offsets = [6, 0, 0], sizes = [8, 2, 64], strides = [1, 1, 1]} : vector<14x2x64xf32> to vector<8x2x64xf32>
    %cst_251 = arith.constant 0.000000e+00 : f32
    %734 = vector.broadcast %cst_251 : f32 to vector<8x2x64xf32>
    %735 = tpu.concatenate %727, %728, %729, %730, %731, %732, %733, %734 in 2 : vector<8x2x64xf32>, vector<8x2x64xf32>, vector<8x2x64xf32>, vector<8x2x64xf32>, vector<8x2x64xf32>, vector<8x2x64xf32>, vector<8x2x64xf32>, vector<8x2x64xf32> -> vector<8x2x512xf32>
    %736 = vector.shape_cast %735 : vector<8x2x512xf32> to vector<16x512xf32>
    %737 = arith.truncf %736 : vector<16x512xf32> to vector<16x512xbf16>
    %c0_252 = arith.constant 0 : index
    %c0_253 = arith.constant 0 : index
    %738 = vector.load %arg5[%c0_252, %c0_253] : memref<512x32xbf16, #tpu.memory_space<vmem>>, vector<512x32xbf16>
    %cst_254 = arith.constant dense<0.000000e+00> : vector<16x32xf32>
    %739 = tpu.matmul %737, %738, %cst_254 {dimension_numbers = #tpu.dot_dimension_numbers<[1], [0], [0], [1], [0, 0, 1, 1], [], []>} : vector<16x512xbf16>, vector<512x32xbf16>, vector<16x32xf32> -> vector<16x32xf32>
    %c4_255 = arith.constant 4 : index
    %c0_256 = arith.constant 0 : index
    %740 = vector.load %arg4[%c4_255, %c0_256] : memref<8x128xf32, #tpu.memory_space<vmem>>, vector<1x32xf32>
    %741 = vector.broadcast %740 : vector<1x32xf32> to vector<16x32xf32>
    %742 = arith.addf %739, %741 : vector<16x32xf32>
    %cst_257 = arith.constant 0.000000e+00 : f32
    %743 = vector.broadcast %cst_257 : f32 to vector<16x32xf32>
    %744 = arith.maximumf %742, %743 : vector<16x32xf32>
    %745 = vector.shape_cast %744 : vector<16x32xf32> to vector<8x2x32xf32>
    %cst_258 = arith.constant 0.000000e+00 : f32
    %746 = vector.broadcast %cst_258 : f32 to vector<1x2x32xf32>
    %747 = tpu.concatenate %746, %745, %746 in 0 : vector<1x2x32xf32>, vector<8x2x32xf32>, vector<1x2x32xf32> -> vector<10x2x32xf32>
    %c2_259 = arith.constant 2 : index
    %748 = memref.load %arg6[%c2_259] : memref<4xf32, #tpu.memory_space<smem>>
    %749 = vector.extract_strided_slice %747 {offsets = [0, 0, 0], sizes = [8, 2, 32], strides = [1, 1, 1]} : vector<10x2x32xf32> to vector<8x2x32xf32>
    %c5_260 = arith.constant 5 : index
    %c0_261 = arith.constant 0 : index
    %750 = vector.load %arg4[%c5_260, %c0_261] : memref<8x128xf32, #tpu.memory_space<vmem>>, vector<1x32xf32>
    %751 = vector.shape_cast %750 : vector<1x32xf32> to vector<1x1x32xf32>
    %752 = vector.broadcast %751 : vector<1x1x32xf32> to vector<8x2x32xf32>
    %753 = arith.mulf %749, %752 : vector<8x2x32xf32>
    %cst_262 = arith.constant dense<0.000000e+00> : vector<8x2xf32>
    %754 = vector.multi_reduction <add>, %753, %cst_262 [2] : vector<8x2x32xf32> to vector<8x2xf32>
    %cst_263 = arith.constant 0.000000e+00 : f32
    %755 = vector.broadcast %cst_263 : f32 to vector<8x2xf32>
    %756 = arith.addf %755, %754 : vector<8x2xf32>
    %757 = vector.extract_strided_slice %747 {offsets = [1, 0, 0], sizes = [8, 2, 32], strides = [1, 1, 1]} : vector<10x2x32xf32> to vector<8x2x32xf32>
    %c6_264 = arith.constant 6 : index
    %c0_265 = arith.constant 0 : index
    %758 = vector.load %arg4[%c6_264, %c0_265] : memref<8x128xf32, #tpu.memory_space<vmem>>, vector<1x32xf32>
    %759 = vector.shape_cast %758 : vector<1x32xf32> to vector<1x1x32xf32>
    %760 = vector.broadcast %759 : vector<1x1x32xf32> to vector<8x2x32xf32>
    %761 = arith.mulf %757, %760 : vector<8x2x32xf32>
    %cst_266 = arith.constant dense<0.000000e+00> : vector<8x2xf32>
    %762 = vector.multi_reduction <add>, %761, %cst_266 [2] : vector<8x2x32xf32> to vector<8x2xf32>
    %763 = arith.addf %756, %762 : vector<8x2xf32>
    %764 = vector.extract_strided_slice %747 {offsets = [2, 0, 0], sizes = [8, 2, 32], strides = [1, 1, 1]} : vector<10x2x32xf32> to vector<8x2x32xf32>
    %c7_267 = arith.constant 7 : index
    %c0_268 = arith.constant 0 : index
    %765 = vector.load %arg4[%c7_267, %c0_268] : memref<8x128xf32, #tpu.memory_space<vmem>>, vector<1x32xf32>
    %766 = vector.shape_cast %765 : vector<1x32xf32> to vector<1x1x32xf32>
    %767 = vector.broadcast %766 : vector<1x1x32xf32> to vector<8x2x32xf32>
    %768 = arith.mulf %764, %767 : vector<8x2x32xf32>
    %cst_269 = arith.constant dense<0.000000e+00> : vector<8x2xf32>
    %769 = vector.multi_reduction <add>, %768, %cst_269 [2] : vector<8x2x32xf32> to vector<8x2xf32>
    %770 = arith.addf %763, %769 : vector<8x2xf32>
    %771 = vector.broadcast %748 : f32 to vector<8x2xf32>
    %772 = arith.addf %771, %770 : vector<8x2xf32>
    %cst_270 = arith.constant 4.000000e+00 : f32
    %773 = vector.broadcast %cst_270 : f32 to vector<8x2xf32>
    %774 = arith.mulf %772, %773 : vector<8x2xf32>
    %775 = arith.negf %774 : vector<8x2xf32>
    %776 = math.exp %775 : vector<8x2xf32>
    %cst_271 = arith.constant 1.000000e+00 : f32
    %777 = vector.broadcast %cst_271 : f32 to vector<8x2xf32>
    %778 = arith.addf %777, %776 : vector<8x2xf32>
    %779 = arith.divf %777, %778 : vector<8x2xf32>
    %780 = math.roundeven %779 : vector<8x2xf32>
    %781 = arith.mulf %779, %780 : vector<8x2xf32>
    %782 = arith.mulf %781, %707 : vector<8x2xf32>
    %cst_272 = arith.constant 1.000000e+00 : f32
    %783 = vector.broadcast %cst_272 : f32 to vector<8x2xf32>
    %784 = arith.subf %783, %780 : vector<8x2xf32>
    %785 = arith.mulf %784, %721 : vector<8x2xf32>
    %786 = arith.addf %782, %785 : vector<8x2xf32>
    %787 = vector.shape_cast %707 : vector<8x2xf32> to vector<16xf32>
    %788 = vector.shape_cast %772 : vector<8x2xf32> to vector<16xf32>
    %789 = vector.shape_cast %721 : vector<8x2xf32> to vector<16xf32>
    %790 = vector.shape_cast %786 : vector<8x2xf32> to vector<16xf32>
    %791 = vector.shape_cast %787 : vector<16xf32> to vector<1x16xf32>
    %792 = vector.shape_cast %788 : vector<16xf32> to vector<1x16xf32>
    %793 = vector.shape_cast %789 : vector<16xf32> to vector<1x16xf32>
    %794 = vector.shape_cast %790 : vector<16xf32> to vector<1x16xf32>
    %795 = tpu.concatenate %791, %792, %793, %794 in 0 : vector<1x16xf32>, vector<1x16xf32>, vector<1x16xf32>, vector<1x16xf32> -> vector<4x16xf32>
    %c0_273 = arith.constant 0 : index
    %c0_274 = arith.constant 0 : index
    %796 = vector.load %arg7[%c0_273, %c0_274] : memref<4x16xf32, #tpu.memory_space<vmem>>, vector<4x16xf32>
    tpu.vector_store %arg7[%c0_273, %c0_274], %795 {strides = array<i32>} : memref<4x16xf32, #tpu.memory_space<vmem>>, vector<4x16xf32>,
    return
  }
}

</mosaic_0001>

<llo_original>
// kernel: decoder_lstm_forward.1
$region0: #{decoder_lstm_forward.1}
  #allocation0 [shape = 'u32[]', space=smem, size = 0x4, offset = 0x4, fixed_abs, tag = 'smem constant byte address 0x4 - core index']
  #allocation1 [shape = 'u32[144,128]{1,0:T(1,128)}', space=vmem, size = 0x12000, scoped, tag = 'internal scratch']
  %s0 = inlined_call_operand.vmem [shape: f32[8,2,2], index: 0, kind: input, shape index: {}]
  %s1 = inlined_call_operand.vmem [shape: f32[2,512], index: 1, kind: input, shape index: {}]
  %s2 = inlined_call_operand.vmem [shape: f32[6,512], index: 2, kind: input, shape index: {}]
  %s3 = inlined_call_operand.hbm [shape: bf16[2,128,512], index: 3, kind: input, shape index: {}]
  %s4 = inlined_call_operand.vmem [shape: f32[8,128], index: 4, kind: input, shape index: {}]
  %s5 = inlined_call_operand.vmem [shape: bf16[512,32], index: 5, kind: input, shape index: {}]
  %s6 = inlined_call_operand.vmem [shape: f32[4], index: 6, kind: input, shape index: {}]
  %s7 = inlined_call_operand.vmem [shape: f32[4,16], index: 7, kind: output, shape index: {}]
  %s8 = sld [smem:[#allocation0]]
  $region46: #{decoder_lstm_forward.1} parent=0
    _
  %s10 = ssub.s32 1, %s8
  %s11 = scalar_select 0, %s10, %s8
  $region1: #{decoder_lstm_forward.1} parent=0
    #allocation2 [shape = 'u8[262144]{0}', space=vmem, size = 0x40000, scoped, tag = 'input window, operand 3, single buffered']
    #allocation3 [shape = 's32[1]{0}', space=sflag, size = 0x4, scoped, tag = 'scoped memory for decoder_lstm_forward.1']
    #allocation4 [shape = 's32[1]{0}', space=sflag, size = 0x4, scoped, tag = 'scoped memory for decoder_lstm_forward.1']
    #allocation5 [shape = 'u8[512]{0}', space=smem, size = 0x200, scoped, tag = 'input window, operand 6, single buffered']
    %12 = vsyncpa [#allocation3], 0
    %13 = vsyncpa [#allocation4], 0
    // Predicated region
    $region2: #{decoder_lstm_forward.1} parent=1 // pred_check
      _
    $region3: #{decoder_lstm_forward.1} parent=1 // pred_check_branch
      %15 = sbr.rel (0) target = $region5
    $region4: #{decoder_lstm_forward.1} parent=1 // pred_region
      _
    $region5: #{decoder_lstm_forward.1} parent=1 // pred_fallthru
      _
    // Predicated region
    $region6: #{decoder_lstm_forward.1} parent=1 // pred_check
      _
    $region7: #{decoder_lstm_forward.1} parent=1 // pred_check_branch
      %17 = sbr.rel (0) target = $region9
    $region8: #{decoder_lstm_forward.1} parent=1 // pred_region
      _
    $region9: #{decoder_lstm_forward.1} parent=1 // pred_fallthru
      _
    // Predicated region
    $region10: #{decoder_lstm_forward.1} parent=1 // pred_check
      _
    $region11: #{decoder_lstm_forward.1} parent=1 // pred_check_branch
      %19 = sbr.rel (0) target = $region13
    $region12: #{decoder_lstm_forward.1} parent=1 // pred_region
      _
    $region13: #{decoder_lstm_forward.1} parent=1 // pred_fallthru
      _
    // Predicated region
    $region14: #{decoder_lstm_forward.1} parent=1 // pred_check
      _
    $region15: #{decoder_lstm_forward.1} parent=1 // pred_check_branch
      %21 = sbr.rel (0) target = $region17
    $region16: #{decoder_lstm_forward.1} parent=1 // pred_region
      %s23 = ssub.s32 8192, 8192
      %24 = vsyncadd [#allocation3], %s23
      %s25 = sshll.u32 [#allocation2], 4
      %s26 = int_to_ptr.vmem [resolvable:$true] %s25
      %31 = dma.hbm_to_vmem [thread:$0]  %s3, 8192, %s26, [#allocation3], 256, 256, 16
    $region17: #{decoder_lstm_forward.1} parent=1 // pred_fallthru
      _
    // Predicated region
    $region18: #{decoder_lstm_forward.1} parent=1 // pred_check
      _
    $region19: #{decoder_lstm_forward.1} parent=1 // pred_check_branch
      %33 = sbr.rel (0) target = $region21
    $region20: #{decoder_lstm_forward.1} parent=1 // pred_region
      _
    $region21: #{decoder_lstm_forward.1} parent=1 // pred_fallthru
      _
    // Predicated region
    $region22: #{decoder_lstm_forward.1} parent=1 // pred_check
      _
    $region23: #{decoder_lstm_forward.1} parent=1 // pred_check_branch
      %35 = sbr.rel (0) target = $region25
    $region24: #{decoder_lstm_forward.1} parent=1 // pred_region
      _
    $region25: #{decoder_lstm_forward.1} parent=1 // pred_fallthru
      _
    // Predicated region
    $region26: #{decoder_lstm_forward.1} parent=1 // pred_check
      _
    $region27: #{decoder_lstm_forward.1} parent=1 // pred_check_branch
      %37 = sbr.rel (0) target = $region29
    $region28: #{decoder_lstm_forward.1} parent=1 // pred_region
      %s39 = ssub.s32 16, 16
      %40 = vsyncadd [#allocation4], %s39
      %s42 = sshll.u32 %s6, 4
      %s43 = int_to_ptr.vmem [resolvable:$true] %s42
      %45 = dma.vmem_to_smem %s43, 16, [#allocation5], [#allocation4]
    $region29: #{decoder_lstm_forward.1} parent=1 // pred_fallthru
      _
    // Predicated region
    $region30: #{decoder_lstm_forward.1} parent=1 // pred_check
      _
    $region31: #{decoder_lstm_forward.1} parent=1 // pred_check_branch
      %47 = sbr.rel (0) target = $region33
    $region32: #{decoder_lstm_forward.1} parent=1 // pred_region
      %48 = dma.done [#allocation3], 8192
    $region33: #{decoder_lstm_forward.1} parent=1 // pred_fallthru
      _
    // Predicated region
    $region34: #{decoder_lstm_forward.1} parent=1 // pred_check
      _
    $region35: #{decoder_lstm_forward.1} parent=1 // pred_check_branch
      %50 = sbr.rel (0) target = $region37
    $region36: #{decoder_lstm_forward.1} parent=1 // pred_region
      %51 = dma.done [#allocation4], 16
    $region37: #{decoder_lstm_forward.1} parent=1 // pred_fallthru
      _
    %52 = sfence
    %v54 = vld [vmem:[%s1] sm:$0x3]
    %v55 = vld [vmem:[%s1 + $0x2] sm:$0x3]
    %v56 = vld [vmem:[%s1 + $0x4] sm:$0x3]
    %v57 = vld [vmem:[%s1 + $0x6] sm:$0x3]
    %v58 = vld [vmem:[%s0] sm:$0x3]
    %s59 = scalar_lea.vmem %s0, 14
    %v60 = vld [vmem:[%s59] sm:$0x3]
    %v61 = vld [vmem:[%s2] ss:$8 sm:$0xf]
    %63 = vset.pattern.permute.xlu0 0
    %64 = vperm.xlu0 %63, %v58
    %v65 = vpop.permute.xlu0 %64
    %v68 = vlaneseq
    %v69 = vshrl.u32 %v68, 7
    %v70 = vsub.s32 0, %v69
    %v71 = vrot.slane %v61, %v70
    %v72 = vlaneseq
    %v73 = vshrl.u32 %v72, 7
    %v74 = vsub.s32 1, %v73
    %v75 = vrot.slane %v61, %v74
    %v76 = vlaneseq
    %v77 = vshrl.u32 %v76, 7
    %v78 = vsub.s32 2, %v77
    %v79 = vrot.slane %v61, %v78
    %v80 = vlaneseq
    %v81 = vshrl.u32 %v80, 7
    %v82 = vsub.s32 3, %v81
    %v83 = vrot.slane %v61, %v82
    %v88 = vmul.f32 %v65, %v71
    %v89 = vmul.f32 %v65, %v75
    %v90 = vmul.f32 %v65, %v79
    %v91 = vmul.f32 %v65, %v83
    %s92 = scalar_lea.vmem %s2, 1
    %v93 = vld [vmem:[%s92] ss:$8 sm:$0xf]
    %94 = vset.pattern.permute.xlu0 1
    %95 = vperm.xlu0 %94, %v58
    %v96 = vpop.permute.xlu0 %95
    %v99 = vlaneseq
    %v100 = vshrl.u32 %v99, 7
    %v101 = vsub.s32 0, %v100
    %v102 = vrot.slane %v93, %v101
    %v103 = vlaneseq
    %v104 = vshrl.u32 %v103, 7
    %v105 = vsub.s32 1, %v104
    %v106 = vrot.slane %v93, %v105
    %v107 = vlaneseq
    %v108 = vshrl.u32 %v107, 7
    %v109 = vsub.s32 2, %v108
    %v110 = vrot.slane %v93, %v109
    %v111 = vlaneseq
    %v112 = vshrl.u32 %v111, 7
    %v113 = vsub.s32 3, %v112
    %v114 = vrot.slane %v93, %v113
    %v119 = vmul.f32 %v96, %v102
    %v120 = vmul.f32 %v96, %v106
    %v121 = vmul.f32 %v96, %v110
    %v122 = vmul.f32 %v96, %v114
    %v123 = vadd.f32 %v88, %v119
    %v124 = vadd.f32 %v89, %v120
    %v125 = vadd.f32 %v90, %v121
    %v126 = vadd.f32 %v91, %v122
    %s127 = scalar_lea.vmem %s2, 4
    %v128 = vld [vmem:[%s127] ss:$8 sm:$0xf]
    %v130 = vlaneseq
    %v131 = vshrl.u32 %v130, 7
    %v132 = vsub.s32 0, %v131
    %v133 = vrot.slane %v128, %v132
    %v134 = vlaneseq
    %v135 = vshrl.u32 %v134, 7
    %v136 = vsub.s32 1, %v135
    %v137 = vrot.slane %v128, %v136
    %v138 = vlaneseq
    %v139 = vshrl.u32 %v138, 7
    %v140 = vsub.s32 2, %v139
    %v141 = vrot.slane %v128, %v140
    %v142 = vlaneseq
    %v143 = vshrl.u32 %v142, 7
    %v144 = vsub.s32 3, %v143
    %v145 = vrot.slane %v128, %v144
    %v150 = vadd.f32 %v123, %v133
    %v151 = vadd.f32 %v124, %v137
    %v152 = vadd.f32 %v125, %v141
    %v153 = vadd.f32 %v126, %v145
    %s154 = scalar_lea.vmem %s2, 2
    %v155 = vld [vmem:[%s154] ss:$8 sm:$0xf]
    %157 = vset.pattern.permute.xlu0 0
    %158 = vperm.xlu0 %157, %v60
    %v159 = vpop.permute.xlu0 %158
    %v162 = vlaneseq
    %v163 = vshrl.u32 %v162, 7
    %v164 = vsub.s32 0, %v163
    %v165 = vrot.slane %v155, %v164
    %v166 = vlaneseq
    %v167 = vshrl.u32 %v166, 7
    %v168 = vsub.s32 1, %v167
    %v169 = vrot.slane %v155, %v168
    %v170 = vlaneseq
    %v171 = vshrl.u32 %v170, 7
    %v172 = vsub.s32 2, %v171
    %v173 = vrot.slane %v155, %v172
    %v174 = vlaneseq
    %v175 = vshrl.u32 %v174, 7
    %v176 = vsub.s32 3, %v175
    %v177 = vrot.slane %v155, %v176
    %v182 = vmul.f32 %v159, %v165
    %v183 = vmul.f32 %v159, %v169
    %v184 = vmul.f32 %v159, %v173
    %v185 = vmul.f32 %v159, %v177
    %s186 = scalar_lea.vmem %s2, 3
    %v187 = vld [vmem:[%s186] ss:$8 sm:$0xf]
    %188 = vset.pattern.permute.xlu0 1
    %189 = vperm.xlu0 %188, %v60
    %v190 = vpop.permute.xlu0 %189
    %v193 = vlaneseq
    %v194 = vshrl.u32 %v193, 7
    %v195 = vsub.s32 0, %v194
    %v196 = vrot.slane %v187, %v195
    %v197 = vlaneseq
    %v198 = vshrl.u32 %v197, 7
    %v199 = vsub.s32 1, %v198
    %v200 = vrot.slane %v187, %v199
    %v201 = vlaneseq
    %v202 = vshrl.u32 %v201, 7
    %v203 = vsub.s32 2, %v202
    %v204 = vrot.slane %v187, %v203
    %v205 = vlaneseq
    %v206 = vshrl.u32 %v205, 7
    %v207 = vsub.s32 3, %v206
    %v208 = vrot.slane %v187, %v207
    %v213 = vmul.f32 %v190, %v196
    %v214 = vmul.f32 %v190, %v200
    %v215 = vmul.f32 %v190, %v204
    %v216 = vmul.f32 %v190, %v208
    %v217 = vadd.f32 %v182, %v213
    %v218 = vadd.f32 %v183, %v214
    %v219 = vadd.f32 %v184, %v215
    %v220 = vadd.f32 %v185, %v216
    %s221 = scalar_lea.vmem %s2, 5
    %v222 = vld [vmem:[%s221] ss:$8 sm:$0xf]
    %v224 = vlaneseq
    %v225 = vshrl.u32 %v224, 7
    %v226 = vsub.s32 0, %v225
    %v227 = vrot.slane %v222, %v226
    %v228 = vlaneseq
    %v229 = vshrl.u32 %v228, 7
    %v230 = vsub.s32 1, %v229
    %v231 = vrot.slane %v222, %v230
    %v232 = vlaneseq
    %v233 = vshrl.u32 %v232, 7
    %v234 = vsub.s32 2, %v233
    %v235 = vrot.slane %v222, %v234
    %v236 = vlaneseq
    %v237 = vshrl.u32 %v236, 7
    %v238 = vsub.s32 3, %v237
    %v239 = vrot.slane %v222, %v238
    %v244 = vadd.f32 %v217, %v227
    %v245 = vadd.f32 %v218, %v231
    %v246 = vadd.f32 %v219, %v235
    %v247 = vadd.f32 %v220, %v239
    %v248 = vpack.c.bf16 %v54, %v54
    %v249 = vld [vmem:[#allocation2] sm:$0xff]
    %v250 = vld [vmem:[#allocation2 + $0x8] sm:$0xff]
    %v251 = vld [vmem:[#allocation2 + $0x10] sm:$0xff]
    %v252 = vld [vmem:[#allocation2 + $0x18] sm:$0xff]
    %v253 = vld [vmem:[#allocation2 + $0x20] sm:$0xff]
    %v254 = vld [vmem:[#allocation2 + $0x28] sm:$0xff]
    %v255 = vld [vmem:[#allocation2 + $0x30] sm:$0xff]
    %v256 = vld [vmem:[#allocation2 + $0x38] sm:$0xff]
    %v257 = vld [vmem:[#allocation2 + $0x40] sm:$0xff]
    %v258 = vld [vmem:[#allocation2 + $0x48] sm:$0xff]
    %v259 = vld [vmem:[#allocation2 + $0x50] sm:$0xff]
    %v260 = vld [vmem:[#allocation2 + $0x58] sm:$0xff]
    %v261 = vld [vmem:[#allocation2 + $0x60] sm:$0xff]
    %v262 = vld [vmem:[#allocation2 + $0x68] sm:$0xff]
    %v263 = vld [vmem:[#allocation2 + $0x70] sm:$0xff]
    %v264 = vld [vmem:[#allocation2 + $0x78] sm:$0xff]
    %v265 = vld [vmem:[#allocation2 + $0x80] sm:$0xff]
    %v266 = vld [vmem:[#allocation2 + $0x88] sm:$0xff]
    %v267 = vld [vmem:[#allocation2 + $0x90] sm:$0xff]
    %v268 = vld [vmem:[#allocation2 + $0x98] sm:$0xff]
    %v269 = vld [vmem:[#allocation2 + $0xa0] sm:$0xff]
    %v270 = vld [vmem:[#allocation2 + $0xa8] sm:$0xff]
    %v271 = vld [vmem:[#allocation2 + $0xb0] sm:$0xff]
    %v272 = vld [vmem:[#allocation2 + $0xb8] sm:$0xff]
    %v273 = vld [vmem:[#allocation2 + $0xc0] sm:$0xff]
    %v274 = vld [vmem:[#allocation2 + $0xc8] sm:$0xff]
    %v275 = vld [vmem:[#allocation2 + $0xd0] sm:$0xff]
    %v276 = vld [vmem:[#allocation2 + $0xd8] sm:$0xff]
    %v277 = vld [vmem:[#allocation2 + $0xe0] sm:$0xff]
    %v278 = vld [vmem:[#allocation2 + $0xe8] sm:$0xff]
    %v279 = vld [vmem:[#allocation2 + $0xf0] sm:$0xff]
    %v280 = vld [vmem:[#allocation2 + $0xf8] sm:$0xff]
    %v313 = vunpack.c.l.b16 %v249
    %v314 = vunpack.c.h.b16 %v249
    %v315 = vunpack.c.l.b16 %v250
    %v316 = vunpack.c.h.b16 %v250
    %v317 = vunpack.c.l.b16 %v251
    %v318 = vunpack.c.h.b16 %v251
    %v319 = vunpack.c.l.b16 %v252
    %v320 = vunpack.c.h.b16 %v252
    %v321 = vunpack.c.l.b16 %v253
    %v322 = vunpack.c.h.b16 %v253
    %v323 = vunpack.c.l.b16 %v254
    %v324 = vunpack.c.h.b16 %v254
    %v325 = vunpack.c.l.b16 %v255
    %v326 = vunpack.c.h.b16 %v255
    %v327 = vunpack.c.l.b16 %v256
    %v328 = vunpack.c.h.b16 %v256
    %v329 = vunpack.c.l.b16 %v257
    %v330 = vunpack.c.h.b16 %v257
    %v331 = vunpack.c.l.b16 %v258
    %v332 = vunpack.c.h.b16 %v258
    %v333 = vunpack.c.l.b16 %v259
    %v334 = vunpack.c.h.b16 %v259
    %v335 = vunpack.c.l.b16 %v260
    %v336 = vunpack.c.h.b16 %v260
    %v337 = vunpack.c.l.b16 %v261
    %v338 = vunpack.c.h.b16 %v261
    %v339 = vunpack.c.l.b16 %v262
    %v340 = vunpack.c.h.b16 %v262
    %v341 = vunpack.c.l.b16 %v263
    %v342 = vunpack.c.h.b16 %v263
    %v343 = vunpack.c.l.b16 %v264
    %v344 = vunpack.c.h.b16 %v264
    %v345 = vunpack.c.l.b16 %v265
    %v346 = vunpack.c.h.b16 %v265
    %v347 = vunpack.c.l.b16 %v266
    %v348 = vunpack.c.h.b16 %v266
    %v349 = vunpack.c.l.b16 %v267
    %v350 = vunpack.c.h.b16 %v267
    %v351 = vunpack.c.l.b16 %v268
    %v352 = vunpack.c.h.b16 %v268
    %v353 = vunpack.c.l.b16 %v269
    %v354 = vunpack.c.h.b16 %v269
    %v355 = vunpack.c.l.b16 %v270
    %v356 = vunpack.c.h.b16 %v270
    %v357 = vunpack.c.l.b16 %v271
    %v358 = vunpack.c.h.b16 %v271
    %v359 = vunpack.c.l.b16 %v272
    %v360 = vunpack.c.h.b16 %v272
    %v361 = vunpack.c.l.b16 %v273
    %v362 = vunpack.c.h.b16 %v273
    %v363 = vunpack.c.l.b16 %v274
    %v364 = vunpack.c.h.b16 %v274
    %v365 = vunpack.c.l.b16 %v275
    %v366 = vunpack.c.h.b16 %v275
    %v367 = vunpack.c.l.b16 %v276
    %v368 = vunpack.c.h.b16 %v276
    %v369 = vunpack.c.l.b16 %v277
    %v370 = vunpack.c.h.b16 %v277
    %v371 = vunpack.c.l.b16 %v278
    %v372 = vunpack.c.h.b16 %v278
    %v373 = vunpack.c.l.b16 %v279
    %v374 = vunpack.c.h.b16 %v279
    %v375 = vunpack.c.l.b16 %v280
    %v376 = vunpack.c.h.b16 %v280
    %v377 = vpack.c.b16 %v317, %v313
    %v378 = vpack.c.b16 %v318, %v314
    %v379 = vpack.c.b16 %v319, %v315
    %v380 = vpack.c.b16 %v320, %v316
    %v381 = vpack.c.b16 %v325, %v321
    %v382 = vpack.c.b16 %v326, %v322
    %v383 = vpack.c.b16 %v327, %v323
    %v384 = vpack.c.b16 %v328, %v324
    %v385 = vpack.c.b16 %v333, %v329
    %v386 = vpack.c.b16 %v334, %v330
    %v387 = vpack.c.b16 %v335, %v331
    %v388 = vpack.c.b16 %v336, %v332
    %v389 = vpack.c.b16 %v341, %v337
    %v390 = vpack.c.b16 %v342, %v338
    %v391 = vpack.c.b16 %v343, %v339
    %v392 = vpack.c.b16 %v344, %v340
    %v393 = vpack.c.b16 %v349, %v345
    %v394 = vpack.c.b16 %v350, %v346
    %v395 = vpack.c.b16 %v351, %v347
    %v396 = vpack.c.b16 %v352, %v348
    %v397 = vpack.c.b16 %v357, %v353
    %v398 = vpack.c.b16 %v358, %v354
    %v399 = vpack.c.b16 %v359, %v355
    %v400 = vpack.c.b16 %v360, %v356
    %v401 = vpack.c.b16 %v365, %v361
    %v402 = vpack.c.b16 %v366, %v362
    %v403 = vpack.c.b16 %v367, %v363
    %v404 = vpack.c.b16 %v368, %v364
    %v405 = vpack.c.b16 %v373, %v369
    %v406 = vpack.c.b16 %v374, %v370
    %v407 = vpack.c.b16 %v375, %v371
    %v408 = vpack.c.b16 %v376, %v372
    %441 = vmatprep.subr.bf16.mxu0 %v378
    %442 = vmatpush1.bf16.msra.mxu0 %v377
    %443 = vmatprep.subr.bf16.mxu0 %v382
    %444 = vmatpush1.bf16.msra.mxu0 %v381
    %445 = vmatprep.subr.bf16.mxu0 %v386
    %446 = vmatpush1.bf16.msra.mxu0 %v385
    %447 = vmatprep.subr.bf16.mxu0 %v390
    %448 = vmatpush1.bf16.msra.mxu0 %v389
    %449 = vmatprep.subr.bf16.mxu0 %v394
    %450 = vmatpush1.bf16.msra.mxu0 %v393
    %451 = vmatprep.subr.bf16.mxu0 %v398
    %452 = vmatpush1.bf16.msra.mxu0 %v397
    %453 = vmatprep.subr.bf16.mxu0 %v402
    %454 = vmatpush1.bf16.msra.mxu0 %v401
    %455 = vmatprep.subr.bf16.mxu0 %v406
    %456 = vmatpush1.bf16.msra.mxu0 %v405
    %457 = vmatprep.subr.bf16.mxu0 0
    %458 = vmatpush1.bf16.msra.mxu0 0
    %459 = vmatprep.subr.bf16.mxu0 0
    %460 = vmatpush1.bf16.msra.mxu0 0
    %461 = vmatprep.subr.bf16.mxu0 0
    %462 = vmatpush1.bf16.msra.mxu0 0
    %463 = vmatprep.subr.bf16.mxu0 0
    %464 = vmatpush1.bf16.msra.mxu0 0
    %465 = vmatprep.subr.bf16.mxu0 0
    %466 = vmatpush1.bf16.msra.mxu0 0
    %467 = vmatprep.subr.bf16.mxu0 0
    %468 = vmatpush1.bf16.msra.mxu0 0
    %469 = vmatprep.subr.bf16.mxu0 0
    %470 = vmatpush1.bf16.msra.mxu0 0
    %471 = vmatprep.subr.bf16.mxu0 0
    %472 = vmatpush1.bf16.msra.mxu0 0
    %473 = vmatprep.mubr.bf16.mxu0 0
    %474 = vmatmul.mubr.bf16.gmra.mrb[0].mxu0 %v248
    %v475 = vpop.f32.mrb[0].mxu0
    %v476 = vadd.f32 0.0, %v475
    %v477 = vpop.f32.mrb[0].mxu0
    %v478 = vadd.f32 0.0, %v477
    %v479 = vpop.f32.mrb[0].mxu0
    %v480 = vpop.f32.mrb[0].mxu0
    %481 = vdwg.mxu0
    %482 = vmatprep.subr.bf16.mxu0 %v380
    %483 = vmatpush1.bf16.msra.mxu0 %v379
    %484 = vmatprep.subr.bf16.mxu0 %v384
    %485 = vmatpush1.bf16.msra.mxu0 %v383
    %486 = vmatprep.subr.bf16.mxu0 %v388
    %487 = vmatpush1.bf16.msra.mxu0 %v387
    %488 = vmatprep.subr.bf16.mxu0 %v392
    %489 = vmatpush1.bf16.msra.mxu0 %v391
    %490 = vmatprep.subr.bf16.mxu0 %v396
    %491 = vmatpush1.bf16.msra.mxu0 %v395
    %492 = vmatprep.subr.bf16.mxu0 %v400
    %493 = vmatpush1.bf16.msra.mxu0 %v399
    %494 = vmatprep.subr.bf16.mxu0 %v404
    %495 = vmatpush1.bf16.msra.mxu0 %v403
    %496 = vmatprep.subr.bf16.mxu0 %v408
    %497 = vmatpush1.bf16.msra.mxu0 %v407
    %498 = vmatprep.subr.bf16.mxu0 0
    %499 = vmatpush1.bf16.msra.mxu0 0
    %500 = vmatprep.subr.bf16.mxu0 0
    %501 = vmatpush1.bf16.msra.mxu0 0
    %502 = vmatprep.subr.bf16.mxu0 0
    %503 = vmatpush1.bf16.msra.mxu0 0
    %504 = vmatprep.subr.bf16.mxu0 0
    %505 = vmatpush1.bf16.msra.mxu0 0
    %506 = vmatprep.subr.bf16.mxu0 0
    %507 = vmatpush1.bf16.msra.mxu0 0
    %508 = vmatprep.subr.bf16.mxu0 0
    %509 = vmatpush1.bf16.msra.mxu0 0
    %510 = vmatprep.subr.bf16.mxu0 0
    %511 = vmatpush1.bf16.msra.mxu0 0
    %512 = vmatprep.subr.bf16.mxu0 0
    %513 = vmatpush1.bf16.msra.mxu0 0
    %514 = vmatprep.mubr.bf16.mxu0 0
    %515 = vmatmul.mubr.bf16.gmra.mrb[0].mxu0 %v248
    %v516 = vpop.f32.mrb[0].mxu0
    %v517 = vadd.f32 0.0, %v516
    %v518 = vpop.f32.mrb[0].mxu0
    %v519 = vadd.f32 0.0, %v518
    %v520 = vpop.f32.mrb[0].mxu0
    %v521 = vpop.f32.mrb[0].mxu0
    %522 = vdwg.mxu0
    %v523 = vadd.f32 %v150, %v476
    %v524 = vadd.f32 %v151, %v478
    %v525 = vadd.f32 %v152, %v517
    %v526 = vadd.f32 %v153, %v519
    %v527 = vpack.c.bf16 %v56, %v56
    %s528 = scalar_lea.vmem [#allocation2], 256
    %v529 = vld [vmem:[%s528] sm:$0xff]
    %v530 = vld [vmem:[%s528 + $0x8] sm:$0xff]
    %v531 = vld [vmem:[%s528 + $0x10] sm:$0xff]
    %v532 = vld [vmem:[%s528 + $0x18] sm:$0xff]
    %v533 = vld [vmem:[%s528 + $0x20] sm:$0xff]
    %v534 = vld [vmem:[%s528 + $0x28] sm:$0xff]
    %v535 = vld [vmem:[%s528 + $0x30] sm:$0xff]
    %v536 = vld [vmem:[%s528 + $0x38] sm:$0xff]
    %v537 = vld [vmem:[%s528 + $0x40] sm:$0xff]
    %v538 = vld [vmem:[%s528 + $0x48] sm:$0xff]
    %v539 = vld [vmem:[%s528 + $0x50] sm:$0xff]
    %v540 = vld [vmem:[%s528 + $0x58] sm:$0xff]
    %v541 = vld [vmem:[%s528 + $0x60] sm:$0xff]
    %v542 = vld [vmem:[%s528 + $0x68] sm:$0xff]
    %v543 = vld [vmem:[%s528 + $0x70] sm:$0xff]
    %v544 = vld [vmem:[%s528 + $0x78] sm:$0xff]
    %v545 = vld [vmem:[%s528 + $0x80] sm:$0xff]
    %v546 = vld [vmem:[%s528 + $0x88] sm:$0xff]
    %v547 = vld [vmem:[%s528 + $0x90] sm:$0xff]
    %v548 = vld [vmem:[%s528 + $0x98] sm:$0xff]
    %v549 = vld [vmem:[%s528 + $0xa0] sm:$0xff]
    %v550 = vld [vmem:[%s528 + $0xa8] sm:$0xff]
    %v551 = vld [vmem:[%s528 + $0xb0] sm:$0xff]
    %v552 = vld [vmem:[%s528 + $0xb8] sm:$0xff]
    %v553 = vld [vmem:[%s528 + $0xc0] sm:$0xff]
    %v554 = vld [vmem:[%s528 + $0xc8] sm:$0xff]
    %v555 = vld [vmem:[%s528 + $0xd0] sm:$0xff]
    %v556 = vld [vmem:[%s528 + $0xd8] sm:$0xff]
    %v557 = vld [vmem:[%s528 + $0xe0] sm:$0xff]
    %v558 = vld [vmem:[%s528 + $0xe8] sm:$0xff]
    %v559 = vld [vmem:[%s528 + $0xf0] sm:$0xff]
    %v560 = vld [vmem:[%s528 + $0xf8] sm:$0xff]
    %v593 = vunpack.c.l.b16 %v529
    %v594 = vunpack.c.h.b16 %v529
    %v595 = vunpack.c.l.b16 %v530
    %v596 = vunpack.c.h.b16 %v530
    %v597 = vunpack.c.l.b16 %v531
    %v598 = vunpack.c.h.b16 %v531
    %v599 = vunpack.c.l.b16 %v532
    %v600 = vunpack.c.h.b16 %v532
    %v601 = vunpack.c.l.b16 %v533
    %v602 = vunpack.c.h.b16 %v533
    %v603 = vunpack.c.l.b16 %v534
    %v604 = vunpack.c.h.b16 %v534
    %v605 = vunpack.c.l.b16 %v535
    %v606 = vunpack.c.h.b16 %v535
    %v607 = vunpack.c.l.b16 %v536
    %v608 = vunpack.c.h.b16 %v536
    %v609 = vunpack.c.l.b16 %v537
    %v610 = vunpack.c.h.b16 %v537
    %v611 = vunpack.c.l.b16 %v538
    %v612 = vunpack.c.h.b16 %v538
    %v613 = vunpack.c.l.b16 %v539
    %v614 = vunpack.c.h.b16 %v539
    %v615 = vunpack.c.l.b16 %v540
    %v616 = vunpack.c.h.b16 %v540
    %v617 = vunpack.c.l.b16 %v541
    %v618 = vunpack.c.h.b16 %v541
    %v619 = vunpack.c.l.b16 %v542
    %v620 = vunpack.c.h.b16 %v542
    %v621 = vunpack.c.l.b16 %v543
    %v622 = vunpack.c.h.b16 %v543
    %v623 = vunpack.c.l.b16 %v544
    %v624 = vunpack.c.h.b16 %v544
    %v625 = vunpack.c.l.b16 %v545
    %v626 = vunpack.c.h.b16 %v545
    %v627 = vunpack.c.l.b16 %v546
    %v628 = vunpack.c.h.b16 %v546
    %v629 = vunpack.c.l.b16 %v547
    %v630 = vunpack.c.h.b16 %v547
    %v631 = vunpack.c.l.b16 %v548
    %v632 = vunpack.c.h.b16 %v548
    %v633 = vunpack.c.l.b16 %v549
    %v634 = vunpack.c.h.b16 %v549
    %v635 = vunpack.c.l.b16 %v550
    %v636 = vunpack.c.h.b16 %v550
    %v637 = vunpack.c.l.b16 %v551
    %v638 = vunpack.c.h.b16 %v551
    %v639 = vunpack.c.l.b16 %v552
    %v640 = vunpack.c.h.b16 %v552
    %v641 = vunpack.c.l.b16 %v553
    %v642 = vunpack.c.h.b16 %v553
    %v643 = vunpack.c.l.b16 %v554
    %v644 = vunpack.c.h.b16 %v554
    %v645 = vunpack.c.l.b16 %v555
    %v646 = vunpack.c.h.b16 %v555
    %v647 = vunpack.c.l.b16 %v556
    %v648 = vunpack.c.h.b16 %v556
    %v649 = vunpack.c.l.b16 %v557
    %v650 = vunpack.c.h.b16 %v557
    %v651 = vunpack.c.l.b16 %v558
    %v652 = vunpack.c.h.b16 %v558
    %v653 = vunpack.c.l.b16 %v559
    %v654 = vunpack.c.h.b16 %v559
    %v655 = vunpack.c.l.b16 %v560
    %v656 = vunpack.c.h.b16 %v560
    %v657 = vpack.c.b16 %v597, %v593
    %v658 = vpack.c.b16 %v598, %v594
    %v659 = vpack.c.b16 %v599, %v595
    %v660 = vpack.c.b16 %v600, %v596
    %v661 = vpack.c.b16 %v605, %v601
    %v662 = vpack.c.b16 %v606, %v602
    %v663 = vpack.c.b16 %v607, %v603
    %v664 = vpack.c.b16 %v608, %v604
    %v665 = vpack.c.b16 %v613, %v609
    %v666 = vpack.c.b16 %v614, %v610
    %v667 = vpack.c.b16 %v615, %v611
    %v668 = vpack.c.b16 %v616, %v612
    %v669 = vpack.c.b16 %v621, %v617
    %v670 = vpack.c.b16 %v622, %v618
    %v671 = vpack.c.b16 %v623, %v619
    %v672 = vpack.c.b16 %v624, %v620
    %v673 = vpack.c.b16 %v629, %v625
    %v674 = vpack.c.b16 %v630, %v626
    %v675 = vpack.c.b16 %v631, %v627
    %v676 = vpack.c.b16 %v632, %v628
    %v677 = vpack.c.b16 %v637, %v633
    %v678 = vpack.c.b16 %v638, %v634
    %v679 = vpack.c.b16 %v639, %v635
    %v680 = vpack.c.b16 %v640, %v636
    %v681 = vpack.c.b16 %v645, %v641
    %v682 = vpack.c.b16 %v646, %v642
    %v683 = vpack.c.b16 %v647, %v643
    %v684 = vpack.c.b16 %v648, %v644
    %v685 = vpack.c.b16 %v653, %v649
    %v686 = vpack.c.b16 %v654, %v650
    %v687 = vpack.c.b16 %v655, %v651
    %v688 = vpack.c.b16 %v656, %v652
    %721 = vmatprep.subr.bf16.mxu0 %v658
    %722 = vmatpush1.bf16.msra.mxu0 %v657
    %723 = vmatprep.subr.bf16.mxu0 %v662
    %724 = vmatpush1.bf16.msra.mxu0 %v661
    %725 = vmatprep.subr.bf16.mxu0 %v666
    %726 = vmatpush1.bf16.msra.mxu0 %v665
    %727 = vmatprep.subr.bf16.mxu0 %v670
    %728 = vmatpush1.bf16.msra.mxu0 %v669
    %729 = vmatprep.subr.bf16.mxu0 %v674
    %730 = vmatpush1.bf16.msra.mxu0 %v673
    %731 = vmatprep.subr.bf16.mxu0 %v678
    %732 = vmatpush1.bf16.msra.mxu0 %v677
    %733 = vmatprep.subr.bf16.mxu0 %v682
    %734 = vmatpush1.bf16.msra.mxu0 %v681
    %735 = vmatprep.subr.bf16.mxu0 %v686
    %736 = vmatpush1.bf16.msra.mxu0 %v685
    %737 = vmatprep.subr.bf16.mxu0 0
    %738 = vmatpush1.bf16.msra.mxu0 0
    %739 = vmatprep.subr.bf16.mxu0 0
    %740 = vmatpush1.bf16.msra.mxu0 0
    %741 = vmatprep.subr.bf16.mxu0 0
    %742 = vmatpush1.bf16.msra.mxu0 0
    %743 = vmatprep.subr.bf16.mxu0 0
    %744 = vmatpush1.bf16.msra.mxu0 0
    %745 = vmatprep.subr.bf16.mxu0 0
    %746 = vmatpush1.bf16.msra.mxu0 0
    %747 = vmatprep.subr.bf16.mxu0 0
    %748 = vmatpush1.bf16.msra.mxu0 0
    %749 = vmatprep.subr.bf16.mxu0 0
    %750 = vmatpush1.bf16.msra.mxu0 0
    %751 = vmatprep.subr.bf16.mxu0 0
    %752 = vmatpush1.bf16.msra.mxu0 0
    %753 = vmatprep.mubr.bf16.mxu0 0
    %754 = vmatmul.mubr.bf16.gmra.mrb[0].mxu0 %v527
    %v755 = vpop.f32.mrb[0].mxu0
    %v756 = vadd.f32 0.0, %v755
    %v757 = vpop.f32.mrb[0].mxu0
    %v758 = vadd.f32 0.0, %v757
    %v759 = vpop.f32.mrb[0].mxu0
    %v760 = vpop.f32.mrb[0].mxu0
    %761 = vdwg.mxu0
    %762 = vmatprep.subr.bf16.mxu0 %v660
    %763 = vmatpush1.bf16.msra.mxu0 %v659
    %764 = vmatprep.subr.bf16.mxu0 %v664
    %765 = vmatpush1.bf16.msra.mxu0 %v663
    %766 = vmatprep.subr.bf16.mxu0 %v668
    %767 = vmatpush1.bf16.msra.mxu0 %v667
    %768 = vmatprep.subr.bf16.mxu0 %v672
    %769 = vmatpush1.bf16.msra.mxu0 %v671
    %770 = vmatprep.subr.bf16.mxu0 %v676
    %771 = vmatpush1.bf16.msra.mxu0 %v675
    %772 = vmatprep.subr.bf16.mxu0 %v680
    %773 = vmatpush1.bf16.msra.mxu0 %v679
    %774 = vmatprep.subr.bf16.mxu0 %v684
    %775 = vmatpush1.bf16.msra.mxu0 %v683
    %776 = vmatprep.subr.bf16.mxu0 %v688
    %777 = vmatpush1.bf16.msra.mxu0 %v687
    %778 = vmatprep.subr.bf16.mxu0 0
    %779 = vmatpush1.bf16.msra.mxu0 0
    %780 = vmatprep.subr.bf16.mxu0 0
    %781 = vmatpush1.bf16.msra.mxu0 0
    %782 = vmatprep.subr.bf16.mxu0 0
    %783 = vmatpush1.bf16.msra.mxu0 0
    %784 = vmatprep.subr.bf16.mxu0 0
    %785 = vmatpush1.bf16.msra.mxu0 0
    %786 = vmatprep.subr.bf16.mxu0 0
    %787 = vmatpush1.bf16.msra.mxu0 0
    %788 = vmatprep.subr.bf16.mxu0 0
    %789 = vmatpush1.bf16.msra.mxu0 0
    %790 = vmatprep.subr.bf16.mxu0 0
    %791 = vmatpush1.bf16.msra.mxu0 0
    %792 = vmatprep.subr.bf16.mxu0 0
    %793 = vmatpush1.bf16.msra.mxu0 0
    %794 = vmatprep.mubr.bf16.mxu0 0
    %795 = vmatmul.mubr.bf16.gmra.mrb[0].mxu0 %v527
    %v796 = vpop.f32.mrb[0].mxu0
    %v797 = vadd.f32 0.0, %v796
    %v798 = vpop.f32.mrb[0].mxu0
    %v799 = vadd.f32 0.0, %v798
    %v800 = vpop.f32.mrb[0].mxu0
    %v801 = vpop.f32.mrb[0].mxu0
    %802 = vdwg.mxu0
    %v803 = vadd.f32 %v244, %v756
    %v804 = vadd.f32 %v245, %v758
    %v805 = vadd.f32 %v246, %v797
    %v806 = vadd.f32 %v247, %v799
    %v807 = vxor.u32 %v523, 2147483648
    %v808 = vxor.u32 %v524, 2147483648
    %v809 = vmul.f32 %v807, 1.442695
    %v810 = vpow.pop %v809
    %v811 = vmul.f32 %v808, 1.442695
    %v812 = vpow.pop %v811
    %v813 = vadd.f32 %v810, 1.0
    %v814 = vadd.f32 %v812, 1.0
    %v815 = vrcp.pop %v813
    %v816 = vmul.f32 1.0, %v815
    %v817 = vrcp.pop %v814
    %v818 = vmul.f32 1.0, %v817
    %v819 = vtanh.pop %v525
    %v820 = vxor.u32 %v526, 2147483648
    %v821 = vmul.f32 %v820, 1.442695
    %v822 = vpow.pop %v821
    %v823 = vadd.f32 %v822, 1.0
    %v824 = vrcp.pop %v823
    %v825 = vmul.f32 1.0, %v824
    %v826 = vmul.f32 %v818, %v55
    %v827 = vmul.f32 %v816, %v819
    %v828 = vadd.f32 %v826, %v827
    %v829 = vtanh.pop %v828
    %v830 = vmul.f32 %v825, %v829
    %v831 = vxor.u32 %v803, 2147483648
    %v832 = vxor.u32 %v804, 2147483648
    %v833 = vmul.f32 %v831, 1.442695
    %v834 = vpow.pop %v833
    %v835 = vmul.f32 %v832, 1.442695
    %v836 = vpow.pop %v835
    %v837 = vadd.f32 %v834, 1.0
    %v838 = vadd.f32 %v836, 1.0
    %v839 = vrcp.pop %v837
    %v840 = vmul.f32 1.0, %v839
    %v841 = vrcp.pop %v838
    %v842 = vmul.f32 1.0, %v841
    %v843 = vtanh.pop %v805
    %v844 = vxor.u32 %v806, 2147483648
    %v845 = vmul.f32 %v844, 1.442695
    %v846 = vpow.pop %v845
    %v847 = vadd.f32 %v846, 1.0
    %v848 = vrcp.pop %v847
    %v849 = vmul.f32 1.0, %v848
    %v850 = vmul.f32 %v842, %v57
    %v851 = vmul.f32 %v840, %v843
    %v852 = vadd.f32 %v850, %v851
    %v853 = vtanh.pop %v852
    %v854 = vmul.f32 %v849, %v853
    %s855 = scalar_lea.vmem %s0, 2
    %v856 = vld [vmem:[%s855] sm:$0x3]
    %s857 = scalar_lea.vmem %s0, 12
    %v858 = vld [vmem:[%s857] sm:$0x3]
    %860 = vset.pattern.permute.xlu0 0
    %861 = vperm.xlu0 %860, %v856
    %v862 = vpop.permute.xlu0 %861
    %v864 = vmul.f32 %v862, %v71
    %v865 = vmul.f32 %v862, %v75
    %v866 = vmul.f32 %v862, %v79
    %v867 = vmul.f32 %v862, %v83
    %868 = vset.pattern.permute.xlu0 1
    %869 = vperm.xlu0 %868, %v856
    %v870 = vpop.permute.xlu0 %869
    %v872 = vmul.f32 %v870, %v102
    %v873 = vmul.f32 %v870, %v106
    %v874 = vmul.f32 %v870, %v110
    %v875 = vmul.f32 %v870, %v114
    %v876 = vadd.f32 %v864, %v872
    %v877 = vadd.f32 %v865, %v873
    %v878 = vadd.f32 %v866, %v874
    %v879 = vadd.f32 %v867, %v875
    %v880 = vadd.f32 %v876, %v133
    %v881 = vadd.f32 %v877, %v137
    %v882 = vadd.f32 %v878, %v141
    %v883 = vadd.f32 %v879, %v145
    %885 = vset.pattern.permute.xlu0 0
    %886 = vperm.xlu0 %885, %v858
    %v887 = vpop.permute.xlu0 %886
    %v889 = vmul.f32 %v887, %v165
    %v890 = vmul.f32 %v887, %v169
    %v891 = vmul.f32 %v887, %v173
    %v892 = vmul.f32 %v887, %v177
    %893 = vset.pattern.permute.xlu0 1
    %894 = vperm.xlu0 %893, %v858
    %v895 = vpop.permute.xlu0 %894
    %v897 = vmul.f32 %v895, %v196
    %v898 = vmul.f32 %v895, %v200
    %v899 = vmul.f32 %v895, %v204
    %v900 = vmul.f32 %v895, %v208
    %v901 = vadd.f32 %v889, %v897
    %v902 = vadd.f32 %v890, %v898
    %v903 = vadd.f32 %v891, %v899
    %v904 = vadd.f32 %v892, %v900
    %v905 = vadd.f32 %v901, %v227
    %v906 = vadd.f32 %v902, %v231
    %v907 = vadd.f32 %v903, %v235
    %v908 = vadd.f32 %v904, %v239
    %v909 = vpack.c.bf16 %v830, %v830
    %910 = vmatprep.subr.bf16.mxu0 %v378
    %911 = vmatpush1.bf16.msra.mxu0 %v377
    %912 = vmatprep.subr.bf16.mxu0 %v382
    %913 = vmatpush1.bf16.msra.mxu0 %v381
    %914 = vmatprep.subr.bf16.mxu0 %v386
    %915 = vmatpush1.bf16.msra.mxu0 %v385
    %916 = vmatprep.subr.bf16.mxu0 %v390
    %917 = vmatpush1.bf16.msra.mxu0 %v389
    %918 = vmatprep.subr.bf16.mxu0 %v394
    %919 = vmatpush1.bf16.msra.mxu0 %v393
    %920 = vmatprep.subr.bf16.mxu0 %v398
    %921 = vmatpush1.bf16.msra.mxu0 %v397
    %922 = vmatprep.subr.bf16.mxu0 %v402
    %923 = vmatpush1.bf16.msra.mxu0 %v401
    %924 = vmatprep.subr.bf16.mxu0 %v406
    %925 = vmatpush1.bf16.msra.mxu0 %v405
    %926 = vmatprep.subr.bf16.mxu0 0
    %927 = vmatpush1.bf16.msra.mxu0 0
    %928 = vmatprep.subr.bf16.mxu0 0
    %929 = vmatpush1.bf16.msra.mxu0 0
    %930 = vmatprep.subr.bf16.mxu0 0
    %931 = vmatpush1.bf16.msra.mxu0 0
    %932 = vmatprep.subr.bf16.mxu0 0
    %933 = vmatpush1.bf16.msra.mxu0 0
    %934 = vmatprep.subr.bf16.mxu0 0
    %935 = vmatpush1.bf16.msra.mxu0 0
    %936 = vmatprep.subr.bf16.mxu0 0
    %937 = vmatpush1.bf16.msra.mxu0 0
    %938 = vmatprep.subr.bf16.mxu0 0
    %939 = vmatpush1.bf16.msra.mxu0 0
    %940 = vmatprep.subr.bf16.mxu0 0
    %941 = vmatpush1.bf16.msra.mxu0 0
    %942 = vmatprep.mubr.bf16.mxu0 0
    %943 = vmatmul.mubr.bf16.gmra.mrb[0].mxu0 %v909
    %v944 = vpop.f32.mrb[0].mxu0
    %v945 = vadd.f32 0.0, %v944
    %v946 = vpop.f32.mrb[0].mxu0
    %v947 = vadd.f32 0.0, %v946
    %v948 = vpop.f32.mrb[0].mxu0
    %v949 = vpop.f32.mrb[0].mxu0
    %950 = vdwg.mxu0
    %951 = vmatprep.subr.bf16.mxu0 %v380
    %952 = vmatpush1.bf16.msra.mxu0 %v379
    %953 = vmatprep.subr.bf16.mxu0 %v384
    %954 = vmatpush1.bf16.msra.mxu0 %v383
    %955 = vmatprep.subr.bf16.mxu0 %v388
    %956 = vmatpush1.bf16.msra.mxu0 %v387
    %957 = vmatprep.subr.bf16.mxu0 %v392
    %958 = vmatpush1.bf16.msra.mxu0 %v391
    %959 = vmatprep.subr.bf16.mxu0 %v396
    %960 = vmatpush1.bf16.msra.mxu0 %v395
    %961 = vmatprep.subr.bf16.mxu0 %v400
    %962 = vmatpush1.bf16.msra.mxu0 %v399
    %963 = vmatprep.subr.bf16.mxu0 %v404
    %964 = vmatpush1.bf16.msra.mxu0 %v403
    %965 = vmatprep.subr.bf16.mxu0 %v408
    %966 = vmatpush1.bf16.msra.mxu0 %v407
    %967 = vmatprep.subr.bf16.mxu0 0
    %968 = vmatpush1.bf16.msra.mxu0 0
    %969 = vmatprep.subr.bf16.mxu0 0
    %970 = vmatpush1.bf16.msra.mxu0 0
    %971 = vmatprep.subr.bf16.mxu0 0
    %972 = vmatpush1.bf16.msra.mxu0 0
    %973 = vmatprep.subr.bf16.mxu0 0
    %974 = vmatpush1.bf16.msra.mxu0 0
    %975 = vmatprep.subr.bf16.mxu0 0
    %976 = vmatpush1.bf16.msra.mxu0 0
    %977 = vmatprep.subr.bf16.mxu0 0
    %978 = vmatpush1.bf16.msra.mxu0 0
    %979 = vmatprep.subr.bf16.mxu0 0
    %980 = vmatpush1.bf16.msra.mxu0 0
    %981 = vmatprep.subr.bf16.mxu0 0
    %982 = vmatpush1.bf16.msra.mxu0 0
    %983 = vmatprep.mubr.bf16.mxu0 0
    %984 = vmatmul.mubr.bf16.gmra.mrb[0].mxu0 %v909
    %v985 = vpop.f32.mrb[0].mxu0
    %v986 = vadd.f32 0.0, %v985
    %v987 = vpop.f32.mrb[0].mxu0
    %v988 = vadd.f32 0.0, %v987
    %v989 = vpop.f32.mrb[0].mxu0
    %v990 = vpop.f32.mrb[0].mxu0
    %991 = vdwg.mxu0
    %v992 = vadd.f32 %v880, %v945
    %v993 = vadd.f32 %v881, %v947
    %v994 = vadd.f32 %v882, %v986
    %v995 = vadd.f32 %v883, %v988
    %v996 = vpack.c.bf16 %v854, %v854
    %997 = vmatprep.subr.bf16.mxu0 %v658
    %998 = vmatpush1.bf16.msra.mxu0 %v657
    %999 = vmatprep.subr.bf16.mxu0 %v662
    %1000 = vmatpush1.bf16.msra.mxu0 %v661
    %1001 = vmatprep.subr.bf16.mxu0 %v666
    %1002 = vmatpush1.bf16.msra.mxu0 %v665
    %1003 = vmatprep.subr.bf16.mxu0 %v670
    %1004 = vmatpush1.bf16.msra.mxu0 %v669
    %1005 = vmatprep.subr.bf16.mxu0 %v674
    %1006 = vmatpush1.bf16.msra.mxu0 %v673
    %1007 = vmatprep.subr.bf16.mxu0 %v678
    %1008 = vmatpush1.bf16.msra.mxu0 %v677
    %1009 = vmatprep.subr.bf16.mxu0 %v682
    %1010 = vmatpush1.bf16.msra.mxu0 %v681
    %1011 = vmatprep.subr.bf16.mxu0 %v686
    %1012 = vmatpush1.bf16.msra.mxu0 %v685
    %1013 = vmatprep.subr.bf16.mxu0 0
    %1014 = vmatpush1.bf16.msra.mxu0 0
    %1015 = vmatprep.subr.bf16.mxu0 0
    %1016 = vmatpush1.bf16.msra.mxu0 0
    %1017 = vmatprep.subr.bf16.mxu0 0
    %1018 = vmatpush1.bf16.msra.mxu0 0
    %1019 = vmatprep.subr.bf16.mxu0 0
    %1020 = vmatpush1.bf16.msra.mxu0 0
    %1021 = vmatprep.subr.bf16.mxu0 0
    %1022 = vmatpush1.bf16.msra.mxu0 0
    %1023 = vmatprep.subr.bf16.mxu0 0
    %1024 = vmatpush1.bf16.msra.mxu0 0
    %1025 = vmatprep.subr.bf16.mxu0 0
    %1026 = vmatpush1.bf16.msra.mxu0 0
    %1027 = vmatprep.subr.bf16.mxu0 0
    %1028 = vmatpush1.bf16.msra.mxu0 0
    %1029 = vmatprep.mubr.bf16.mxu0 0
    %1030 = vmatmul.mubr.bf16.gmra.mrb[0].mxu0 %v996
    %v1031 = vpop.f32.mrb[0].mxu0
    %v1032 = vadd.f32 0.0, %v1031
    %v1033 = vpop.f32.mrb[0].mxu0
    %v1034 = vadd.f32 0.0, %v1033
    %v1035 = vpop.f32.mrb[0].mxu0
    %v1036 = vpop.f32.mrb[0].mxu0
    %1037 = vdwg.mxu0
    %1038 = vmatprep.subr.bf16.mxu0 %v660
    %1039 = vmatpush1.bf16.msra.mxu0 %v659
    %1040 = vmatprep.subr.bf16.mxu0 %v664
    %1041 = vmatpush1.bf16.msra.mxu0 %v663
    %1042 = vmatprep.subr.bf16.mxu0 %v668
    %1043 = vmatpush1.bf16.msra.mxu0 %v667
    %1044 = vmatprep.subr.bf16.mxu0 %v672
    %1045 = vmatpush1.bf16.msra.mxu0 %v671
    %1046 = vmatprep.subr.bf16.mxu0 %v676
    %1047 = vmatpush1.bf16.msra.mxu0 %v675
    %1048 = vmatprep.subr.bf16.mxu0 %v680
    %1049 = vmatpush1.bf16.msra.mxu0 %v679
    %1050 = vmatprep.subr.bf16.mxu0 %v684
    %1051 = vmatpush1.bf16.msra.mxu0 %v683
    %1052 = vmatprep.subr.bf16.mxu0 %v688
    %1053 = vmatpush1.bf16.msra.mxu0 %v687
    %1054 = vmatprep.subr.bf16.mxu0 0
    %1055 = vmatpush1.bf16.msra.mxu0 0
    %1056 = vmatprep.subr.bf16.mxu0 0
    %1057 = vmatpush1.bf16.msra.mxu0 0
    %1058 = vmatprep.subr.bf16.mxu0 0
    %1059 = vmatpush1.bf16.msra.mxu0 0
    %1060 = vmatprep.subr.bf16.mxu0 0
    %1061 = vmatpush1.bf16.msra.mxu0 0
    %1062 = vmatprep.subr.bf16.mxu0 0
    %1063 = vmatpush1.bf16.msra.mxu0 0
    %1064 = vmatprep.subr.bf16.mxu0 0
    %1065 = vmatpush1.bf16.msra.mxu0 0
    %1066 = vmatprep.subr.bf16.mxu0 0
    %1067 = vmatpush1.bf16.msra.mxu0 0
    %1068 = vmatprep.subr.bf16.mxu0 0
    %1069 = vmatpush1.bf16.msra.mxu0 0
    %1070 = vmatprep.mubr.bf16.mxu0 0
    %1071 = vmatmul.mubr.bf16.gmra.mrb[0].mxu0 %v996
    %v1072 = vpop.f32.mrb[0].mxu0
    %v1073 = vadd.f32 0.0, %v1072
    %v1074 = vpop.f32.mrb[0].mxu0
    %v1075 = vadd.f32 0.0, %v1074
    %v1076 = vpop.f32.mrb[0].mxu0
    %v1077 = vpop.f32.mrb[0].mxu0
    %1078 = vdwg.mxu0
    %v1079 = vadd.f32 %v905, %v1032
    %v1080 = vadd.f32 %v906, %v1034
    %v1081 = vadd.f32 %v907, %v1073
    %v1082 = vadd.f32 %v908, %v1075
    %v1083 = vxor.u32 %v992, 2147483648
    %v1084 = vxor.u32 %v993, 2147483648
    %v1085 = vmul.f32 %v1083, 1.442695
    %v1086 = vpow.pop %v1085
    %v1087 = vmul.f32 %v1084, 1.442695
    %v1088 = vpow.pop %v1087
    %v1089 = vadd.f32 %v1086, 1.0
    %v1090 = vadd.f32 %v1088, 1.0
    %v1091 = vrcp.pop %v1089
    %v1092 = vmul.f32 1.0, %v1091
    %v1093 = vrcp.pop %v1090
    %v1094 = vmul.f32 1.0, %v1093
    %v1095 = vtanh.pop %v994
    %v1096 = vxor.u32 %v995, 2147483648
    %v1097 = vmul.f32 %v1096, 1.442695
    %v1098 = vpow.pop %v1097
    %v1099 = vadd.f32 %v1098, 1.0
    %v1100 = vrcp.pop %v1099
    %v1101 = vmul.f32 1.0, %v1100
    %v1102 = vmul.f32 %v1094, %v828
    %v1103 = vmul.f32 %v1092, %v1095
    %v1104 = vadd.f32 %v1102, %v1103
    %v1105 = vtanh.pop %v1104
    %v1106 = vmul.f32 %v1101, %v1105
    %v1107 = vxor.u32 %v1079, 2147483648
    %v1108 = vxor.u32 %v1080, 2147483648
    %v1109 = vmul.f32 %v1107, 1.442695
    %v1110 = vpow.pop %v1109
    %v1111 = vmul.f32 %v1108, 1.442695
    %v1112 = vpow.pop %v1111
    %v1113 = vadd.f32 %v1110, 1.0
    %v1114 = vadd.f32 %v1112, 1.0
    %v1115 = vrcp.pop %v1113
    %v1116 = vmul.f32 1.0, %v1115
    %v1117 = vrcp.pop %v1114
    %v1118 = vmul.f32 1.0, %v1117
    %v1119 = vtanh.pop %v1081
    %v1120 = vxor.u32 %v1082, 2147483648
    %v1121 = vmul.f32 %v1120, 1.442695
    %v1122 = vpow.pop %v1121
    %v1123 = vadd.f32 %v1122, 1.0
    %v1124 = vrcp.pop %v1123
    %v1125 = vmul.f32 1.0, %v1124
    %v1126 = vmul.f32 %v1118, %v852
    %v1127 = vmul.f32 %v1116, %v1119
    %v1128 = vadd.f32 %v1126, %v1127
    %v1129 = vtanh.pop %v1128
    %v1130 = vmul.f32 %v1125, %v1129
    %s1131 = scalar_lea.vmem %s0, 4
    %v1132 = vld [vmem:[%s1131] sm:$0x3]
    %s1133 = scalar_lea.vmem %s0, 10
    %v1134 = vld [vmem:[%s1133] sm:$0x3]
    %1136 = vset.pattern.permute.xlu0 0
    %1137 = vperm.xlu0 %1136, %v1132
    %v1138 = vpop.permute.xlu0 %1137
    %v1140 = vmul.f32 %v1138, %v71
    %v1141 = vmul.f32 %v1138, %v75
    %v1142 = vmul.f32 %v1138, %v79
    %v1143 = vmul.f32 %v1138, %v83
    %1144 = vset.pattern.permute.xlu0 1
    %1145 = vperm.xlu0 %1144, %v1132
    %v1146 = vpop.permute.xlu0 %1145
    %v1148 = vmul.f32 %v1146, %v102
    %v1149 = vmul.f32 %v1146, %v106
    %v1150 = vmul.f32 %v1146, %v110
    %v1151 = vmul.f32 %v1146, %v114
    %v1152 = vadd.f32 %v1140, %v1148
    %v1153 = vadd.f32 %v1141, %v1149
    %v1154 = vadd.f32 %v1142, %v1150
    %v1155 = vadd.f32 %v1143, %v1151
    %v1156 = vadd.f32 %v1152, %v133
    %v1157 = vadd.f32 %v1153, %v137
    %v1158 = vadd.f32 %v1154, %v141
    %v1159 = vadd.f32 %v1155, %v145
    %1161 = vset.pattern.permute.xlu0 0
    %1162 = vperm.xlu0 %1161, %v1134
    %v1163 = vpop.permute.xlu0 %1162
    %v1165 = vmul.f32 %v1163, %v165
    %v1166 = vmul.f32 %v1163, %v169
    %v1167 = vmul.f32 %v1163, %v173
    %v1168 = vmul.f32 %v1163, %v177
    %1169 = vset.pattern.permute.xlu0 1
    %1170 = vperm.xlu0 %1169, %v1134
    %v1171 = vpop.permute.xlu0 %1170
    %v1173 = vmul.f32 %v1171, %v196
    %v1174 = vmul.f32 %v1171, %v200
    %v1175 = vmul.f32 %v1171, %v204
    %v1176 = vmul.f32 %v1171, %v208
    %v1177 = vadd.f32 %v1165, %v1173
    %v1178 = vadd.f32 %v1166, %v1174
    %v1179 = vadd.f32 %v1167, %v1175
    %v1180 = vadd.f32 %v1168, %v1176
    %v1181 = vadd.f32 %v1177, %v227
    %v1182 = vadd.f32 %v1178, %v231
    %v1183 = vadd.f32 %v1179, %v235
    %v1184 = vadd.f32 %v1180, %v239
    %v1185 = vpack.c.bf16 %v1106, %v1106
    %1186 = vmatprep.subr.bf16.mxu0 %v378
    %1187 = vmatpush1.bf16.msra.mxu0 %v377
    %1188 = vmatprep.subr.bf16.mxu0 %v382
    %1189 = vmatpush1.bf16.msra.mxu0 %v381
    %1190 = vmatprep.subr.bf16.mxu0 %v386
    %1191 = vmatpush1.bf16.msra.mxu0 %v385
    %1192 = vmatprep.subr.bf16.mxu0 %v390
    %1193 = vmatpush1.bf16.msra.mxu0 %v389
    %1194 = vmatprep.subr.bf16.mxu0 %v394
    %1195 = vmatpush1.bf16.msra.mxu0 %v393
    %1196 = vmatprep.subr.bf16.mxu0 %v398
    %1197 = vmatpush1.bf16.msra.mxu0 %v397
    %1198 = vmatprep.subr.bf16.mxu0 %v402
    %1199 = vmatpush1.bf16.msra.mxu0 %v401
    %1200 = vmatprep.subr.bf16.mxu0 %v406
    %1201 = vmatpush1.bf16.msra.mxu0 %v405
    %1202 = vmatprep.subr.bf16.mxu0 0
    %1203 = vmatpush1.bf16.msra.mxu0 0
    %1204 = vmatprep.subr.bf16.mxu0 0
    %1205 = vmatpush1.bf16.msra.mxu0 0
    %1206 = vmatprep.subr.bf16.mxu0 0
    %1207 = vmatpush1.bf16.msra.mxu0 0
    %1208 = vmatprep.subr.bf16.mxu0 0
    %1209 = vmatpush1.bf16.msra.mxu0 0
    %1210 = vmatprep.subr.bf16.mxu0 0
    %1211 = vmatpush1.bf16.msra.mxu0 0
    %1212 = vmatprep.subr.bf16.mxu0 0
    %1213 = vmatpush1.bf16.msra.mxu0 0
    %1214 = vmatprep.subr.bf16.mxu0 0
    %1215 = vmatpush1.bf16.msra.mxu0 0
    %1216 = vmatprep.subr.bf16.mxu0 0
    %1217 = vmatpush1.bf16.msra.mxu0 0
    %1218 = vmatprep.mubr.bf16.mxu0 0
    %1219 = vmatmul.mubr.bf16.gmra.mrb[0].mxu0 %v1185
    %v1220 = vpop.f32.mrb[0].mxu0
    %v1221 = vadd.f32 0.0, %v1220
    %v1222 = vpop.f32.mrb[0].mxu0
    %v1223 = vadd.f32 0.0, %v1222
    %v1224 = vpop.f32.mrb[0].mxu0
    %v1225 = vpop.f32.mrb[0].mxu0
    %1226 = vdwg.mxu0
    %1227 = vmatprep.subr.bf16.mxu0 %v380
    %1228 = vmatpush1.bf16.msra.mxu0 %v379
    %1229 = vmatprep.subr.bf16.mxu0 %v384
    %1230 = vmatpush1.bf16.msra.mxu0 %v383
    %1231 = vmatprep.subr.bf16.mxu0 %v388
    %1232 = vmatpush1.bf16.msra.mxu0 %v387
    %1233 = vmatprep.subr.bf16.mxu0 %v392
    %1234 = vmatpush1.bf16.msra.mxu0 %v391
    %1235 = vmatprep.subr.bf16.mxu0 %v396
    %1236 = vmatpush1.bf16.msra.mxu0 %v395
    %1237 = vmatprep.subr.bf16.mxu0 %v400
    %1238 = vmatpush1.bf16.msra.mxu0 %v399
    %1239 = vmatprep.subr.bf16.mxu0 %v404
    %1240 = vmatpush1.bf16.msra.mxu0 %v403
    %1241 = vmatprep.subr.bf16.mxu0 %v408
    %1242 = vmatpush1.bf16.msra.mxu0 %v407
    %1243 = vmatprep.subr.bf16.mxu0 0
    %1244 = vmatpush1.bf16.msra.mxu0 0
    %1245 = vmatprep.subr.bf16.mxu0 0
    %1246 = vmatpush1.bf16.msra.mxu0 0
    %1247 = vmatprep.subr.bf16.mxu0 0
    %1248 = vmatpush1.bf16.msra.mxu0 0
    %1249 = vmatprep.subr.bf16.mxu0 0
    %1250 = vmatpush1.bf16.msra.mxu0 0
    %1251 = vmatprep.subr.bf16.mxu0 0
    %1252 = vmatpush1.bf16.msra.mxu0 0
    %1253 = vmatprep.subr.bf16.mxu0 0
    %1254 = vmatpush1.bf16.msra.mxu0 0
    %1255 = vmatprep.subr.bf16.mxu0 0
    %1256 = vmatpush1.bf16.msra.mxu0 0
    %1257 = vmatprep.subr.bf16.mxu0 0
    %1258 = vmatpush1.bf16.msra.mxu0 0
    %1259 = vmatprep.mubr.bf16.mxu0 0
    %1260 = vmatmul.mubr.bf16.gmra.mrb[0].mxu0 %v1185
    %v1261 = vpop.f32.mrb[0].mxu0
    %v1262 = vadd.f32 0.0, %v1261
    %v1263 = vpop.f32.mrb[0].mxu0
    %v1264 = vadd.f32 0.0, %v1263
    %v1265 = vpop.f32.mrb[0].mxu0
    %v1266 = vpop.f32.mrb[0].mxu0
    %1267 = vdwg.mxu0
    %v1268 = vadd.f32 %v1156, %v1221
    %v1269 = vadd.f32 %v1157, %v1223
    %v1270 = vadd.f32 %v1158, %v1262
    %v1271 = vadd.f32 %v1159, %v1264
    %v1272 = vpack.c.bf16 %v1130, %v1130
    %1273 = vmatprep.subr.bf16.mxu0 %v658
    %1274 = vmatpush1.bf16.msra.mxu0 %v657
    %1275 = vmatprep.subr.bf16.mxu0 %v662
    %1276 = vmatpush1.bf16.msra.mxu0 %v661
    %1277 = vmatprep.subr.bf16.mxu0 %v666
    %1278 = vmatpush1.bf16.msra.mxu0 %v665
    %1279 = vmatprep.subr.bf16.mxu0 %v670
    %1280 = vmatpush1.bf16.msra.mxu0 %v669
    %1281 = vmatprep.subr.bf16.mxu0 %v674
    %1282 = vmatpush1.bf16.msra.mxu0 %v673
    %1283 = vmatprep.subr.bf16.mxu0 %v678
    %1284 = vmatpush1.bf16.msra.mxu0 %v677
    %1285 = vmatprep.subr.bf16.mxu0 %v682
    %1286 = vmatpush1.bf16.msra.mxu0 %v681
    %1287 = vmatprep.subr.bf16.mxu0 %v686
    %1288 = vmatpush1.bf16.msra.mxu0 %v685
    %1289 = vmatprep.subr.bf16.mxu0 0
    %1290 = vmatpush1.bf16.msra.mxu0 0
    %1291 = vmatprep.subr.bf16.mxu0 0
    %1292 = vmatpush1.bf16.msra.mxu0 0
    %1293 = vmatprep.subr.bf16.mxu0 0
    %1294 = vmatpush1.bf16.msra.mxu0 0
    %1295 = vmatprep.subr.bf16.mxu0 0
    %1296 = vmatpush1.bf16.msra.mxu0 0
    %1297 = vmatprep.subr.bf16.mxu0 0
    %1298 = vmatpush1.bf16.msra.mxu0 0
    %1299 = vmatprep.subr.bf16.mxu0 0
    %1300 = vmatpush1.bf16.msra.mxu0 0
    %1301 = vmatprep.subr.bf16.mxu0 0
    %1302 = vmatpush1.bf16.msra.mxu0 0
    %1303 = vmatprep.subr.bf16.mxu0 0
    %1304 = vmatpush1.bf16.msra.mxu0 0
    %1305 = vmatprep.mubr.bf16.mxu0 0
    %1306 = vmatmul.mubr.bf16.gmra.mrb[0].mxu0 %v1272
    %v1307 = vpop.f32.mrb[0].mxu0
    %v1308 = vadd.f32 0.0, %v1307
    %v1309 = vpop.f32.mrb[0].mxu0
    %v1310 = vadd.f32 0.0, %v1309
    %v1311 = vpop.f32.mrb[0].mxu0
    %v1312 = vpop.f32.mrb[0].mxu0
    %1313 = vdwg.mxu0
    %1314 = vmatprep.subr.bf16.mxu0 %v660
    %1315 = vmatpush1.bf16.msra.mxu0 %v659
    %1316 = vmatprep.subr.bf16.mxu0 %v664
    %1317 = vmatpush1.bf16.msra.mxu0 %v663
    %1318 = vmatprep.subr.bf16.mxu0 %v668
    %1319 = vmatpush1.bf16.msra.mxu0 %v667
    %1320 = vmatprep.subr.bf16.mxu0 %v672
    %1321 = vmatpush1.bf16.msra.mxu0 %v671
    %1322 = vmatprep.subr.bf16.mxu0 %v676
    %1323 = vmatpush1.bf16.msra.mxu0 %v675
    %1324 = vmatprep.subr.bf16.mxu0 %v680
    %1325 = vmatpush1.bf16.msra.mxu0 %v679
    %1326 = vmatprep.subr.bf16.mxu0 %v684
    %1327 = vmatpush1.bf16.msra.mxu0 %v683
    %1328 = vmatprep.subr.bf16.mxu0 %v688
    %1329 = vmatpush1.bf16.msra.mxu0 %v687
    %1330 = vmatprep.subr.bf16.mxu0 0
    %1331 = vmatpush1.bf16.msra.mxu0 0
    %1332 = vmatprep.subr.bf16.mxu0 0
    %1333 = vmatpush1.bf16.msra.mxu0 0
    %1334 = vmatprep.subr.bf16.mxu0 0
    %1335 = vmatpush1.bf16.msra.mxu0 0
    %1336 = vmatprep.subr.bf16.mxu0 0
    %1337 = vmatpush1.bf16.msra.mxu0 0
    %1338 = vmatprep.subr.bf16.mxu0 0
    %1339 = vmatpush1.bf16.msra.mxu0 0
    %1340 = vmatprep.subr.bf16.mxu0 0
    %1341 = vmatpush1.bf16.msra.mxu0 0
    %1342 = vmatprep.subr.bf16.mxu0 0
    %1343 = vmatpush1.bf16.msra.mxu0 0
    %1344 = vmatprep.subr.bf16.mxu0 0
    %1345 = vmatpush1.bf16.msra.mxu0 0
    %1346 = vmatprep.mubr.bf16.mxu0 0
    %1347 = vmatmul.mubr.bf16.gmra.mrb[0].mxu0 %v1272
    %v1348 = vpop.f32.mrb[0].mxu0
    %v1349 = vadd.f32 0.0, %v1348
    %v1350 = vpop.f32.mrb[0].mxu0
    %v1351 = vadd.f32 0.0, %v1350
    %v1352 = vpop.f32.mrb[0].mxu0
    %v1353 = vpop.f32.mrb[0].mxu0
    %1354 = vdwg.mxu0
    %v1355 = vadd.f32 %v1181, %v1308
    %v1356 = vadd.f32 %v1182, %v1310
    %v1357 = vadd.f32 %v1183, %v1349
    %v1358 = vadd.f32 %v1184, %v1351
    %v1359 = vxor.u32 %v1268, 2147483648
    %v1360 = vxor.u32 %v1269, 2147483648
    %v1361 = vmul.f32 %v1359, 1.442695
    %v1362 = vpow.pop %v1361
    %v1363 = vmul.f32 %v1360, 1.442695
    %v1364 = vpow.pop %v1363
    %v1365 = vadd.f32 %v1362, 1.0
    %v1366 = vadd.f32 %v1364, 1.0
    %v1367 = vrcp.pop %v1365
    %v1368 = vmul.f32 1.0, %v1367
    %v1369 = vrcp.pop %v1366
    %v1370 = vmul.f32 1.0, %v1369
    %v1371 = vtanh.pop %v1270
    %v1372 = vxor.u32 %v1271, 2147483648
    %v1373 = vmul.f32 %v1372, 1.442695
    %v1374 = vpow.pop %v1373
    %v1375 = vadd.f32 %v1374, 1.0
    %v1376 = vrcp.pop %v1375
    %v1377 = vmul.f32 1.0, %v1376
    %v1378 = vmul.f32 %v1370, %v1104
    %v1379 = vmul.f32 %v1368, %v1371
    %v1380 = vadd.f32 %v1378, %v1379
    %v1381 = vtanh.pop %v1380
    %v1382 = vmul.f32 %v1377, %v1381
    %v1383 = vxor.u32 %v1355, 2147483648
    %v1384 = vxor.u32 %v1356, 2147483648
    %v1385 = vmul.f32 %v1383, 1.442695
    %v1386 = vpow.pop %v1385
    %v1387 = vmul.f32 %v1384, 1.442695
    %v1388 = vpow.pop %v1387
    %v1389 = vadd.f32 %v1386, 1.0
    %v1390 = vadd.f32 %v1388, 1.0
    %v1391 = vrcp.pop %v1389
    %v1392 = vmul.f32 1.0, %v1391
    %v1393 = vrcp.pop %v1390
    %v1394 = vmul.f32 1.0, %v1393
    %v1395 = vtanh.pop %v1357
    %v1396 = vxor.u32 %v1358, 2147483648
    %v1397 = vmul.f32 %v1396, 1.442695
    %v1398 = vpow.pop %v1397
    %v1399 = vadd.f32 %v1398, 1.0
    %v1400 = vrcp.pop %v1399
    %v1401 = vmul.f32 1.0, %v1400
    %v1402 = vmul.f32 %v1394, %v1128
    %v1403 = vmul.f32 %v1392, %v1395
    %v1404 = vadd.f32 %v1402, %v1403
    %v1405 = vtanh.pop %v1404
    %v1406 = vmul.f32 %v1401, %v1405
    %s1407 = scalar_lea.vmem %s0, 6
    %v1408 = vld [vmem:[%s1407] sm:$0x3]
    %s1409 = scalar_lea.vmem %s0, 8
    %v1410 = vld [vmem:[%s1409] sm:$0x3]
    %1412 = vset.pattern.permute.xlu0 0
    %1413 = vperm.xlu0 %1412, %v1408
    %v1414 = vpop.permute.xlu0 %1413
    %v1416 = vmul.f32 %v1414, %v71
    %v1417 = vmul.f32 %v1414, %v75
    %v1418 = vmul.f32 %v1414, %v79
    %v1419 = vmul.f32 %v1414, %v83
    %1420 = vset.pattern.permute.xlu0 1
    %1421 = vperm.xlu0 %1420, %v1408
    %v1422 = vpop.permute.xlu0 %1421
    %v1424 = vmul.f32 %v1422, %v102
    %v1425 = vmul.f32 %v1422, %v106
    %v1426 = vmul.f32 %v1422, %v110
    %v1427 = vmul.f32 %v1422, %v114
    %v1428 = vadd.f32 %v1416, %v1424
    %v1429 = vadd.f32 %v1417, %v1425
    %v1430 = vadd.f32 %v1418, %v1426
    %v1431 = vadd.f32 %v1419, %v1427
    %v1432 = vadd.f32 %v1428, %v133
    %v1433 = vadd.f32 %v1429, %v137
    %v1434 = vadd.f32 %v1430, %v141
    %v1435 = vadd.f32 %v1431, %v145
    %1437 = vset.pattern.permute.xlu0 0
    %1438 = vperm.xlu0 %1437, %v1410
    %v1439 = vpop.permute.xlu0 %1438
    %v1441 = vmul.f32 %v1439, %v165
    %v1442 = vmul.f32 %v1439, %v169
    %v1443 = vmul.f32 %v1439, %v173
    %v1444 = vmul.f32 %v1439, %v177
    %1445 = vset.pattern.permute.xlu0 1
    %1446 = vperm.xlu0 %1445, %v1410
    %v1447 = vpop.permute.xlu0 %1446
    %v1449 = vmul.f32 %v1447, %v196
    %v1450 = vmul.f32 %v1447, %v200
    %v1451 = vmul.f32 %v1447, %v204
    %v1452 = vmul.f32 %v1447, %v208
    %v1453 = vadd.f32 %v1441, %v1449
    %v1454 = vadd.f32 %v1442, %v1450
    %v1455 = vadd.f32 %v1443, %v1451
    %v1456 = vadd.f32 %v1444, %v1452
    %v1457 = vadd.f32 %v1453, %v227
    %v1458 = vadd.f32 %v1454, %v231
    %v1459 = vadd.f32 %v1455, %v235
    %v1460 = vadd.f32 %v1456, %v239
    %v1461 = vpack.c.bf16 %v1382, %v1382
    %1462 = vmatprep.subr.bf16.mxu0 %v378
    %1463 = vmatpush1.bf16.msra.mxu0 %v377
    %1464 = vmatprep.subr.bf16.mxu0 %v382
    %1465 = vmatpush1.bf16.msra.mxu0 %v381
    %1466 = vmatprep.subr.bf16.mxu0 %v386
    %1467 = vmatpush1.bf16.msra.mxu0 %v385
    %1468 = vmatprep.subr.bf16.mxu0 %v390
    %1469 = vmatpush1.bf16.msra.mxu0 %v389
    %1470 = vmatprep.subr.bf16.mxu0 %v394
    %1471 = vmatpush1.bf16.msra.mxu0 %v393
    %1472 = vmatprep.subr.bf16.mxu0 %v398
    %1473 = vmatpush1.bf16.msra.mxu0 %v397
    %1474 = vmatprep.subr.bf16.mxu0 %v402
    %1475 = vmatpush1.bf16.msra.mxu0 %v401
    %1476 = vmatprep.subr.bf16.mxu0 %v406
    %1477 = vmatpush1.bf16.msra.mxu0 %v405
    %1478 = vmatprep.subr.bf16.mxu0 0
    %1479 = vmatpush1.bf16.msra.mxu0 0
    %1480 = vmatprep.subr.bf16.mxu0 0
    %1481 = vmatpush1.bf16.msra.mxu0 0
    %1482 = vmatprep.subr.bf16.mxu0 0
    %1483 = vmatpush1.bf16.msra.mxu0 0
    %1484 = vmatprep.subr.bf16.mxu0 0
    %1485 = vmatpush1.bf16.msra.mxu0 0
    %1486 = vmatprep.subr.bf16.mxu0 0
    %1487 = vmatpush1.bf16.msra.mxu0 0
    %1488 = vmatprep.subr.bf16.mxu0 0
    %1489 = vmatpush1.bf16.msra.mxu0 0
    %1490 = vmatprep.subr.bf16.mxu0 0
    %1491 = vmatpush1.bf16.msra.mxu0 0
    %1492 = vmatprep.subr.bf16.mxu0 0
    %1493 = vmatpush1.bf16.msra.mxu0 0
    %1494 = vmatprep.mubr.bf16.mxu0 0
    %1495 = vmatmul.mubr.bf16.gmra.mrb[0].mxu0 %v1461
    %v1496 = vpop.f32.mrb[0].mxu0
    %v1497 = vadd.f32 0.0, %v1496
    %v1498 = vpop.f32.mrb[0].mxu0
    %v1499 = vadd.f32 0.0, %v1498
    %v1500 = vpop.f32.mrb[0].mxu0
    %v1501 = vpop.f32.mrb[0].mxu0
    %1502 = vdwg.mxu0
    %1503 = vmatprep.subr.bf16.mxu0 %v380
    %1504 = vmatpush1.bf16.msra.mxu0 %v379
    %1505 = vmatprep.subr.bf16.mxu0 %v384
    %1506 = vmatpush1.bf16.msra.mxu0 %v383
    %1507 = vmatprep.subr.bf16.mxu0 %v388
    %1508 = vmatpush1.bf16.msra.mxu0 %v387
    %1509 = vmatprep.subr.bf16.mxu0 %v392
    %1510 = vmatpush1.bf16.msra.mxu0 %v391
    %1511 = vmatprep.subr.bf16.mxu0 %v396
    %1512 = vmatpush1.bf16.msra.mxu0 %v395
    %1513 = vmatprep.subr.bf16.mxu0 %v400
    %1514 = vmatpush1.bf16.msra.mxu0 %v399
    %1515 = vmatprep.subr.bf16.mxu0 %v404
    %1516 = vmatpush1.bf16.msra.mxu0 %v403
    %1517 = vmatprep.subr.bf16.mxu0 %v408
    %1518 = vmatpush1.bf16.msra.mxu0 %v407
    %1519 = vmatprep.subr.bf16.mxu0 0
    %1520 = vmatpush1.bf16.msra.mxu0 0
    %1521 = vmatprep.subr.bf16.mxu0 0
    %1522 = vmatpush1.bf16.msra.mxu0 0
    %1523 = vmatprep.subr.bf16.mxu0 0
    %1524 = vmatpush1.bf16.msra.mxu0 0
    %1525 = vmatprep.subr.bf16.mxu0 0
    %1526 = vmatpush1.bf16.msra.mxu0 0
    %1527 = vmatprep.subr.bf16.mxu0 0
    %1528 = vmatpush1.bf16.msra.mxu0 0
    %1529 = vmatprep.subr.bf16.mxu0 0
    %1530 = vmatpush1.bf16.msra.mxu0 0
    %1531 = vmatprep.subr.bf16.mxu0 0
    %1532 = vmatpush1.bf16.msra.mxu0 0
    %1533 = vmatprep.subr.bf16.mxu0 0
    %1534 = vmatpush1.bf16.msra.mxu0 0
    %1535 = vmatprep.mubr.bf16.mxu0 0
    %1536 = vmatmul.mubr.bf16.gmra.mrb[0].mxu0 %v1461
    %v1537 = vpop.f32.mrb[0].mxu0
    %v1538 = vadd.f32 0.0, %v1537
    %v1539 = vpop.f32.mrb[0].mxu0
    %v1540 = vadd.f32 0.0, %v1539
    %v1541 = vpop.f32.mrb[0].mxu0
    %v1542 = vpop.f32.mrb[0].mxu0
    %1543 = vdwg.mxu0
    %v1544 = vadd.f32 %v1432, %v1497
    %v1545 = vadd.f32 %v1433, %v1499
    %v1546 = vadd.f32 %v1434, %v1538
    %v1547 = vadd.f32 %v1435, %v1540
    %v1548 = vpack.c.bf16 %v1406, %v1406
    %1549 = vmatprep.subr.bf16.mxu0 %v658
    %1550 = vmatpush1.bf16.msra.mxu0 %v657
    %1551 = vmatprep.subr.bf16.mxu0 %v662
    %1552 = vmatpush1.bf16.msra.mxu0 %v661
    %1553 = vmatprep.subr.bf16.mxu0 %v666
    %1554 = vmatpush1.bf16.msra.mxu0 %v665
    %1555 = vmatprep.subr.bf16.mxu0 %v670
    %1556 = vmatpush1.bf16.msra.mxu0 %v669
    %1557 = vmatprep.subr.bf16.mxu0 %v674
    %1558 = vmatpush1.bf16.msra.mxu0 %v673
    %1559 = vmatprep.subr.bf16.mxu0 %v678
    %1560 = vmatpush1.bf16.msra.mxu0 %v677
    %1561 = vmatprep.subr.bf16.mxu0 %v682
    %1562 = vmatpush1.bf16.msra.mxu0 %v681
    %1563 = vmatprep.subr.bf16.mxu0 %v686
    %1564 = vmatpush1.bf16.msra.mxu0 %v685
    %1565 = vmatprep.subr.bf16.mxu0 0
    %1566 = vmatpush1.bf16.msra.mxu0 0
    %1567 = vmatprep.subr.bf16.mxu0 0
    %1568 = vmatpush1.bf16.msra.mxu0 0
    %1569 = vmatprep.subr.bf16.mxu0 0
    %1570 = vmatpush1.bf16.msra.mxu0 0
    %1571 = vmatprep.subr.bf16.mxu0 0
    %1572 = vmatpush1.bf16.msra.mxu0 0
    %1573 = vmatprep.subr.bf16.mxu0 0
    %1574 = vmatpush1.bf16.msra.mxu0 0
    %1575 = vmatprep.subr.bf16.mxu0 0
    %1576 = vmatpush1.bf16.msra.mxu0 0
    %1577 = vmatprep.subr.bf16.mxu0 0
    %1578 = vmatpush1.bf16.msra.mxu0 0
    %1579 = vmatprep.subr.bf16.mxu0 0
    %1580 = vmatpush1.bf16.msra.mxu0 0
    %1581 = vmatprep.mubr.bf16.mxu0 0
    %1582 = vmatmul.mubr.bf16.gmra.mrb[0].mxu0 %v1548
    %v1583 = vpop.f32.mrb[0].mxu0
    %v1584 = vadd.f32 0.0, %v1583
    %v1585 = vpop.f32.mrb[0].mxu0
    %v1586 = vadd.f32 0.0, %v1585
    %v1587 = vpop.f32.mrb[0].mxu0
    %v1588 = vpop.f32.mrb[0].mxu0
    %1589 = vdwg.mxu0
    %1590 = vmatprep.subr.bf16.mxu0 %v660
    %1591 = vmatpush1.bf16.msra.mxu0 %v659
    %1592 = vmatprep.subr.bf16.mxu0 %v664
    %1593 = vmatpush1.bf16.msra.mxu0 %v663
    %1594 = vmatprep.subr.bf16.mxu0 %v668
    %1595 = vmatpush1.bf16.msra.mxu0 %v667
    %1596 = vmatprep.subr.bf16.mxu0 %v672
    %1597 = vmatpush1.bf16.msra.mxu0 %v671
    %1598 = vmatprep.subr.bf16.mxu0 %v676
    %1599 = vmatpush1.bf16.msra.mxu0 %v675
    %1600 = vmatprep.subr.bf16.mxu0 %v680
    %1601 = vmatpush1.bf16.msra.mxu0 %v679
    %1602 = vmatprep.subr.bf16.mxu0 %v684
    %1603 = vmatpush1.bf16.msra.mxu0 %v683
    %1604 = vmatprep.subr.bf16.mxu0 %v688
    %1605 = vmatpush1.bf16.msra.mxu0 %v687
    %1606 = vmatprep.subr.bf16.mxu0 0
    %1607 = vmatpush1.bf16.msra.mxu0 0
    %1608 = vmatprep.subr.bf16.mxu0 0
    %1609 = vmatpush1.bf16.msra.mxu0 0
    %1610 = vmatprep.subr.bf16.mxu0 0
    %1611 = vmatpush1.bf16.msra.mxu0 0
    %1612 = vmatprep.subr.bf16.mxu0 0
    %1613 = vmatpush1.bf16.msra.mxu0 0
    %1614 = vmatprep.subr.bf16.mxu0 0
    %1615 = vmatpush1.bf16.msra.mxu0 0
    %1616 = vmatprep.subr.bf16.mxu0 0
    %1617 = vmatpush1.bf16.msra.mxu0 0
    %1618 = vmatprep.subr.bf16.mxu0 0
    %1619 = vmatpush1.bf16.msra.mxu0 0
    %1620 = vmatprep.subr.bf16.mxu0 0
    %1621 = vmatpush1.bf16.msra.mxu0 0
    %1622 = vmatprep.mubr.bf16.mxu0 0
    %1623 = vmatmul.mubr.bf16.gmra.mrb[0].mxu0 %v1548
    %v1624 = vpop.f32.mrb[0].mxu0
    %v1625 = vadd.f32 0.0, %v1624
    %v1626 = vpop.f32.mrb[0].mxu0
    %v1627 = vadd.f32 0.0, %v1626
    %v1628 = vpop.f32.mrb[0].mxu0
    %v1629 = vpop.f32.mrb[0].mxu0
    %1630 = vdwg.mxu0
    %v1631 = vadd.f32 %v1457, %v1584
    %v1632 = vadd.f32 %v1458, %v1586
    %v1633 = vadd.f32 %v1459, %v1625
    %v1634 = vadd.f32 %v1460, %v1627
    %v1635 = vxor.u32 %v1544, 2147483648
    %v1636 = vxor.u32 %v1545, 2147483648
    %v1637 = vmul.f32 %v1635, 1.442695
    %v1638 = vpow.pop %v1637
    %v1639 = vmul.f32 %v1636, 1.442695
    %v1640 = vpow.pop %v1639
    %v1641 = vadd.f32 %v1638, 1.0
    %v1642 = vadd.f32 %v1640, 1.0
    %v1643 = vrcp.pop %v1641
    %v1644 = vmul.f32 1.0, %v1643
    %v1645 = vrcp.pop %v1642
    %v1646 = vmul.f32 1.0, %v1645
    %v1647 = vtanh.pop %v1546
    %v1648 = vxor.u32 %v1547, 2147483648
    %v1649 = vmul.f32 %v1648, 1.442695
    %v1650 = vpow.pop %v1649
    %v1651 = vadd.f32 %v1650, 1.0
    %v1652 = vrcp.pop %v1651
    %v1653 = vmul.f32 1.0, %v1652
    %v1654 = vmul.f32 %v1646, %v1380
    %v1655 = vmul.f32 %v1644, %v1647
    %v1656 = vadd.f32 %v1654, %v1655
    %v1657 = vtanh.pop %v1656
    %v1658 = vmul.f32 %v1653, %v1657
    %v1659 = vxor.u32 %v1631, 2147483648
    %v1660 = vxor.u32 %v1632, 2147483648
    %v1661 = vmul.f32 %v1659, 1.442695
    %v1662 = vpow.pop %v1661
    %v1663 = vmul.f32 %v1660, 1.442695
    %v1664 = vpow.pop %v1663
    %v1665 = vadd.f32 %v1662, 1.0
    %v1666 = vadd.f32 %v1664, 1.0
    %v1667 = vrcp.pop %v1665
    %v1668 = vmul.f32 1.0, %v1667
    %v1669 = vrcp.pop %v1666
    %v1670 = vmul.f32 1.0, %v1669
    %v1671 = vtanh.pop %v1633
    %v1672 = vxor.u32 %v1634, 2147483648
    %v1673 = vmul.f32 %v1672, 1.442695
    %v1674 = vpow.pop %v1673
    %v1675 = vadd.f32 %v1674, 1.0
    %v1676 = vrcp.pop %v1675
    %v1677 = vmul.f32 1.0, %v1676
    %v1678 = vmul.f32 %v1670, %v1404
    %v1679 = vmul.f32 %v1668, %v1671
    %v1680 = vadd.f32 %v1678, %v1679
    %v1681 = vtanh.pop %v1680
    %v1682 = vmul.f32 %v1677, %v1681
    %v1683 = vmul.f32 %v1439, %v71
    %v1684 = vmul.f32 %v1439, %v75
    %v1685 = vmul.f32 %v1439, %v79
    %v1686 = vmul.f32 %v1439, %v83
    %v1687 = vmul.f32 %v1447, %v102
    %v1688 = vmul.f32 %v1447, %v106
    %v1689 = vmul.f32 %v1447, %v110
    %v1690 = vmul.f32 %v1447, %v114
    %v1691 = vadd.f32 %v1683, %v1687
    %v1692 = vadd.f32 %v1684, %v1688
    %v1693 = vadd.f32 %v1685, %v1689
    %v1694 = vadd.f32 %v1686, %v1690
    %v1695 = vadd.f32 %v1691, %v133
    %v1696 = vadd.f32 %v1692, %v137
    %v1697 = vadd.f32 %v1693, %v141
    %v1698 = vadd.f32 %v1694, %v145
    %v1699 = vmul.f32 %v1414, %v165
    %v1700 = vmul.f32 %v1414, %v169
    %v1701 = vmul.f32 %v1414, %v173
    %v1702 = vmul.f32 %v1414, %v177
    %v1703 = vmul.f32 %v1422, %v196
    %v1704 = vmul.f32 %v1422, %v200
    %v1705 = vmul.f32 %v1422, %v204
    %v1706 = vmul.f32 %v1422, %v208
    %v1707 = vadd.f32 %v1699, %v1703
    %v1708 = vadd.f32 %v1700, %v1704
    %v1709 = vadd.f32 %v1701, %v1705
    %v1710 = vadd.f32 %v1702, %v1706
    %v1711 = vadd.f32 %v1707, %v227
    %v1712 = vadd.f32 %v1708, %v231
    %v1713 = vadd.f32 %v1709, %v235
    %v1714 = vadd.f32 %v1710, %v239
    %v1715 = vpack.c.bf16 %v1658, %v1658
    %1716 = vmatprep.subr.bf16.mxu0 %v378
    %1717 = vmatpush1.bf16.msra.mxu0 %v377
    %1718 = vmatprep.subr.bf16.mxu0 %v382
    %1719 = vmatpush1.bf16.msra.mxu0 %v381
    %1720 = vmatprep.subr.bf16.mxu0 %v386
    %1721 = vmatpush1.bf16.msra.mxu0 %v385
    %1722 = vmatprep.subr.bf16.mxu0 %v390
    %1723 = vmatpush1.bf16.msra.mxu0 %v389
    %1724 = vmatprep.subr.bf16.mxu0 %v394
    %1725 = vmatpush1.bf16.msra.mxu0 %v393
    %1726 = vmatprep.subr.bf16.mxu0 %v398
    %1727 = vmatpush1.bf16.msra.mxu0 %v397
    %1728 = vmatprep.subr.bf16.mxu0 %v402
    %1729 = vmatpush1.bf16.msra.mxu0 %v401
    %1730 = vmatprep.subr.bf16.mxu0 %v406
    %1731 = vmatpush1.bf16.msra.mxu0 %v405
    %1732 = vmatprep.subr.bf16.mxu0 0
    %1733 = vmatpush1.bf16.msra.mxu0 0
    %1734 = vmatprep.subr.bf16.mxu0 0
    %1735 = vmatpush1.bf16.msra.mxu0 0
    %1736 = vmatprep.subr.bf16.mxu0 0
    %1737 = vmatpush1.bf16.msra.mxu0 0
    %1738 = vmatprep.subr.bf16.mxu0 0
    %1739 = vmatpush1.bf16.msra.mxu0 0
    %1740 = vmatprep.subr.bf16.mxu0 0
    %1741 = vmatpush1.bf16.msra.mxu0 0
    %1742 = vmatprep.subr.bf16.mxu0 0
    %1743 = vmatpush1.bf16.msra.mxu0 0
    %1744 = vmatprep.subr.bf16.mxu0 0
    %1745 = vmatpush1.bf16.msra.mxu0 0
    %1746 = vmatprep.subr.bf16.mxu0 0
    %1747 = vmatpush1.bf16.msra.mxu0 0
    %1748 = vmatprep.mubr.bf16.mxu0 0
    %1749 = vmatmul.mubr.bf16.gmra.mrb[0].mxu0 %v1715
    %v1750 = vpop.f32.mrb[0].mxu0
    %v1751 = vadd.f32 0.0, %v1750
    %v1752 = vpop.f32.mrb[0].mxu0
    %v1753 = vadd.f32 0.0, %v1752
    %v1754 = vpop.f32.mrb[0].mxu0
    %v1755 = vpop.f32.mrb[0].mxu0
    %1756 = vdwg.mxu0
    %1757 = vmatprep.subr.bf16.mxu0 %v380
    %1758 = vmatpush1.bf16.msra.mxu0 %v379
    %1759 = vmatprep.subr.bf16.mxu0 %v384
    %1760 = vmatpush1.bf16.msra.mxu0 %v383
    %1761 = vmatprep.subr.bf16.mxu0 %v388
    %1762 = vmatpush1.bf16.msra.mxu0 %v387
    %1763 = vmatprep.subr.bf16.mxu0 %v392
    %1764 = vmatpush1.bf16.msra.mxu0 %v391
    %1765 = vmatprep.subr.bf16.mxu0 %v396
    %1766 = vmatpush1.bf16.msra.mxu0 %v395
    %1767 = vmatprep.subr.bf16.mxu0 %v400
    %1768 = vmatpush1.bf16.msra.mxu0 %v399
    %1769 = vmatprep.subr.bf16.mxu0 %v404
    %1770 = vmatpush1.bf16.msra.mxu0 %v403
    %1771 = vmatprep.subr.bf16.mxu0 %v408
    %1772 = vmatpush1.bf16.msra.mxu0 %v407
    %1773 = vmatprep.subr.bf16.mxu0 0
    %1774 = vmatpush1.bf16.msra.mxu0 0
    %1775 = vmatprep.subr.bf16.mxu0 0
    %1776 = vmatpush1.bf16.msra.mxu0 0
    %1777 = vmatprep.subr.bf16.mxu0 0
    %1778 = vmatpush1.bf16.msra.mxu0 0
    %1779 = vmatprep.subr.bf16.mxu0 0
    %1780 = vmatpush1.bf16.msra.mxu0 0
    %1781 = vmatprep.subr.bf16.mxu0 0
    %1782 = vmatpush1.bf16.msra.mxu0 0
    %1783 = vmatprep.subr.bf16.mxu0 0
    %1784 = vmatpush1.bf16.msra.mxu0 0
    %1785 = vmatprep.subr.bf16.mxu0 0
    %1786 = vmatpush1.bf16.msra.mxu0 0
    %1787 = vmatprep.subr.bf16.mxu0 0
    %1788 = vmatpush1.bf16.msra.mxu0 0
    %1789 = vmatprep.mubr.bf16.mxu0 0
    %1790 = vmatmul.mubr.bf16.gmra.mrb[0].mxu0 %v1715
    %v1791 = vpop.f32.mrb[0].mxu0
    %v1792 = vadd.f32 0.0, %v1791
    %v1793 = vpop.f32.mrb[0].mxu0
    %v1794 = vadd.f32 0.0, %v1793
    %v1795 = vpop.f32.mrb[0].mxu0
    %v1796 = vpop.f32.mrb[0].mxu0
    %1797 = vdwg.mxu0
    %v1798 = vadd.f32 %v1695, %v1751
    %v1799 = vadd.f32 %v1696, %v1753
    %v1800 = vadd.f32 %v1697, %v1792
    %v1801 = vadd.f32 %v1698, %v1794
    %v1802 = vpack.c.bf16 %v1682, %v1682
    %1803 = vmatprep.subr.bf16.mxu0 %v658
    %1804 = vmatpush1.bf16.msra.mxu0 %v657
    %1805 = vmatprep.subr.bf16.mxu0 %v662
    %1806 = vmatpush1.bf16.msra.mxu0 %v661
    %1807 = vmatprep.subr.bf16.mxu0 %v666
    %1808 = vmatpush1.bf16.msra.mxu0 %v665
    %1809 = vmatprep.subr.bf16.mxu0 %v670
    %1810 = vmatpush1.bf16.msra.mxu0 %v669
    %1811 = vmatprep.subr.bf16.mxu0 %v674
    %1812 = vmatpush1.bf16.msra.mxu0 %v673
    %1813 = vmatprep.subr.bf16.mxu0 %v678
    %1814 = vmatpush1.bf16.msra.mxu0 %v677
    %1815 = vmatprep.subr.bf16.mxu0 %v682
    %1816 = vmatpush1.bf16.msra.mxu0 %v681
    %1817 = vmatprep.subr.bf16.mxu0 %v686
    %1818 = vmatpush1.bf16.msra.mxu0 %v685
    %1819 = vmatprep.subr.bf16.mxu0 0
    %1820 = vmatpush1.bf16.msra.mxu0 0
    %1821 = vmatprep.subr.bf16.mxu0 0
    %1822 = vmatpush1.bf16.msra.mxu0 0
    %1823 = vmatprep.subr.bf16.mxu0 0
    %1824 = vmatpush1.bf16.msra.mxu0 0
    %1825 = vmatprep.subr.bf16.mxu0 0
    %1826 = vmatpush1.bf16.msra.mxu0 0
    %1827 = vmatprep.subr.bf16.mxu0 0
    %1828 = vmatpush1.bf16.msra.mxu0 0
    %1829 = vmatprep.subr.bf16.mxu0 0
    %1830 = vmatpush1.bf16.msra.mxu0 0
    %1831 = vmatprep.subr.bf16.mxu0 0
    %1832 = vmatpush1.bf16.msra.mxu0 0
    %1833 = vmatprep.subr.bf16.mxu0 0
    %1834 = vmatpush1.bf16.msra.mxu0 0
    %1835 = vmatprep.mubr.bf16.mxu0 0
    %1836 = vmatmul.mubr.bf16.gmra.mrb[0].mxu0 %v1802
    %v1837 = vpop.f32.mrb[0].mxu0
    %v1838 = vadd.f32 0.0, %v1837
    %v1839 = vpop.f32.mrb[0].mxu0
    %v1840 = vadd.f32 0.0, %v1839
    %v1841 = vpop.f32.mrb[0].mxu0
    %v1842 = vpop.f32.mrb[0].mxu0
    %1843 = vdwg.mxu0
    %1844 = vmatprep.subr.bf16.mxu0 %v660
    %1845 = vmatpush1.bf16.msra.mxu0 %v659
    %1846 = vmatprep.subr.bf16.mxu0 %v664
    %1847 = vmatpush1.bf16.msra.mxu0 %v663
    %1848 = vmatprep.subr.bf16.mxu0 %v668
    %1849 = vmatpush1.bf16.msra.mxu0 %v667
    %1850 = vmatprep.subr.bf16.mxu0 %v672
    %1851 = vmatpush1.bf16.msra.mxu0 %v671
    %1852 = vmatprep.subr.bf16.mxu0 %v676
    %1853 = vmatpush1.bf16.msra.mxu0 %v675
    %1854 = vmatprep.subr.bf16.mxu0 %v680
    %1855 = vmatpush1.bf16.msra.mxu0 %v679
    %1856 = vmatprep.subr.bf16.mxu0 %v684
    %1857 = vmatpush1.bf16.msra.mxu0 %v683
    %1858 = vmatprep.subr.bf16.mxu0 %v688
    %1859 = vmatpush1.bf16.msra.mxu0 %v687
    %1860 = vmatprep.subr.bf16.mxu0 0
    %1861 = vmatpush1.bf16.msra.mxu0 0
    %1862 = vmatprep.subr.bf16.mxu0 0
    %1863 = vmatpush1.bf16.msra.mxu0 0
    %1864 = vmatprep.subr.bf16.mxu0 0
    %1865 = vmatpush1.bf16.msra.mxu0 0
    %1866 = vmatprep.subr.bf16.mxu0 0
    %1867 = vmatpush1.bf16.msra.mxu0 0
    %1868 = vmatprep.subr.bf16.mxu0 0
    %1869 = vmatpush1.bf16.msra.mxu0 0
    %1870 = vmatprep.subr.bf16.mxu0 0
    %1871 = vmatpush1.bf16.msra.mxu0 0
    %1872 = vmatprep.subr.bf16.mxu0 0
    %1873 = vmatpush1.bf16.msra.mxu0 0
    %1874 = vmatprep.subr.bf16.mxu0 0
    %1875 = vmatpush1.bf16.msra.mxu0 0
    %1876 = vmatprep.mubr.bf16.mxu0 0
    %1877 = vmatmul.mubr.bf16.gmra.mrb[0].mxu0 %v1802
    %v1878 = vpop.f32.mrb[0].mxu0
    %v1879 = vadd.f32 0.0, %v1878
    %v1880 = vpop.f32.mrb[0].mxu0
    %v1881 = vadd.f32 0.0, %v1880
    %v1882 = vpop.f32.mrb[0].mxu0
    %v1883 = vpop.f32.mrb[0].mxu0
    %1884 = vdwg.mxu0
    %v1885 = vadd.f32 %v1711, %v1838
    %v1886 = vadd.f32 %v1712, %v1840
    %v1887 = vadd.f32 %v1713, %v1879
    %v1888 = vadd.f32 %v1714, %v1881
    %v1889 = vxor.u32 %v1798, 2147483648
    %v1890 = vxor.u32 %v1799, 2147483648
    %v1891 = vmul.f32 %v1889, 1.442695
    %v1892 = vpow.pop %v1891
    %v1893 = vmul.f32 %v1890, 1.442695
    %v1894 = vpow.pop %v1893
    %v1895 = vadd.f32 %v1892, 1.0
    %v1896 = vadd.f32 %v1894, 1.0
    %v1897 = vrcp.pop %v1895
    %v1898 = vmul.f32 1.0, %v1897
    %v1899 = vrcp.pop %v1896
    %v1900 = vmul.f32 1.0, %v1899
    %v1901 = vtanh.pop %v1800
    %v1902 = vxor.u32 %v1801, 2147483648
    %v1903 = vmul.f32 %v1902, 1.442695
    %v1904 = vpow.pop %v1903
    %v1905 = vadd.f32 %v1904, 1.0
    %v1906 = vrcp.pop %v1905
    %v1907 = vmul.f32 1.0, %v1906
    %v1908 = vmul.f32 %v1900, %v1656
    %v1909 = vmul.f32 %v1898, %v1901
    %v1910 = vadd.f32 %v1908, %v1909
    %v1911 = vtanh.pop %v1910
    %v1912 = vmul.f32 %v1907, %v1911
    %v1913 = vxor.u32 %v1885, 2147483648
    %v1914 = vxor.u32 %v1886, 2147483648
    %v1915 = vmul.f32 %v1913, 1.442695
    %v1916 = vpow.pop %v1915
    %v1917 = vmul.f32 %v1914, 1.442695
    %v1918 = vpow.pop %v1917
    %v1919 = vadd.f32 %v1916, 1.0
    %v1920 = vadd.f32 %v1918, 1.0
    %v1921 = vrcp.pop %v1919
    %v1922 = vmul.f32 1.0, %v1921
    %v1923 = vrcp.pop %v1920
    %v1924 = vmul.f32 1.0, %v1923
    %v1925 = vtanh.pop %v1887
    %v1926 = vxor.u32 %v1888, 2147483648
    %v1927 = vmul.f32 %v1926, 1.442695
    %v1928 = vpow.pop %v1927
    %v1929 = vadd.f32 %v1928, 1.0
    %v1930 = vrcp.pop %v1929
    %v1931 = vmul.f32 1.0, %v1930
    %v1932 = vmul.f32 %v1924, %v1680
    %v1933 = vmul.f32 %v1922, %v1925
    %v1934 = vadd.f32 %v1932, %v1933
    %v1935 = vtanh.pop %v1934
    %v1936 = vmul.f32 %v1931, %v1935
    %v1937 = vmul.f32 %v1163, %v71
    %v1938 = vmul.f32 %v1163, %v75
    %v1939 = vmul.f32 %v1163, %v79
    %v1940 = vmul.f32 %v1163, %v83
    %v1941 = vmul.f32 %v1171, %v102
    %v1942 = vmul.f32 %v1171, %v106
    %v1943 = vmul.f32 %v1171, %v110
    %v1944 = vmul.f32 %v1171, %v114
    %v1945 = vadd.f32 %v1937, %v1941
    %v1946 = vadd.f32 %v1938, %v1942
    %v1947 = vadd.f32 %v1939, %v1943
    %v1948 = vadd.f32 %v1940, %v1944
    %v1949 = vadd.f32 %v1945, %v133
    %v1950 = vadd.f32 %v1946, %v137
    %v1951 = vadd.f32 %v1947, %v141
    %v1952 = vadd.f32 %v1948, %v145
    %v1953 = vmul.f32 %v1138, %v165
    %v1954 = vmul.f32 %v1138, %v169
    %v1955 = vmul.f32 %v1138, %v173
    %v1956 = vmul.f32 %v1138, %v177
    %v1957 = vmul.f32 %v1146, %v196
    %v1958 = vmul.f32 %v1146, %v200
    %v1959 = vmul.f32 %v1146, %v204
    %v1960 = vmul.f32 %v1146, %v208
    %v1961 = vadd.f32 %v1953, %v1957
    %v1962 = vadd.f32 %v1954, %v1958
    %v1963 = vadd.f32 %v1955, %v1959
    %v1964 = vadd.f32 %v1956, %v1960
    %v1965 = vadd.f32 %v1961, %v227
    %v1966 = vadd.f32 %v1962, %v231
    %v1967 = vadd.f32 %v1963, %v235
    %v1968 = vadd.f32 %v1964, %v239
    %v1969 = vpack.c.bf16 %v1912, %v1912
    %1970 = vmatprep.subr.bf16.mxu0 %v378
    %1971 = vmatpush1.bf16.msra.mxu0 %v377
    %1972 = vmatprep.subr.bf16.mxu0 %v382
    %1973 = vmatpush1.bf16.msra.mxu0 %v381
    %1974 = vmatprep.subr.bf16.mxu0 %v386
    %1975 = vmatpush1.bf16.msra.mxu0 %v385
    %1976 = vmatprep.subr.bf16.mxu0 %v390
    %1977 = vmatpush1.bf16.msra.mxu0 %v389
    %1978 = vmatprep.subr.bf16.mxu0 %v394
    %1979 = vmatpush1.bf16.msra.mxu0 %v393
    %1980 = vmatprep.subr.bf16.mxu0 %v398
    %1981 = vmatpush1.bf16.msra.mxu0 %v397
    %1982 = vmatprep.subr.bf16.mxu0 %v402
    %1983 = vmatpush1.bf16.msra.mxu0 %v401
    %1984 = vmatprep.subr.bf16.mxu0 %v406
    %1985 = vmatpush1.bf16.msra.mxu0 %v405
    %1986 = vmatprep.subr.bf16.mxu0 0
    %1987 = vmatpush1.bf16.msra.mxu0 0
    %1988 = vmatprep.subr.bf16.mxu0 0
    %1989 = vmatpush1.bf16.msra.mxu0 0
    %1990 = vmatprep.subr.bf16.mxu0 0
    %1991 = vmatpush1.bf16.msra.mxu0 0
    %1992 = vmatprep.subr.bf16.mxu0 0
    %1993 = vmatpush1.bf16.msra.mxu0 0
    %1994 = vmatprep.subr.bf16.mxu0 0
    %1995 = vmatpush1.bf16.msra.mxu0 0
    %1996 = vmatprep.subr.bf16.mxu0 0
    %1997 = vmatpush1.bf16.msra.mxu0 0
    %1998 = vmatprep.subr.bf16.mxu0 0
    %1999 = vmatpush1.bf16.msra.mxu0 0
    %2000 = vmatprep.subr.bf16.mxu0 0
    %2001 = vmatpush1.bf16.msra.mxu0 0
    %2002 = vmatprep.mubr.bf16.mxu0 0
    %2003 = vmatmul.mubr.bf16.gmra.mrb[0].mxu0 %v1969
    %v2004 = vpop.f32.mrb[0].mxu0
    %v2005 = vadd.f32 0.0, %v2004
    %v2006 = vpop.f32.mrb[0].mxu0
    %v2007 = vadd.f32 0.0, %v2006
    %v2008 = vpop.f32.mrb[0].mxu0
    %v2009 = vpop.f32.mrb[0].mxu0
    %2010 = vdwg.mxu0
    %2011 = vmatprep.subr.bf16.mxu0 %v380
    %2012 = vmatpush1.bf16.msra.mxu0 %v379
    %2013 = vmatprep.subr.bf16.mxu0 %v384
    %2014 = vmatpush1.bf16.msra.mxu0 %v383
    %2015 = vmatprep.subr.bf16.mxu0 %v388
    %2016 = vmatpush1.bf16.msra.mxu0 %v387
    %2017 = vmatprep.subr.bf16.mxu0 %v392
    %2018 = vmatpush1.bf16.msra.mxu0 %v391
    %2019 = vmatprep.subr.bf16.mxu0 %v396
    %2020 = vmatpush1.bf16.msra.mxu0 %v395
    %2021 = vmatprep.subr.bf16.mxu0 %v400
    %2022 = vmatpush1.bf16.msra.mxu0 %v399
    %2023 = vmatprep.subr.bf16.mxu0 %v404
    %2024 = vmatpush1.bf16.msra.mxu0 %v403
    %2025 = vmatprep.subr.bf16.mxu0 %v408
    %2026 = vmatpush1.bf16.msra.mxu0 %v407
    %2027 = vmatprep.subr.bf16.mxu0 0
    %2028 = vmatpush1.bf16.msra.mxu0 0
    %2029 = vmatprep.subr.bf16.mxu0 0
    %2030 = vmatpush1.bf16.msra.mxu0 0
    %2031 = vmatprep.subr.bf16.mxu0 0
    %2032 = vmatpush1.bf16.msra.mxu0 0
    %2033 = vmatprep.subr.bf16.mxu0 0
    %2034 = vmatpush1.bf16.msra.mxu0 0
    %2035 = vmatprep.subr.bf16.mxu0 0
    %2036 = vmatpush1.bf16.msra.mxu0 0
    %2037 = vmatprep.subr.bf16.mxu0 0
    %2038 = vmatpush1.bf16.msra.mxu0 0
    %2039 = vmatprep.subr.bf16.mxu0 0
    %2040 = vmatpush1.bf16.msra.mxu0 0
    %2041 = vmatprep.subr.bf16.mxu0 0
    %2042 = vmatpush1.bf16.msra.mxu0 0
    %2043 = vmatprep.mubr.bf16.mxu0 0
    %2044 = vmatmul.mubr.bf16.gmra.mrb[0].mxu0 %v1969
    %v2045 = vpop.f32.mrb[0].mxu0
    %v2046 = vadd.f32 0.0, %v2045
    %v2047 = vpop.f32.mrb[0].mxu0
    %v2048 = vadd.f32 0.0, %v2047
    %v2049 = vpop.f32.mrb[0].mxu0
    %v2050 = vpop.f32.mrb[0].mxu0
    %2051 = vdwg.mxu0
    %v2052 = vadd.f32 %v1949, %v2005
    %v2053 = vadd.f32 %v1950, %v2007
    %v2054 = vadd.f32 %v1951, %v2046
    %v2055 = vadd.f32 %v1952, %v2048
    %v2056 = vpack.c.bf16 %v1936, %v1936
    %2057 = vmatprep.subr.bf16.mxu0 %v658
    %2058 = vmatpush1.bf16.msra.mxu0 %v657
    %2059 = vmatprep.subr.bf16.mxu0 %v662
    %2060 = vmatpush1.bf16.msra.mxu0 %v661
    %2061 = vmatprep.subr.bf16.mxu0 %v666
    %2062 = vmatpush1.bf16.msra.mxu0 %v665
    %2063 = vmatprep.subr.bf16.mxu0 %v670
    %2064 = vmatpush1.bf16.msra.mxu0 %v669
    %2065 = vmatprep.subr.bf16.mxu0 %v674
    %2066 = vmatpush1.bf16.msra.mxu0 %v673
    %2067 = vmatprep.subr.bf16.mxu0 %v678
    %2068 = vmatpush1.bf16.msra.mxu0 %v677
    %2069 = vmatprep.subr.bf16.mxu0 %v682
    %2070 = vmatpush1.bf16.msra.mxu0 %v681
    %2071 = vmatprep.subr.bf16.mxu0 %v686
    %2072 = vmatpush1.bf16.msra.mxu0 %v685
    %2073 = vmatprep.subr.bf16.mxu0 0
    %2074 = vmatpush1.bf16.msra.mxu0 0
    %2075 = vmatprep.subr.bf16.mxu0 0
    %2076 = vmatpush1.bf16.msra.mxu0 0
    %2077 = vmatprep.subr.bf16.mxu0 0
    %2078 = vmatpush1.bf16.msra.mxu0 0
    %2079 = vmatprep.subr.bf16.mxu0 0
    %2080 = vmatpush1.bf16.msra.mxu0 0
    %2081 = vmatprep.subr.bf16.mxu0 0
    %2082 = vmatpush1.bf16.msra.mxu0 0
    %2083 = vmatprep.subr.bf16.mxu0 0
    %2084 = vmatpush1.bf16.msra.mxu0 0
    %2085 = vmatprep.subr.bf16.mxu0 0
    %2086 = vmatpush1.bf16.msra.mxu0 0
    %2087 = vmatprep.subr.bf16.mxu0 0
    %2088 = vmatpush1.bf16.msra.mxu0 0
    %2089 = vmatprep.mubr.bf16.mxu0 0
    %2090 = vmatmul.mubr.bf16.gmra.mrb[0].mxu0 %v2056
    %v2091 = vpop.f32.mrb[0].mxu0
    %v2092 = vadd.f32 0.0, %v2091
    %v2093 = vpop.f32.mrb[0].mxu0
    %v2094 = vadd.f32 0.0, %v2093
    %v2095 = vpop.f32.mrb[0].mxu0
    %v2096 = vpop.f32.mrb[0].mxu0
    %2097 = vdwg.mxu0
    %2098 = vmatprep.subr.bf16.mxu0 %v660
    %2099 = vmatpush1.bf16.msra.mxu0 %v659
    %2100 = vmatprep.subr.bf16.mxu0 %v664
    %2101 = vmatpush1.bf16.msra.mxu0 %v663
    %2102 = vmatprep.subr.bf16.mxu0 %v668
    %2103 = vmatpush1.bf16.msra.mxu0 %v667
    %2104 = vmatprep.subr.bf16.mxu0 %v672
    %2105 = vmatpush1.bf16.msra.mxu0 %v671
    %2106 = vmatprep.subr.bf16.mxu0 %v676
    %2107 = vmatpush1.bf16.msra.mxu0 %v675
    %2108 = vmatprep.subr.bf16.mxu0 %v680
    %2109 = vmatpush1.bf16.msra.mxu0 %v679
    %2110 = vmatprep.subr.bf16.mxu0 %v684
    %2111 = vmatpush1.bf16.msra.mxu0 %v683
    %2112 = vmatprep.subr.bf16.mxu0 %v688
    %2113 = vmatpush1.bf16.msra.mxu0 %v687
    %2114 = vmatprep.subr.bf16.mxu0 0
    %2115 = vmatpush1.bf16.msra.mxu0 0
    %2116 = vmatprep.subr.bf16.mxu0 0
    %2117 = vmatpush1.bf16.msra.mxu0 0
    %2118 = vmatprep.subr.bf16.mxu0 0
    %2119 = vmatpush1.bf16.msra.mxu0 0
    %2120 = vmatprep.subr.bf16.mxu0 0
    %2121 = vmatpush1.bf16.msra.mxu0 0
    %2122 = vmatprep.subr.bf16.mxu0 0
    %2123 = vmatpush1.bf16.msra.mxu0 0
    %2124 = vmatprep.subr.bf16.mxu0 0
    %2125 = vmatpush1.bf16.msra.mxu0 0
    %2126 = vmatprep.subr.bf16.mxu0 0
    %2127 = vmatpush1.bf16.msra.mxu0 0
    %2128 = vmatprep.subr.bf16.mxu0 0
    %2129 = vmatpush1.bf16.msra.mxu0 0
    %2130 = vmatprep.mubr.bf16.mxu0 0
    %2131 = vmatmul.mubr.bf16.gmra.mrb[0].mxu0 %v2056
    %v2132 = vpop.f32.mrb[0].mxu0
    %v2133 = vadd.f32 0.0, %v2132
    %v2134 = vpop.f32.mrb[0].mxu0
    %v2135 = vadd.f32 0.0, %v2134
    %v2136 = vpop.f32.mrb[0].mxu0
    %v2137 = vpop.f32.mrb[0].mxu0
    %2138 = vdwg.mxu0
    %v2139 = vadd.f32 %v1965, %v2092
    %v2140 = vadd.f32 %v1966, %v2094
    %v2141 = vadd.f32 %v1967, %v2133
    %v2142 = vadd.f32 %v1968, %v2135
    %v2143 = vxor.u32 %v2052, 2147483648
    %v2144 = vxor.u32 %v2053, 2147483648
    %v2145 = vmul.f32 %v2143, 1.442695
    %v2146 = vpow.pop %v2145
    %v2147 = vmul.f32 %v2144, 1.442695
    %v2148 = vpow.pop %v2147
    %v2149 = vadd.f32 %v2146, 1.0
    %v2150 = vadd.f32 %v2148, 1.0
    %v2151 = vrcp.pop %v2149
    %v2152 = vmul.f32 1.0, %v2151
    %v2153 = vrcp.pop %v2150
    %v2154 = vmul.f32 1.0, %v2153
    %v2155 = vtanh.pop %v2054
    %v2156 = vxor.u32 %v2055, 2147483648
    %v2157 = vmul.f32 %v2156, 1.442695
    %v2158 = vpow.pop %v2157
    %v2159 = vadd.f32 %v2158, 1.0
    %v2160 = vrcp.pop %v2159
    %v2161 = vmul.f32 1.0, %v2160
    %v2162 = vmul.f32 %v2154, %v1910
    %v2163 = vmul.f32 %v2152, %v2155
    %v2164 = vadd.f32 %v2162, %v2163
    %v2165 = vtanh.pop %v2164
    %v2166 = vmul.f32 %v2161, %v2165
    %v2167 = vxor.u32 %v2139, 2147483648
    %v2168 = vxor.u32 %v2140, 2147483648
    %v2169 = vmul.f32 %v2167, 1.442695
    %v2170 = vpow.pop %v2169
    %v2171 = vmul.f32 %v2168, 1.442695
    %v2172 = vpow.pop %v2171
    %v2173 = vadd.f32 %v2170, 1.0
    %v2174 = vadd.f32 %v2172, 1.0
    %v2175 = vrcp.pop %v2173
    %v2176 = vmul.f32 1.0, %v2175
    %v2177 = vrcp.pop %v2174
    %v2178 = vmul.f32 1.0, %v2177
    %v2179 = vtanh.pop %v2141
    %v2180 = vxor.u32 %v2142, 2147483648
    %v2181 = vmul.f32 %v2180, 1.442695
    %v2182 = vpow.pop %v2181
    %v2183 = vadd.f32 %v2182, 1.0
    %v2184 = vrcp.pop %v2183
    %v2185 = vmul.f32 1.0, %v2184
    %v2186 = vmul.f32 %v2178, %v1934
    %v2187 = vmul.f32 %v2176, %v2179
    %v2188 = vadd.f32 %v2186, %v2187
    %v2189 = vtanh.pop %v2188
    %v2190 = vmul.f32 %v2185, %v2189
    %v2191 = vmul.f32 %v887, %v71
    %v2192 = vmul.f32 %v887, %v75
    %v2193 = vmul.f32 %v887, %v79
    %v2194 = vmul.f32 %v887, %v83
    %v2195 = vmul.f32 %v895, %v102
    %v2196 = vmul.f32 %v895, %v106
    %v2197 = vmul.f32 %v895, %v110
    %v2198 = vmul.f32 %v895, %v114
    %v2199 = vadd.f32 %v2191, %v2195
    %v2200 = vadd.f32 %v2192, %v2196
    %v2201 = vadd.f32 %v2193, %v2197
    %v2202 = vadd.f32 %v2194, %v2198
    %v2203 = vadd.f32 %v2199, %v133
    %v2204 = vadd.f32 %v2200, %v137
    %v2205 = vadd.f32 %v2201, %v141
    %v2206 = vadd.f32 %v2202, %v145
    %v2207 = vmul.f32 %v862, %v165
    %v2208 = vmul.f32 %v862, %v169
    %v2209 = vmul.f32 %v862, %v173
    %v2210 = vmul.f32 %v862, %v177
    %v2211 = vmul.f32 %v870, %v196
    %v2212 = vmul.f32 %v870, %v200
    %v2213 = vmul.f32 %v870, %v204
    %v2214 = vmul.f32 %v870, %v208
    %v2215 = vadd.f32 %v2207, %v2211
    %v2216 = vadd.f32 %v2208, %v2212
    %v2217 = vadd.f32 %v2209, %v2213
    %v2218 = vadd.f32 %v2210, %v2214
    %v2219 = vadd.f32 %v2215, %v227
    %v2220 = vadd.f32 %v2216, %v231
    %v2221 = vadd.f32 %v2217, %v235
    %v2222 = vadd.f32 %v2218, %v239
    %v2223 = vpack.c.bf16 %v2166, %v2166
    %2224 = vmatprep.subr.bf16.mxu0 %v378
    %2225 = vmatpush1.bf16.msra.mxu0 %v377
    %2226 = vmatprep.subr.bf16.mxu0 %v382
    %2227 = vmatpush1.bf16.msra.mxu0 %v381
    %2228 = vmatprep.subr.bf16.mxu0 %v386
    %2229 = vmatpush1.bf16.msra.mxu0 %v385
    %2230 = vmatprep.subr.bf16.mxu0 %v390
    %2231 = vmatpush1.bf16.msra.mxu0 %v389
    %2232 = vmatprep.subr.bf16.mxu0 %v394
    %2233 = vmatpush1.bf16.msra.mxu0 %v393
    %2234 = vmatprep.subr.bf16.mxu0 %v398
    %2235 = vmatpush1.bf16.msra.mxu0 %v397
    %2236 = vmatprep.subr.bf16.mxu0 %v402
    %2237 = vmatpush1.bf16.msra.mxu0 %v401
    %2238 = vmatprep.subr.bf16.mxu0 %v406
    %2239 = vmatpush1.bf16.msra.mxu0 %v405
    %2240 = vmatprep.subr.bf16.mxu0 0
    %2241 = vmatpush1.bf16.msra.mxu0 0
    %2242 = vmatprep.subr.bf16.mxu0 0
    %2243 = vmatpush1.bf16.msra.mxu0 0
    %2244 = vmatprep.subr.bf16.mxu0 0
    %2245 = vmatpush1.bf16.msra.mxu0 0
    %2246 = vmatprep.subr.bf16.mxu0 0
    %2247 = vmatpush1.bf16.msra.mxu0 0
    %2248 = vmatprep.subr.bf16.mxu0 0
    %2249 = vmatpush1.bf16.msra.mxu0 0
    %2250 = vmatprep.subr.bf16.mxu0 0
    %2251 = vmatpush1.bf16.msra.mxu0 0
    %2252 = vmatprep.subr.bf16.mxu0 0
    %2253 = vmatpush1.bf16.msra.mxu0 0
    %2254 = vmatprep.subr.bf16.mxu0 0
    %2255 = vmatpush1.bf16.msra.mxu0 0
    %2256 = vmatprep.mubr.bf16.mxu0 0
    %2257 = vmatmul.mubr.bf16.gmra.mrb[0].mxu0 %v2223
    %v2258 = vpop.f32.mrb[0].mxu0
    %v2259 = vadd.f32 0.0, %v2258
    %v2260 = vpop.f32.mrb[0].mxu0
    %v2261 = vadd.f32 0.0, %v2260
    %v2262 = vpop.f32.mrb[0].mxu0
    %v2263 = vpop.f32.mrb[0].mxu0
    %2264 = vdwg.mxu0
    %2265 = vmatprep.subr.bf16.mxu0 %v380
    %2266 = vmatpush1.bf16.msra.mxu0 %v379
    %2267 = vmatprep.subr.bf16.mxu0 %v384
    %2268 = vmatpush1.bf16.msra.mxu0 %v383
    %2269 = vmatprep.subr.bf16.mxu0 %v388
    %2270 = vmatpush1.bf16.msra.mxu0 %v387
    %2271 = vmatprep.subr.bf16.mxu0 %v392
    %2272 = vmatpush1.bf16.msra.mxu0 %v391
    %2273 = vmatprep.subr.bf16.mxu0 %v396
    %2274 = vmatpush1.bf16.msra.mxu0 %v395
    %2275 = vmatprep.subr.bf16.mxu0 %v400
    %2276 = vmatpush1.bf16.msra.mxu0 %v399
    %2277 = vmatprep.subr.bf16.mxu0 %v404
    %2278 = vmatpush1.bf16.msra.mxu0 %v403
    %2279 = vmatprep.subr.bf16.mxu0 %v408
    %2280 = vmatpush1.bf16.msra.mxu0 %v407
    %2281 = vmatprep.subr.bf16.mxu0 0
    %2282 = vmatpush1.bf16.msra.mxu0 0
    %2283 = vmatprep.subr.bf16.mxu0 0
    %2284 = vmatpush1.bf16.msra.mxu0 0
    %2285 = vmatprep.subr.bf16.mxu0 0
    %2286 = vmatpush1.bf16.msra.mxu0 0
    %2287 = vmatprep.subr.bf16.mxu0 0
    %2288 = vmatpush1.bf16.msra.mxu0 0
    %2289 = vmatprep.subr.bf16.mxu0 0
    %2290 = vmatpush1.bf16.msra.mxu0 0
    %2291 = vmatprep.subr.bf16.mxu0 0
    %2292 = vmatpush1.bf16.msra.mxu0 0
    %2293 = vmatprep.subr.bf16.mxu0 0
    %2294 = vmatpush1.bf16.msra.mxu0 0
    %2295 = vmatprep.subr.bf16.mxu0 0
    %2296 = vmatpush1.bf16.msra.mxu0 0
    %2297 = vmatprep.mubr.bf16.mxu0 0
    %2298 = vmatmul.mubr.bf16.gmra.mrb[0].mxu0 %v2223
    %v2299 = vpop.f32.mrb[0].mxu0
    %v2300 = vadd.f32 0.0, %v2299
    %v2301 = vpop.f32.mrb[0].mxu0
    %v2302 = vadd.f32 0.0, %v2301
    %v2303 = vpop.f32.mrb[0].mxu0
    %v2304 = vpop.f32.mrb[0].mxu0
    %2305 = vdwg.mxu0
    %v2306 = vadd.f32 %v2203, %v2259
    %v2307 = vadd.f32 %v2204, %v2261
    %v2308 = vadd.f32 %v2205, %v2300
    %v2309 = vadd.f32 %v2206, %v2302
    %v2310 = vpack.c.bf16 %v2190, %v2190
    %2311 = vmatprep.subr.bf16.mxu0 %v658
    %2312 = vmatpush1.bf16.msra.mxu0 %v657
    %2313 = vmatprep.subr.bf16.mxu0 %v662
    %2314 = vmatpush1.bf16.msra.mxu0 %v661
    %2315 = vmatprep.subr.bf16.mxu0 %v666
    %2316 = vmatpush1.bf16.msra.mxu0 %v665
    %2317 = vmatprep.subr.bf16.mxu0 %v670
    %2318 = vmatpush1.bf16.msra.mxu0 %v669
    %2319 = vmatprep.subr.bf16.mxu0 %v674
    %2320 = vmatpush1.bf16.msra.mxu0 %v673
    %2321 = vmatprep.subr.bf16.mxu0 %v678
    %2322 = vmatpush1.bf16.msra.mxu0 %v677
    %2323 = vmatprep.subr.bf16.mxu0 %v682
    %2324 = vmatpush1.bf16.msra.mxu0 %v681
    %2325 = vmatprep.subr.bf16.mxu0 %v686
    %2326 = vmatpush1.bf16.msra.mxu0 %v685
    %2327 = vmatprep.subr.bf16.mxu0 0
    %2328 = vmatpush1.bf16.msra.mxu0 0
    %2329 = vmatprep.subr.bf16.mxu0 0
    %2330 = vmatpush1.bf16.msra.mxu0 0
    %2331 = vmatprep.subr.bf16.mxu0 0
    %2332 = vmatpush1.bf16.msra.mxu0 0
    %2333 = vmatprep.subr.bf16.mxu0 0
    %2334 = vmatpush1.bf16.msra.mxu0 0
    %2335 = vmatprep.subr.bf16.mxu0 0
    %2336 = vmatpush1.bf16.msra.mxu0 0
    %2337 = vmatprep.subr.bf16.mxu0 0
    %2338 = vmatpush1.bf16.msra.mxu0 0
    %2339 = vmatprep.subr.bf16.mxu0 0
    %2340 = vmatpush1.bf16.msra.mxu0 0
    %2341 = vmatprep.subr.bf16.mxu0 0
    %2342 = vmatpush1.bf16.msra.mxu0 0
    %2343 = vmatprep.mubr.bf16.mxu0 0
    %2344 = vmatmul.mubr.bf16.gmra.mrb[0].mxu0 %v2310
    %v2345 = vpop.f32.mrb[0].mxu0
    %v2346 = vadd.f32 0.0, %v2345
    %v2347 = vpop.f32.mrb[0].mxu0
    %v2348 = vadd.f32 0.0, %v2347
    %v2349 = vpop.f32.mrb[0].mxu0
    %v2350 = vpop.f32.mrb[0].mxu0
    %2351 = vdwg.mxu0
    %2352 = vmatprep.subr.bf16.mxu0 %v660
    %2353 = vmatpush1.bf16.msra.mxu0 %v659
    %2354 = vmatprep.subr.bf16.mxu0 %v664
    %2355 = vmatpush1.bf16.msra.mxu0 %v663
    %2356 = vmatprep.subr.bf16.mxu0 %v668
    %2357 = vmatpush1.bf16.msra.mxu0 %v667
    %2358 = vmatprep.subr.bf16.mxu0 %v672
    %2359 = vmatpush1.bf16.msra.mxu0 %v671
    %2360 = vmatprep.subr.bf16.mxu0 %v676
    %2361 = vmatpush1.bf16.msra.mxu0 %v675
    %2362 = vmatprep.subr.bf16.mxu0 %v680
    %2363 = vmatpush1.bf16.msra.mxu0 %v679
    %2364 = vmatprep.subr.bf16.mxu0 %v684
    %2365 = vmatpush1.bf16.msra.mxu0 %v683
    %2366 = vmatprep.subr.bf16.mxu0 %v688
    %2367 = vmatpush1.bf16.msra.mxu0 %v687
    %2368 = vmatprep.subr.bf16.mxu0 0
    %2369 = vmatpush1.bf16.msra.mxu0 0
    %2370 = vmatprep.subr.bf16.mxu0 0
    %2371 = vmatpush1.bf16.msra.mxu0 0
    %2372 = vmatprep.subr.bf16.mxu0 0
    %2373 = vmatpush1.bf16.msra.mxu0 0
    %2374 = vmatprep.subr.bf16.mxu0 0
    %2375 = vmatpush1.bf16.msra.mxu0 0
    %2376 = vmatprep.subr.bf16.mxu0 0
    %2377 = vmatpush1.bf16.msra.mxu0 0
    %2378 = vmatprep.subr.bf16.mxu0 0
    %2379 = vmatpush1.bf16.msra.mxu0 0
    %2380 = vmatprep.subr.bf16.mxu0 0
    %2381 = vmatpush1.bf16.msra.mxu0 0
    %2382 = vmatprep.subr.bf16.mxu0 0
    %2383 = vmatpush1.bf16.msra.mxu0 0
    %2384 = vmatprep.mubr.bf16.mxu0 0
    %2385 = vmatmul.mubr.bf16.gmra.mrb[0].mxu0 %v2310
    %v2386 = vpop.f32.mrb[0].mxu0
    %v2387 = vadd.f32 0.0, %v2386
    %v2388 = vpop.f32.mrb[0].mxu0
    %v2389 = vadd.f32 0.0, %v2388
    %v2390 = vpop.f32.mrb[0].mxu0
    %v2391 = vpop.f32.mrb[0].mxu0
    %2392 = vdwg.mxu0
    %v2393 = vadd.f32 %v2219, %v2346
    %v2394 = vadd.f32 %v2220, %v2348
    %v2395 = vadd.f32 %v2221, %v2387
    %v2396 = vadd.f32 %v2222, %v2389
    %v2397 = vxor.u32 %v2306, 2147483648
    %v2398 = vxor.u32 %v2307, 2147483648
    %v2399 = vmul.f32 %v2397, 1.442695
    %v2400 = vpow.pop %v2399
    %v2401 = vmul.f32 %v2398, 1.442695
    %v2402 = vpow.pop %v2401
    %v2403 = vadd.f32 %v2400, 1.0
    %v2404 = vadd.f32 %v2402, 1.0
    %v2405 = vrcp.pop %v2403
    %v2406 = vmul.f32 1.0, %v2405
    %v2407 = vrcp.pop %v2404
    %v2408 = vmul.f32 1.0, %v2407
    %v2409 = vtanh.pop %v2308
    %v2410 = vxor.u32 %v2309, 2147483648
    %v2411 = vmul.f32 %v2410, 1.442695
    %v2412 = vpow.pop %v2411
    %v2413 = vadd.f32 %v2412, 1.0
    %v2414 = vrcp.pop %v2413
    %v2415 = vmul.f32 1.0, %v2414
    %v2416 = vmul.f32 %v2408, %v2164
    %v2417 = vmul.f32 %v2406, %v2409
    %v2418 = vadd.f32 %v2416, %v2417
    %v2419 = vtanh.pop %v2418
    %v2420 = vmul.f32 %v2415, %v2419
    %v2421 = vxor.u32 %v2393, 2147483648
    %v2422 = vxor.u32 %v2394, 2147483648
    %v2423 = vmul.f32 %v2421, 1.442695
    %v2424 = vpow.pop %v2423
    %v2425 = vmul.f32 %v2422, 1.442695
    %v2426 = vpow.pop %v2425
    %v2427 = vadd.f32 %v2424, 1.0
    %v2428 = vadd.f32 %v2426, 1.0
    %v2429 = vrcp.pop %v2427
    %v2430 = vmul.f32 1.0, %v2429
    %v2431 = vrcp.pop %v2428
    %v2432 = vmul.f32 1.0, %v2431
    %v2433 = vtanh.pop %v2395
    %v2434 = vxor.u32 %v2396, 2147483648
    %v2435 = vmul.f32 %v2434, 1.442695
    %v2436 = vpow.pop %v2435
    %v2437 = vadd.f32 %v2436, 1.0
    %v2438 = vrcp.pop %v2437
    %v2439 = vmul.f32 1.0, %v2438
    %v2440 = vmul.f32 %v2432, %v2188
    %v2441 = vmul.f32 %v2430, %v2433
    %v2442 = vadd.f32 %v2440, %v2441
    %v2443 = vtanh.pop %v2442
    %v2444 = vmul.f32 %v2439, %v2443
    %v2445 = vmul.f32 %v159, %v71
    %v2446 = vmul.f32 %v159, %v75
    %v2447 = vmul.f32 %v159, %v79
    %v2448 = vmul.f32 %v159, %v83
    %v2449 = vmul.f32 %v190, %v102
    %v2450 = vmul.f32 %v190, %v106
    %v2451 = vmul.f32 %v190, %v110
    %v2452 = vmul.f32 %v190, %v114
    %v2453 = vadd.f32 %v2445, %v2449
    %v2454 = vadd.f32 %v2446, %v2450
    %v2455 = vadd.f32 %v2447, %v2451
    %v2456 = vadd.f32 %v2448, %v2452
    %v2457 = vadd.f32 %v2453, %v133
    %v2458 = vadd.f32 %v2454, %v137
    %v2459 = vadd.f32 %v2455, %v141
    %v2460 = vadd.f32 %v2456, %v145
    %v2461 = vmul.f32 %v65, %v165
    %v2462 = vmul.f32 %v65, %v169
    %v2463 = vmul.f32 %v65, %v173
    %v2464 = vmul.f32 %v65, %v177
    %v2465 = vmul.f32 %v96, %v196
    %v2466 = vmul.f32 %v96, %v200
    %v2467 = vmul.f32 %v96, %v204
    %v2468 = vmul.f32 %v96, %v208
    %v2469 = vadd.f32 %v2461, %v2465
    %v2470 = vadd.f32 %v2462, %v2466
    %v2471 = vadd.f32 %v2463, %v2467
    %v2472 = vadd.f32 %v2464, %v2468
    %v2473 = vadd.f32 %v2469, %v227
    %v2474 = vadd.f32 %v2470, %v231
    %v2475 = vadd.f32 %v2471, %v235
    %v2476 = vadd.f32 %v2472, %v239
    %v2477 = vpack.c.bf16 %v2420, %v2420
    %2478 = vmatprep.subr.bf16.mxu0 %v378
    %2479 = vmatpush1.bf16.msra.mxu0 %v377
    %2480 = vmatprep.subr.bf16.mxu0 %v382
    %2481 = vmatpush1.bf16.msra.mxu0 %v381
    %2482 = vmatprep.subr.bf16.mxu0 %v386
    %2483 = vmatpush1.bf16.msra.mxu0 %v385
    %2484 = vmatprep.subr.bf16.mxu0 %v390
    %2485 = vmatpush1.bf16.msra.mxu0 %v389
    %2486 = vmatprep.subr.bf16.mxu0 %v394
    %2487 = vmatpush1.bf16.msra.mxu0 %v393
    %2488 = vmatprep.subr.bf16.mxu0 %v398
    %2489 = vmatpush1.bf16.msra.mxu0 %v397
    %2490 = vmatprep.subr.bf16.mxu0 %v402
    %2491 = vmatpush1.bf16.msra.mxu0 %v401
    %2492 = vmatprep.subr.bf16.mxu0 %v406
    %2493 = vmatpush1.bf16.msra.mxu0 %v405
    %2494 = vmatprep.subr.bf16.mxu0 0
    %2495 = vmatpush1.bf16.msra.mxu0 0
    %2496 = vmatprep.subr.bf16.mxu0 0
    %2497 = vmatpush1.bf16.msra.mxu0 0
    %2498 = vmatprep.subr.bf16.mxu0 0
    %2499 = vmatpush1.bf16.msra.mxu0 0
    %2500 = vmatprep.subr.bf16.mxu0 0
    %2501 = vmatpush1.bf16.msra.mxu0 0
    %2502 = vmatprep.subr.bf16.mxu0 0
    %2503 = vmatpush1.bf16.msra.mxu0 0
    %2504 = vmatprep.subr.bf16.mxu0 0
    %2505 = vmatpush1.bf16.msra.mxu0 0
    %2506 = vmatprep.subr.bf16.mxu0 0
    %2507 = vmatpush1.bf16.msra.mxu0 0
    %2508 = vmatprep.subr.bf16.mxu0 0
    %2509 = vmatpush1.bf16.msra.mxu0 0
    %2510 = vmatprep.mubr.bf16.mxu0 0
    %2511 = vmatmul.mubr.bf16.gmra.mrb[0].mxu0 %v2477
    %v2512 = vpop.f32.mrb[0].mxu0
    %v2513 = vadd.f32 0.0, %v2512
    %v2514 = vpop.f32.mrb[0].mxu0
    %v2515 = vadd.f32 0.0, %v2514
    %v2516 = vpop.f32.mrb[0].mxu0
    %v2517 = vpop.f32.mrb[0].mxu0
    %2518 = vdwg.mxu0
    %2519 = vmatprep.subr.bf16.mxu0 %v380
    %2520 = vmatpush1.bf16.msra.mxu0 %v379
    %2521 = vmatprep.subr.bf16.mxu0 %v384
    %2522 = vmatpush1.bf16.msra.mxu0 %v383
    %2523 = vmatprep.subr.bf16.mxu0 %v388
    %2524 = vmatpush1.bf16.msra.mxu0 %v387
    %2525 = vmatprep.subr.bf16.mxu0 %v392
    %2526 = vmatpush1.bf16.msra.mxu0 %v391
    %2527 = vmatprep.subr.bf16.mxu0 %v396
    %2528 = vmatpush1.bf16.msra.mxu0 %v395
    %2529 = vmatprep.subr.bf16.mxu0 %v400
    %2530 = vmatpush1.bf16.msra.mxu0 %v399
    %2531 = vmatprep.subr.bf16.mxu0 %v404
    %2532 = vmatpush1.bf16.msra.mxu0 %v403
    %2533 = vmatprep.subr.bf16.mxu0 %v408
    %2534 = vmatpush1.bf16.msra.mxu0 %v407
    %2535 = vmatprep.subr.bf16.mxu0 0
    %2536 = vmatpush1.bf16.msra.mxu0 0
    %2537 = vmatprep.subr.bf16.mxu0 0
    %2538 = vmatpush1.bf16.msra.mxu0 0
    %2539 = vmatprep.subr.bf16.mxu0 0
    %2540 = vmatpush1.bf16.msra.mxu0 0
    %2541 = vmatprep.subr.bf16.mxu0 0
    %2542 = vmatpush1.bf16.msra.mxu0 0
    %2543 = vmatprep.subr.bf16.mxu0 0
    %2544 = vmatpush1.bf16.msra.mxu0 0
    %2545 = vmatprep.subr.bf16.mxu0 0
    %2546 = vmatpush1.bf16.msra.mxu0 0
    %2547 = vmatprep.subr.bf16.mxu0 0
    %2548 = vmatpush1.bf16.msra.mxu0 0
    %2549 = vmatprep.subr.bf16.mxu0 0
    %2550 = vmatpush1.bf16.msra.mxu0 0
    %2551 = vmatprep.mubr.bf16.mxu0 0
    %2552 = vmatmul.mubr.bf16.gmra.mrb[0].mxu0 %v2477
    %v2553 = vpop.f32.mrb[0].mxu0
    %v2554 = vadd.f32 0.0, %v2553
    %v2555 = vpop.f32.mrb[0].mxu0
    %v2556 = vadd.f32 0.0, %v2555
    %v2557 = vpop.f32.mrb[0].mxu0
    %v2558 = vpop.f32.mrb[0].mxu0
    %2559 = vdwg.mxu0
    %v2560 = vadd.f32 %v2457, %v2513
    %v2561 = vadd.f32 %v2458, %v2515
    %v2562 = vadd.f32 %v2459, %v2554
    %v2563 = vadd.f32 %v2460, %v2556
    %v2564 = vpack.c.bf16 %v2444, %v2444
    %2565 = vmatprep.subr.bf16.mxu0 %v658
    %2566 = vmatpush1.bf16.msra.mxu0 %v657
    %2567 = vmatprep.subr.bf16.mxu0 %v662
    %2568 = vmatpush1.bf16.msra.mxu0 %v661
    %2569 = vmatprep.subr.bf16.mxu0 %v666
    %2570 = vmatpush1.bf16.msra.mxu0 %v665
    %2571 = vmatprep.subr.bf16.mxu0 %v670
    %2572 = vmatpush1.bf16.msra.mxu0 %v669
    %2573 = vmatprep.subr.bf16.mxu0 %v674
    %2574 = vmatpush1.bf16.msra.mxu0 %v673
    %2575 = vmatprep.subr.bf16.mxu0 %v678
    %2576 = vmatpush1.bf16.msra.mxu0 %v677
    %2577 = vmatprep.subr.bf16.mxu0 %v682
    %2578 = vmatpush1.bf16.msra.mxu0 %v681
    %2579 = vmatprep.subr.bf16.mxu0 %v686
    %2580 = vmatpush1.bf16.msra.mxu0 %v685
    %2581 = vmatprep.subr.bf16.mxu0 0
    %2582 = vmatpush1.bf16.msra.mxu0 0
    %2583 = vmatprep.subr.bf16.mxu0 0
    %2584 = vmatpush1.bf16.msra.mxu0 0
    %2585 = vmatprep.subr.bf16.mxu0 0
    %2586 = vmatpush1.bf16.msra.mxu0 0
    %2587 = vmatprep.subr.bf16.mxu0 0
    %2588 = vmatpush1.bf16.msra.mxu0 0
    %2589 = vmatprep.subr.bf16.mxu0 0
    %2590 = vmatpush1.bf16.msra.mxu0 0
    %2591 = vmatprep.subr.bf16.mxu0 0
    %2592 = vmatpush1.bf16.msra.mxu0 0
    %2593 = vmatprep.subr.bf16.mxu0 0
    %2594 = vmatpush1.bf16.msra.mxu0 0
    %2595 = vmatprep.subr.bf16.mxu0 0
    %2596 = vmatpush1.bf16.msra.mxu0 0
    %2597 = vmatprep.mubr.bf16.mxu0 0
    %2598 = vmatmul.mubr.bf16.gmra.mrb[0].mxu0 %v2564
    %v2599 = vpop.f32.mrb[0].mxu0
    %v2600 = vadd.f32 0.0, %v2599
    %v2601 = vpop.f32.mrb[0].mxu0
    %v2602 = vadd.f32 0.0, %v2601
    %v2603 = vpop.f32.mrb[0].mxu0
    %v2604 = vpop.f32.mrb[0].mxu0
    %2605 = vdwg.mxu0
    %2606 = vmatprep.subr.bf16.mxu0 %v660
    %2607 = vmatpush1.bf16.msra.mxu0 %v659
    %2608 = vmatprep.subr.bf16.mxu0 %v664
    %2609 = vmatpush1.bf16.msra.mxu0 %v663
    %2610 = vmatprep.subr.bf16.mxu0 %v668
    %2611 = vmatpush1.bf16.msra.mxu0 %v667
    %2612 = vmatprep.subr.bf16.mxu0 %v672
    %2613 = vmatpush1.bf16.msra.mxu0 %v671
    %2614 = vmatprep.subr.bf16.mxu0 %v676
    %2615 = vmatpush1.bf16.msra.mxu0 %v675
    %2616 = vmatprep.subr.bf16.mxu0 %v680
    %2617 = vmatpush1.bf16.msra.mxu0 %v679
    %2618 = vmatprep.subr.bf16.mxu0 %v684
    %2619 = vmatpush1.bf16.msra.mxu0 %v683
    %2620 = vmatprep.subr.bf16.mxu0 %v688
    %2621 = vmatpush1.bf16.msra.mxu0 %v687
    %2622 = vmatprep.subr.bf16.mxu0 0
    %2623 = vmatpush1.bf16.msra.mxu0 0
    %2624 = vmatprep.subr.bf16.mxu0 0
    %2625 = vmatpush1.bf16.msra.mxu0 0
    %2626 = vmatprep.subr.bf16.mxu0 0
    %2627 = vmatpush1.bf16.msra.mxu0 0
    %2628 = vmatprep.subr.bf16.mxu0 0
    %2629 = vmatpush1.bf16.msra.mxu0 0
    %2630 = vmatprep.subr.bf16.mxu0 0
    %2631 = vmatpush1.bf16.msra.mxu0 0
    %2632 = vmatprep.subr.bf16.mxu0 0
    %2633 = vmatpush1.bf16.msra.mxu0 0
    %2634 = vmatprep.subr.bf16.mxu0 0
    %2635 = vmatpush1.bf16.msra.mxu0 0
    %2636 = vmatprep.subr.bf16.mxu0 0
    %2637 = vmatpush1.bf16.msra.mxu0 0
    %2638 = vmatprep.mubr.bf16.mxu0 0
    %2639 = vmatmul.mubr.bf16.gmra.mrb[0].mxu0 %v2564
    %v2640 = vpop.f32.mrb[0].mxu0
    %v2641 = vadd.f32 0.0, %v2640
    %v2642 = vpop.f32.mrb[0].mxu0
    %v2643 = vadd.f32 0.0, %v2642
    %v2644 = vpop.f32.mrb[0].mxu0
    %v2645 = vpop.f32.mrb[0].mxu0
    %2646 = vdwg.mxu0
    %v2647 = vadd.f32 %v2473, %v2600
    %v2648 = vadd.f32 %v2474, %v2602
    %v2649 = vadd.f32 %v2475, %v2641
    %v2650 = vadd.f32 %v2476, %v2643
    %v2651 = vxor.u32 %v2560, 2147483648
    %v2652 = vxor.u32 %v2561, 2147483648
    %v2653 = vmul.f32 %v2651, 1.442695
    %v2654 = vpow.pop %v2653
    %v2655 = vmul.f32 %v2652, 1.442695
    %v2656 = vpow.pop %v2655
    %v2657 = vadd.f32 %v2654, 1.0
    %v2658 = vadd.f32 %v2656, 1.0
    %v2659 = vrcp.pop %v2657
    %v2660 = vmul.f32 1.0, %v2659
    %v2661 = vrcp.pop %v2658
    %v2662 = vmul.f32 1.0, %v2661
    %v2663 = vtanh.pop %v2562
    %v2664 = vxor.u32 %v2563, 2147483648
    %v2665 = vmul.f32 %v2664, 1.442695
    %v2666 = vpow.pop %v2665
    %v2667 = vadd.f32 %v2666, 1.0
    %v2668 = vrcp.pop %v2667
    %v2669 = vmul.f32 1.0, %v2668
    %v2670 = vmul.f32 %v2662, %v2418
    %v2671 = vmul.f32 %v2660, %v2663
    %v2672 = vadd.f32 %v2670, %v2671
    %v2673 = vtanh.pop %v2672
    %v2674 = vmul.f32 %v2669, %v2673
    %v2675 = vxor.u32 %v2647, 2147483648
    %v2676 = vxor.u32 %v2648, 2147483648
    %v2677 = vmul.f32 %v2675, 1.442695
    %v2678 = vpow.pop %v2677
    %v2679 = vmul.f32 %v2676, 1.442695
    %v2680 = vpow.pop %v2679
    %v2681 = vadd.f32 %v2678, 1.0
    %v2682 = vadd.f32 %v2680, 1.0
    %v2683 = vrcp.pop %v2681
    %v2684 = vmul.f32 1.0, %v2683
    %v2685 = vrcp.pop %v2682
    %v2686 = vmul.f32 1.0, %v2685
    %v2687 = vtanh.pop %v2649
    %v2688 = vxor.u32 %v2650, 2147483648
    %v2689 = vmul.f32 %v2688, 1.442695
    %v2690 = vpow.pop %v2689
    %v2691 = vadd.f32 %v2690, 1.0
    %v2692 = vrcp.pop %v2691
    %v2693 = vmul.f32 1.0, %v2692
    %v2694 = vmul.f32 %v2686, %v2442
    %v2695 = vmul.f32 %v2684, %v2687
    %v2696 = vadd.f32 %v2694, %v2695
    %v2697 = vtanh.pop %v2696
    %v2698 = vmul.f32 %v2693, %v2697
    %v2699 = vld [vmem:[%s4] sm:$0x1]
    %v2700 = vlaneseq
    %v2701 = vshrl.u32 %v2700, 7
    %v2702 = vsub.s32 0, %v2701
    %v2703 = vrot.slane %v2699, %v2702
    %v2704 = vmul.f32 %v830, %v2703
    %v2705 = vmul.f32 %v1106, %v2703
    %v2706 = vmul.f32 %v1382, %v2703
    %v2707 = vmul.f32 %v1658, %v2703
    %v2708 = vmul.f32 %v1912, %v2703
    %v2709 = vmul.f32 %v2166, %v2703
    %v2710 = vmul.f32 %v2420, %v2703
    %v2711 = vmul.f32 %v2674, %v2703
    %vm2712 = vcmask 1041408
    %v2713 = vsel %vm2712, %v2704, 0.0
    %2714 = vadd.xlane.f32.xlu0 %v2713
    %v2715 = vpop.xlane.xlu0 %2714
    %v2716 = vsel %vm2712, %v2705, 0.0
    %2717 = vadd.xlane.f32.xlu0 %v2716
    %v2718 = vpop.xlane.xlu0 %2717
    %v2719 = vsel %vm2712, %v2706, 0.0
    %2720 = vadd.xlane.f32.xlu0 %v2719
    %v2721 = vpop.xlane.xlu0 %2720
    %v2722 = vsel %vm2712, %v2707, 0.0
    %2723 = vadd.xlane.f32.xlu0 %v2722
    %v2724 = vpop.xlane.xlu0 %2723
    %v2725 = vsel %vm2712, %v2708, 0.0
    %2726 = vadd.xlane.f32.xlu0 %v2725
    %v2727 = vpop.xlane.xlu0 %2726
    %v2728 = vsel %vm2712, %v2709, 0.0
    %2729 = vadd.xlane.f32.xlu0 %v2728
    %v2730 = vpop.xlane.xlu0 %2729
    %v2731 = vsel %vm2712, %v2710, 0.0
    %2732 = vadd.xlane.f32.xlu0 %v2731
    %v2733 = vpop.xlane.xlu0 %2732
    %v2734 = vsel %vm2712, %v2711, 0.0
    %2735 = vadd.xlane.f32.xlu0 %v2734
    %v2736 = vpop.xlane.xlu0 %2735
    %v2737 = vld [vmem:[%s4 + $0x1] sm:$0x1]
    %v2738 = vlaneseq
    %v2739 = vshrl.u32 %v2738, 7
    %v2740 = vsub.s32 0, %v2739
    %v2741 = vrot.slane %v2737, %v2740
    %v2742 = vmul.f32 %v2698, %v2741
    %v2743 = vmul.f32 %v2444, %v2741
    %v2744 = vmul.f32 %v2190, %v2741
    %v2745 = vmul.f32 %v1936, %v2741
    %v2746 = vmul.f32 %v1682, %v2741
    %v2747 = vmul.f32 %v1406, %v2741
    %v2748 = vmul.f32 %v1130, %v2741
    %v2749 = vmul.f32 %v854, %v2741
    %v2750 = vsel %vm2712, %v2742, 0.0
    %2751 = vadd.xlane.f32.xlu0 %v2750
    %v2752 = vpop.xlane.xlu0 %2751
    %v2753 = vsel %vm2712, %v2743, 0.0
    %2754 = vadd.xlane.f32.xlu0 %v2753
    %v2755 = vpop.xlane.xlu0 %2754
    %v2756 = vsel %vm2712, %v2744, 0.0
    %2757 = vadd.xlane.f32.xlu0 %v2756
    %v2758 = vpop.xlane.xlu0 %2757
    %v2759 = vsel %vm2712, %v2745, 0.0
    %2760 = vadd.xlane.f32.xlu0 %v2759
    %v2761 = vpop.xlane.xlu0 %2760
    %v2762 = vsel %vm2712, %v2746, 0.0
    %2763 = vadd.xlane.f32.xlu0 %v2762
    %v2764 = vpop.xlane.xlu0 %2763
    %v2765 = vsel %vm2712, %v2747, 0.0
    %2766 = vadd.xlane.f32.xlu0 %v2765
    %v2767 = vpop.xlane.xlu0 %2766
    %v2768 = vsel %vm2712, %v2748, 0.0
    %2769 = vadd.xlane.f32.xlu0 %v2768
    %v2770 = vpop.xlane.xlu0 %2769
    %v2771 = vsel %vm2712, %v2749, 0.0
    %2772 = vadd.xlane.f32.xlu0 %v2771
    %v2773 = vpop.xlane.xlu0 %2772
    %v2774 = vadd.f32 %v2715, %v2752
    %v2775 = vadd.f32 %v2718, %v2755
    %v2776 = vadd.f32 %v2721, %v2758
    %v2777 = vadd.f32 %v2724, %v2761
    %v2778 = vadd.f32 %v2727, %v2764
    %v2779 = vadd.f32 %v2730, %v2767
    %v2780 = vadd.f32 %v2733, %v2770
    %v2781 = vadd.f32 %v2736, %v2773
    %s2782 = sld [smem:[#allocation5]]
    %v2783 = vstv %s2782
    %v2784 = vadd.f32 %v2774, %v2783
    %v2785 = vadd.f32 %v2775, %v2783
    %v2786 = vadd.f32 %v2776, %v2783
    %v2787 = vadd.f32 %v2777, %v2783
    %v2788 = vadd.f32 %v2778, %v2783
    %v2789 = vadd.f32 %v2779, %v2783
    %v2790 = vadd.f32 %v2780, %v2783
    %v2791 = vadd.f32 %v2781, %v2783
    %v2792 = vld [vmem:[%s4 + $0x2] sm:$0x1]
    %v2793 = vlaneseq
    %v2794 = vshrl.u32 %v2793, 7
    %v2795 = vsub.s32 0, %v2794
    %v2796 = vrot.slane %v2792, %v2795
    %v2797 = vmul.f32 %v830, %v2796
    %v2798 = vmul.f32 %v1106, %v2796
    %v2799 = vmul.f32 %v1382, %v2796
    %v2800 = vmul.f32 %v1658, %v2796
    %v2801 = vmul.f32 %v1912, %v2796
    %v2802 = vmul.f32 %v2166, %v2796
    %v2803 = vmul.f32 %v2420, %v2796
    %v2804 = vmul.f32 %v2674, %v2796
    %v2805 = vsel %vm2712, %v2797, 0.0
    %2806 = vadd.xlane.f32.xlu0 %v2805
    %v2807 = vpop.xlane.xlu0 %2806
    %v2808 = vsel %vm2712, %v2798, 0.0
    %2809 = vadd.xlane.f32.xlu0 %v2808
    %v2810 = vpop.xlane.xlu0 %2809
    %v2811 = vsel %vm2712, %v2799, 0.0
    %2812 = vadd.xlane.f32.xlu0 %v2811
    %v2813 = vpop.xlane.xlu0 %2812
    %v2814 = vsel %vm2712, %v2800, 0.0
    %2815 = vadd.xlane.f32.xlu0 %v2814
    %v2816 = vpop.xlane.xlu0 %2815
    %v2817 = vsel %vm2712, %v2801, 0.0
    %2818 = vadd.xlane.f32.xlu0 %v2817
    %v2819 = vpop.xlane.xlu0 %2818
    %v2820 = vsel %vm2712, %v2802, 0.0
    %2821 = vadd.xlane.f32.xlu0 %v2820
    %v2822 = vpop.xlane.xlu0 %2821
    %v2823 = vsel %vm2712, %v2803, 0.0
    %2824 = vadd.xlane.f32.xlu0 %v2823
    %v2825 = vpop.xlane.xlu0 %2824
    %v2826 = vsel %vm2712, %v2804, 0.0
    %2827 = vadd.xlane.f32.xlu0 %v2826
    %v2828 = vpop.xlane.xlu0 %2827
    %v2829 = vld [vmem:[%s4 + $0x3] sm:$0x1]
    %v2830 = vlaneseq
    %v2831 = vshrl.u32 %v2830, 7
    %v2832 = vsub.s32 0, %v2831
    %v2833 = vrot.slane %v2829, %v2832
    %v2834 = vmul.f32 %v2698, %v2833
    %v2835 = vmul.f32 %v2444, %v2833
    %v2836 = vmul.f32 %v2190, %v2833
    %v2837 = vmul.f32 %v1936, %v2833
    %v2838 = vmul.f32 %v1682, %v2833
    %v2839 = vmul.f32 %v1406, %v2833
    %v2840 = vmul.f32 %v1130, %v2833
    %v2841 = vmul.f32 %v854, %v2833
    %v2842 = vsel %vm2712, %v2834, 0.0
    %2843 = vadd.xlane.f32.xlu0 %v2842
    %v2844 = vpop.xlane.xlu0 %2843
    %v2845 = vsel %vm2712, %v2835, 0.0
    %2846 = vadd.xlane.f32.xlu0 %v2845
    %v2847 = vpop.xlane.xlu0 %2846
    %v2848 = vsel %vm2712, %v2836, 0.0
    %2849 = vadd.xlane.f32.xlu0 %v2848
    %v2850 = vpop.xlane.xlu0 %2849
    %v2851 = vsel %vm2712, %v2837, 0.0
    %2852 = vadd.xlane.f32.xlu0 %v2851
    %v2853 = vpop.xlane.xlu0 %2852
    %v2854 = vsel %vm2712, %v2838, 0.0
    %2855 = vadd.xlane.f32.xlu0 %v2854
    %v2856 = vpop.xlane.xlu0 %2855
    %v2857 = vsel %vm2712, %v2839, 0.0
    %2858 = vadd.xlane.f32.xlu0 %v2857
    %v2859 = vpop.xlane.xlu0 %2858
    %v2860 = vsel %vm2712, %v2840, 0.0
    %2861 = vadd.xlane.f32.xlu0 %v2860
    %v2862 = vpop.xlane.xlu0 %2861
    %v2863 = vsel %vm2712, %v2841, 0.0
    %2864 = vadd.xlane.f32.xlu0 %v2863
    %v2865 = vpop.xlane.xlu0 %2864
    %v2866 = vadd.f32 %v2807, %v2844
    %v2867 = vadd.f32 %v2810, %v2847
    %v2868 = vadd.f32 %v2813, %v2850
    %v2869 = vadd.f32 %v2816, %v2853
    %v2870 = vadd.f32 %v2819, %v2856
    %v2871 = vadd.f32 %v2822, %v2859
    %v2872 = vadd.f32 %v2825, %v2862
    %v2873 = vadd.f32 %v2828, %v2865
    %s2874 = sld [smem:[#allocation5 + $0x1]]
    %v2875 = vstv %s2874
    %v2876 = vadd.f32 %v2866, %v2875
    %v2877 = vadd.f32 %v2867, %v2875
    %v2878 = vadd.f32 %v2868, %v2875
    %v2879 = vadd.f32 %v2869, %v2875
    %v2880 = vadd.f32 %v2870, %v2875
    %v2881 = vadd.f32 %v2871, %v2875
    %v2882 = vadd.f32 %v2872, %v2875
    %v2883 = vadd.f32 %v2873, %v2875
    %2892 = vrot.lane.b32.xlu0 %v2698, 32
    %v2893 = vpop.permute.xlu0 %2892
    %2894 = vrot.lane.b32.xlu0 %v2444, 32
    %v2895 = vpop.permute.xlu0 %2894
    %2896 = vrot.lane.b32.xlu0 %v2190, 32
    %v2897 = vpop.permute.xlu0 %2896
    %2898 = vrot.lane.b32.xlu0 %v1936, 32
    %v2899 = vpop.permute.xlu0 %2898
    %2900 = vrot.lane.b32.xlu0 %v1682, 32
    %v2901 = vpop.permute.xlu0 %2900
    %2902 = vrot.lane.b32.xlu0 %v1406, 32
    %v2903 = vpop.permute.xlu0 %2902
    %2904 = vrot.lane.b32.xlu0 %v1130, 32
    %v2905 = vpop.permute.xlu0 %2904
    %2906 = vrot.lane.b32.xlu0 %v854, 32
    %v2907 = vpop.permute.xlu0 %2906
    %vm2916 = vcmask 261120
    %v2917 = vsel %vm2916, %v830, %v2893
    %v2918 = vsel %vm2916, %v1106, %v2895
    %v2919 = vsel %vm2916, %v1382, %v2897
    %v2920 = vsel %vm2916, %v1658, %v2899
    %v2921 = vsel %vm2916, %v1912, %v2901
    %v2922 = vsel %vm2916, %v2166, %v2903
    %v2923 = vsel %vm2916, %v2420, %v2905
    %v2924 = vsel %vm2916, %v2674, %v2907
    %2932 = vrot.lane.b32.xlu0 0.0, 64
    %v2933 = vpop.permute.xlu0 %2932
    %2934 = vrot.lane.b32.xlu0 %v2917, 64
    %v2935 = vpop.permute.xlu0 %2934
    %2936 = vrot.lane.b32.xlu0 %v2918, 64
    %v2937 = vpop.permute.xlu0 %2936
    %2938 = vrot.lane.b32.xlu0 %v2919, 64
    %v2939 = vpop.permute.xlu0 %2938
    %2940 = vrot.lane.b32.xlu0 %v2920, 64
    %v2941 = vpop.permute.xlu0 %2940
    %2942 = vrot.lane.b32.xlu0 %v2921, 64
    %v2943 = vpop.permute.xlu0 %2942
    %2944 = vrot.lane.b32.xlu0 %v2922, 64
    %v2945 = vpop.permute.xlu0 %2944
    %2955 = vrot.lane.b32.xlu0 %v2923, 64
    %v2956 = vpop.permute.xlu0 %2955
    %2957 = vrot.lane.b32.xlu0 %v2924, 64
    %v2958 = vpop.permute.xlu0 %2957
    %vm2961 = vcmask 523264
    %v2962 = vsel %vm2961, 0.0, %v2933
    %v2963 = vsel %vm2961, 0.0, %v2935
    %v2964 = vsel %vm2961, %v2917, %v2937
    %v2965 = vsel %vm2961, %v2918, %v2939
    %v2966 = vsel %vm2961, %v2919, %v2941
    %v2967 = vsel %vm2961, %v2920, %v2943
    %v2968 = vsel %vm2961, %v2921, %v2945
    %v2969 = vsel %vm2961, %v2922, %v2956
    %v2970 = vsel %vm2961, %v2923, %v2958
    %v2971 = vsel %vm2961, %v2924, %v2933
    %v2972 = vsel %vm2961, %v2920, 0.0
    %v2973 = vsel %vm2961, %v2921, 0.0
    %v2974 = vsel %vm2961, %v2922, 0.0
    %v2975 = vsel %vm2961, %v2923, 0.0
    %v2976 = vsel %vm2961, %v2924, 0.0
    %v2992 = vcombine.low %v2962, %v2963
    %v2993 = vcombine.low %v2965, %v2972
    %v2995 = vunpack.c.l.s4 1983009808
    %v2996 = vunpack.c.0.s8 %v2995
    %v2997 = vlaneseq
    %v2998 = vshrl.u32 %v2997, 7
    %v2999 = vsub.s32 %v2996, %v2998
    %v3000 = vrot.slane %v2992, %v2999
    %v3002 = vunpack.c.l.s4 1983009808
    %v3003 = vunpack.c.0.s8 %v3002
    %v3004 = vlaneseq
    %v3005 = vshrl.u32 %v3004, 7
    %v3006 = vsub.s32 %v3003, %v3005
    %v3007 = vrot.slane %v2993, %v3006
    %v3008 = vcombine.low %v3000, %v3007
    %v3009 = vcombine.low %v2962, %v2964
    %v3010 = vcombine.low %v2966, %v2973
    %v3012 = vunpack.c.l.s4 1983009808
    %v3013 = vunpack.c.0.s8 %v3012
    %v3014 = vlaneseq
    %v3015 = vshrl.u32 %v3014, 7
    %v3016 = vsub.s32 %v3013, %v3015
    %v3017 = vrot.slane %v3009, %v3016
    %v3019 = vunpack.c.l.s4 1983009808
    %v3020 = vunpack.c.0.s8 %v3019
    %v3021 = vlaneseq
    %v3022 = vshrl.u32 %v3021, 7
    %v3023 = vsub.s32 %v3020, %v3022
    %v3024 = vrot.slane %v3010, %v3023
    %v3025 = vcombine.low %v3017, %v3024
    %v3026 = vcombine.low %v2963, %v2965
    %v3027 = vcombine.low %v2967, %v2974
    %v3029 = vunpack.c.l.s4 1983009808
    %v3030 = vunpack.c.0.s8 %v3029
    %v3031 = vlaneseq
    %v3032 = vshrl.u32 %v3031, 7
    %v3033 = vsub.s32 %v3030, %v3032
    %v3034 = vrot.slane %v3026, %v3033
    %v3036 = vunpack.c.l.s4 1983009808
    %v3037 = vunpack.c.0.s8 %v3036
    %v3038 = vlaneseq
    %v3039 = vshrl.u32 %v3038, 7
    %v3040 = vsub.s32 %v3037, %v3039
    %v3041 = vrot.slane %v3027, %v3040
    %v3042 = vcombine.low %v3034, %v3041
    %v3043 = vcombine.low %v2964, %v2966
    %v3044 = vcombine.low %v2968, %v2975
    %v3046 = vunpack.c.l.s4 1983009808
    %v3047 = vunpack.c.0.s8 %v3046
    %v3048 = vlaneseq
    %v3049 = vshrl.u32 %v3048, 7
    %v3050 = vsub.s32 %v3047, %v3049
    %v3051 = vrot.slane %v3043, %v3050
    %v3053 = vunpack.c.l.s4 1983009808
    %v3054 = vunpack.c.0.s8 %v3053
    %v3055 = vlaneseq
    %v3056 = vshrl.u32 %v3055, 7
    %v3057 = vsub.s32 %v3054, %v3056
    %v3058 = vrot.slane %v3044, %v3057
    %v3059 = vcombine.low %v3051, %v3058
    %v3060 = vcombine.low %v2965, %v2967
    %v3061 = vcombine.low %v2969, %v2976
    %v3063 = vunpack.c.l.s4 1983009808
    %v3064 = vunpack.c.0.s8 %v3063
    %v3065 = vlaneseq
    %v3066 = vshrl.u32 %v3065, 7
    %v3067 = vsub.s32 %v3064, %v3066
    %v3068 = vrot.slane %v3060, %v3067
    %v3070 = vunpack.c.l.s4 1983009808
    %v3071 = vunpack.c.0.s8 %v3070
    %v3072 = vlaneseq
    %v3073 = vshrl.u32 %v3072, 7
    %v3074 = vsub.s32 %v3071, %v3073
    %v3075 = vrot.slane %v3061, %v3074
    %v3076 = vcombine.low %v3068, %v3075
    %v3077 = vcombine.low %v2966, %v2968
    %v3078 = vcombine.low %v2970, 0.0
    %v3080 = vunpack.c.l.s4 1983009808
    %v3081 = vunpack.c.0.s8 %v3080
    %v3082 = vlaneseq
    %v3083 = vshrl.u32 %v3082, 7
    %v3084 = vsub.s32 %v3081, %v3083
    %v3085 = vrot.slane %v3077, %v3084
    %v3087 = vunpack.c.l.s4 1983009808
    %v3088 = vunpack.c.0.s8 %v3087
    %v3089 = vlaneseq
    %v3090 = vshrl.u32 %v3089, 7
    %v3091 = vsub.s32 %v3088, %v3090
    %v3092 = vrot.slane %v3078, %v3091
    %v3093 = vcombine.low %v3085, %v3092
    %v3094 = vcombine.low %v2967, %v2969
    %v3095 = vcombine.low %v2971, 0.0
    %v3097 = vunpack.c.l.s4 1983009808
    %v3098 = vunpack.c.0.s8 %v3097
    %v3099 = vlaneseq
    %v3100 = vshrl.u32 %v3099, 7
    %v3101 = vsub.s32 %v3098, %v3100
    %v3102 = vrot.slane %v3094, %v3101
    %v3104 = vunpack.c.l.s4 1983009808
    %v3105 = vunpack.c.0.s8 %v3104
    %v3106 = vlaneseq
    %v3107 = vshrl.u32 %v3106, 7
    %v3108 = vsub.s32 %v3105, %v3107
    %v3109 = vrot.slane %v3095, %v3108
    %v3110 = vcombine.low %v3102, %v3109
    %v3111 = vcombine.low %v2968, %v2970
    %v3112 = vcombine.low %v2962, 0.0
    %v3114 = vunpack.c.l.s4 1983009808
    %v3115 = vunpack.c.0.s8 %v3114
    %v3116 = vlaneseq
    %v3117 = vshrl.u32 %v3116, 7
    %v3118 = vsub.s32 %v3115, %v3117
    %v3119 = vrot.slane %v3111, %v3118
    %v3121 = vunpack.c.l.s4 1983009808
    %v3122 = vunpack.c.0.s8 %v3121
    %v3123 = vlaneseq
    %v3124 = vshrl.u32 %v3123, 7
    %v3125 = vsub.s32 %v3122, %v3124
    %v3126 = vrot.slane %v3112, %v3125
    %v3127 = vcombine.low %v3119, %v3126
    %v3128 = vcombine.low %v3008, %v3025
    %v3129 = vcombine.high %v3008, %v3025
    %v3130 = vcombine.low %v3042, %v3059
    %v3131 = vcombine.high %v3042, %v3059
    %v3133 = vunpack.c.l.s4 1983009808
    %v3134 = vunpack.c.0.s8 %v3133
    %v3135 = vlaneseq
    %v3136 = vshrl.u32 %v3135, 7
    %v3137 = vsub.s32 %v3134, %v3136
    %v3138 = vrot.slane %v3128, %v3137
    %v3140 = vunpack.c.l.s4 1983009808
    %v3141 = vunpack.c.0.s8 %v3140
    %v3142 = vlaneseq
    %v3143 = vshrl.u32 %v3142, 7
    %v3144 = vsub.s32 %v3141, %v3143
    %v3145 = vrot.slane %v3129, %v3144
    %v3147 = vunpack.c.l.s4 1983009808
    %v3148 = vunpack.c.0.s8 %v3147
    %v3149 = vlaneseq
    %v3150 = vshrl.u32 %v3149, 7
    %v3151 = vsub.s32 %v3148, %v3150
    %v3152 = vrot.slane %v3130, %v3151
    %v3154 = vunpack.c.l.s4 1983009808
    %v3155 = vunpack.c.0.s8 %v3154
    %v3156 = vlaneseq
    %v3157 = vshrl.u32 %v3156, 7
    %v3158 = vsub.s32 %v3155, %v3157
    %v3159 = vrot.slane %v3131, %v3158
    %v3160 = vcombine.low %v3138, %v3152
    %v3161 = vcombine.high %v3138, %v3152
    %v3162 = vcombine.low %v3145, %v3159
    %v3163 = vcombine.high %v3145, %v3159
    %v3164 = vcombine.low %v3076, %v3093
    %v3165 = vcombine.high %v3076, %v3093
    %v3166 = vcombine.low %v3110, %v3127
    %v3167 = vcombine.high %v3110, %v3127
    %v3169 = vunpack.c.l.s4 1983009808
    %v3170 = vunpack.c.0.s8 %v3169
    %v3171 = vlaneseq
    %v3172 = vshrl.u32 %v3171, 7
    %v3173 = vsub.s32 %v3170, %v3172
    %v3174 = vrot.slane %v3164, %v3173
    %v3176 = vunpack.c.l.s4 1983009808
    %v3177 = vunpack.c.0.s8 %v3176
    %v3178 = vlaneseq
    %v3179 = vshrl.u32 %v3178, 7
    %v3180 = vsub.s32 %v3177, %v3179
    %v3181 = vrot.slane %v3165, %v3180
    %v3183 = vunpack.c.l.s4 1983009808
    %v3184 = vunpack.c.0.s8 %v3183
    %v3185 = vlaneseq
    %v3186 = vshrl.u32 %v3185, 7
    %v3187 = vsub.s32 %v3184, %v3186
    %v3188 = vrot.slane %v3166, %v3187
    %v3190 = vunpack.c.l.s4 1983009808
    %v3191 = vunpack.c.0.s8 %v3190
    %v3192 = vlaneseq
    %v3193 = vshrl.u32 %v3192, 7
    %v3194 = vsub.s32 %v3191, %v3193
    %v3195 = vrot.slane %v3167, %v3194
    %v3196 = vcombine.low %v3174, %v3188
    %v3197 = vcombine.high %v3174, %v3188
    %v3198 = vcombine.low %v3181, %v3195
    %v3199 = vcombine.high %v3181, %v3195
    %v3208 = vpack.c.bf16 %v3196, %v3160
    %v3209 = vpack.c.bf16 %v3197, %v3161
    %v3210 = vpack.c.bf16 %v3198, %v3162
    %v3211 = vpack.c.bf16 %v3199, %v3163
    %v3212 = vld [vmem:[%s5] sm:$0xf]
    %v3213 = vld [vmem:[%s5 + $0x4] sm:$0xf]
    %v3214 = vld [vmem:[%s5 + $0x8] sm:$0xf]
    %v3215 = vld [vmem:[%s5 + $0xc] sm:$0xf]
    %v3216 = vld [vmem:[%s5 + $0x10] sm:$0xf]
    %v3217 = vld [vmem:[%s5 + $0x14] sm:$0xf]
    %v3218 = vld [vmem:[%s5 + $0x18] sm:$0xf]
    %v3219 = vld [vmem:[%s5 + $0x1c] sm:$0xf]
    %v3220 = vld [vmem:[%s5 + $0x20] sm:$0xf]
    %v3221 = vld [vmem:[%s5 + $0x24] sm:$0xf]
    %v3222 = vld [vmem:[%s5 + $0x28] sm:$0xf]
    %v3223 = vld [vmem:[%s5 + $0x2c] sm:$0xf]
    %v3224 = vld [vmem:[%s5 + $0x30] sm:$0xf]
    %v3225 = vld [vmem:[%s5 + $0x34] sm:$0xf]
    %v3226 = vld [vmem:[%s5 + $0x38] sm:$0xf]
    %v3227 = vld [vmem:[%s5 + $0x3c] sm:$0xf]
    %v3228 = vld [vmem:[%s5 + $0x40] sm:$0xf]
    %v3229 = vld [vmem:[%s5 + $0x44] sm:$0xf]
    %v3230 = vld [vmem:[%s5 + $0x48] sm:$0xf]
    %v3231 = vld [vmem:[%s5 + $0x4c] sm:$0xf]
    %v3232 = vld [vmem:[%s5 + $0x50] sm:$0xf]
    %v3233 = vld [vmem:[%s5 + $0x54] sm:$0xf]
    %v3234 = vld [vmem:[%s5 + $0x58] sm:$0xf]
    %v3235 = vld [vmem:[%s5 + $0x5c] sm:$0xf]
    %v3236 = vld [vmem:[%s5 + $0x60] sm:$0xf]
    %v3237 = vld [vmem:[%s5 + $0x64] sm:$0xf]
    %v3238 = vld [vmem:[%s5 + $0x68] sm:$0xf]
    %v3239 = vld [vmem:[%s5 + $0x6c] sm:$0xf]
    %v3240 = vld [vmem:[%s5 + $0x70] sm:$0xf]
    %v3241 = vld [vmem:[%s5 + $0x74] sm:$0xf]
    %v3242 = vld [vmem:[%s5 + $0x78] sm:$0xf]
    %v3243 = vld [vmem:[%s5 + $0x7c] sm:$0xf]
    %v3244 = vld [vmem:[%s5 + $0x80] sm:$0xf]
    %v3245 = vld [vmem:[%s5 + $0x84] sm:$0xf]
    %v3246 = vld [vmem:[%s5 + $0x88] sm:$0xf]
    %v3247 = vld [vmem:[%s5 + $0x8c] sm:$0xf]
    %v3248 = vld [vmem:[%s5 + $0x90] sm:$0xf]
    %v3249 = vld [vmem:[%s5 + $0x94] sm:$0xf]
    %v3250 = vld [vmem:[%s5 + $0x98] sm:$0xf]
    %v3251 = vld [vmem:[%s5 + $0x9c] sm:$0xf]
    %v3252 = vld [vmem:[%s5 + $0xa0] sm:$0xf]
    %v3253 = vld [vmem:[%s5 + $0xa4] sm:$0xf]
    %v3254 = vld [vmem:[%s5 + $0xa8] sm:$0xf]
    %v3255 = vld [vmem:[%s5 + $0xac] sm:$0xf]
    %v3256 = vld [vmem:[%s5 + $0xb0] sm:$0xf]
    %v3257 = vld [vmem:[%s5 + $0xb4] sm:$0xf]
    %v3258 = vld [vmem:[%s5 + $0xb8] sm:$0xf]
    %v3259 = vld [vmem:[%s5 + $0xbc] sm:$0xf]
    %v3260 = vld [vmem:[%s5 + $0xc0] sm:$0xf]
    %v3261 = vld [vmem:[%s5 + $0xc4] sm:$0xf]
    %v3262 = vld [vmem:[%s5 + $0xc8] sm:$0xf]
    %v3263 = vld [vmem:[%s5 + $0xcc] sm:$0xf]
    %v3264 = vld [vmem:[%s5 + $0xd0] sm:$0xf]
    %v3265 = vld [vmem:[%s5 + $0xd4] sm:$0xf]
    %v3266 = vld [vmem:[%s5 + $0xd8] sm:$0xf]
    %v3267 = vld [vmem:[%s5 + $0xdc] sm:$0xf]
    %v3268 = vld [vmem:[%s5 + $0xe0] sm:$0xf]
    %v3269 = vld [vmem:[%s5 + $0xe4] sm:$0xf]
    %v3270 = vld [vmem:[%s5 + $0xe8] sm:$0xf]
    %v3271 = vld [vmem:[%s5 + $0xec] sm:$0xf]
    %v3272 = vld [vmem:[%s5 + $0xf0] sm:$0xf]
    %v3273 = vld [vmem:[%s5 + $0xf4] sm:$0xf]
    %v3274 = vld [vmem:[%s5 + $0xf8] sm:$0xf]
    %v3275 = vld [vmem:[%s5 + $0xfc] sm:$0xf]
    %v3276 = vld [vmem:[%s4 + $0x4] sm:$0x1]
    %v3277 = vlaneseq
    %v3278 = vshrl.u32 %v3277, 7
    %v3279 = vsub.s32 0, %v3278
    %v3280 = vrot.slane %v3276, %v3279
    %v3345 = vunpack.c.l.b16 %v3212
    %v3346 = vunpack.c.l.b16 %v3213
    %v3347 = vunpack.c.l.b16 %v3214
    %v3348 = vunpack.c.l.b16 %v3215
    %v3349 = vunpack.c.l.b16 %v3216
    %v3350 = vunpack.c.l.b16 %v3217
    %v3351 = vunpack.c.l.b16 %v3218
    %v3352 = vunpack.c.l.b16 %v3219
    %v3353 = vunpack.c.l.b16 %v3220
    %v3354 = vunpack.c.l.b16 %v3221
    %v3355 = vunpack.c.l.b16 %v3222
    %v3356 = vunpack.c.l.b16 %v3223
    %v3357 = vunpack.c.l.b16 %v3224
    %v3358 = vunpack.c.l.b16 %v3225
    %v3359 = vunpack.c.l.b16 %v3226
    %v3360 = vunpack.c.l.b16 %v3227
    %v3361 = vunpack.c.l.b16 %v3228
    %v3362 = vunpack.c.l.b16 %v3229
    %v3363 = vunpack.c.l.b16 %v3230
    %v3364 = vunpack.c.l.b16 %v3231
    %v3365 = vunpack.c.l.b16 %v3232
    %v3366 = vunpack.c.l.b16 %v3233
    %v3367 = vunpack.c.l.b16 %v3234
    %v3368 = vunpack.c.l.b16 %v3235
    %v3369 = vunpack.c.l.b16 %v3236
    %v3370 = vunpack.c.l.b16 %v3237
    %v3371 = vunpack.c.l.b16 %v3238
    %v3372 = vunpack.c.l.b16 %v3239
    %v3373 = vunpack.c.l.b16 %v3240
    %v3374 = vunpack.c.l.b16 %v3241
    %v3375 = vunpack.c.l.b16 %v3242
    %v3376 = vunpack.c.l.b16 %v3243
    %v3377 = vunpack.c.l.b16 %v3244
    %v3378 = vunpack.c.l.b16 %v3245
    %v3379 = vunpack.c.l.b16 %v3246
    %v3380 = vunpack.c.l.b16 %v3247
    %v3381 = vunpack.c.l.b16 %v3248
    %v3382 = vunpack.c.l.b16 %v3249
    %v3383 = vunpack.c.l.b16 %v3250
    %v3384 = vunpack.c.l.b16 %v3251
    %v3385 = vunpack.c.l.b16 %v3252
    %v3386 = vunpack.c.l.b16 %v3253
    %v3387 = vunpack.c.l.b16 %v3254
    %v3388 = vunpack.c.l.b16 %v3255
    %v3389 = vunpack.c.l.b16 %v3256
    %v3390 = vunpack.c.l.b16 %v3257
    %v3391 = vunpack.c.l.b16 %v3258
    %v3392 = vunpack.c.l.b16 %v3259
    %v3393 = vunpack.c.l.b16 %v3260
    %v3394 = vunpack.c.l.b16 %v3261
    %v3395 = vunpack.c.l.b16 %v3262
    %v3396 = vunpack.c.l.b16 %v3263
    %v3397 = vunpack.c.l.b16 %v3264
    %v3398 = vunpack.c.l.b16 %v3265
    %v3399 = vunpack.c.l.b16 %v3266
    %v3400 = vunpack.c.l.b16 %v3267
    %v3401 = vunpack.c.l.b16 %v3268
    %v3402 = vunpack.c.l.b16 %v3269
    %v3403 = vunpack.c.l.b16 %v3270
    %v3404 = vunpack.c.l.b16 %v3271
    %v3405 = vunpack.c.l.b16 %v3272
    %v3406 = vunpack.c.l.b16 %v3273
    %v3407 = vunpack.c.l.b16 %v3274
    %v3408 = vunpack.c.l.b16 %v3275
    %v3409 = vpack.c.b16 %v3346, %v3345
    %v3410 = vpack.c.b16 %v3348, %v3347
    %v3411 = vpack.c.b16 %v3350, %v3349
    %v3412 = vpack.c.b16 %v3352, %v3351
    %v3413 = vpack.c.b16 %v3354, %v3353
    %v3414 = vpack.c.b16 %v3356, %v3355
    %v3415 = vpack.c.b16 %v3358, %v3357
    %v3416 = vpack.c.b16 %v3360, %v3359
    %v3417 = vpack.c.b16 %v3362, %v3361
    %v3418 = vpack.c.b16 %v3364, %v3363
    %v3419 = vpack.c.b16 %v3366, %v3365
    %v3420 = vpack.c.b16 %v3368, %v3367
    %v3421 = vpack.c.b16 %v3370, %v3369
    %v3422 = vpack.c.b16 %v3372, %v3371
    %v3423 = vpack.c.b16 %v3374, %v3373
    %v3424 = vpack.c.b16 %v3376, %v3375
    %v3425 = vpack.c.b16 %v3378, %v3377
    %v3426 = vpack.c.b16 %v3380, %v3379
    %v3427 = vpack.c.b16 %v3382, %v3381
    %v3428 = vpack.c.b16 %v3384, %v3383
    %v3429 = vpack.c.b16 %v3386, %v3385
    %v3430 = vpack.c.b16 %v3388, %v3387
    %v3431 = vpack.c.b16 %v3390, %v3389
    %v3432 = vpack.c.b16 %v3392, %v3391
    %v3433 = vpack.c.b16 %v3394, %v3393
    %v3434 = vpack.c.b16 %v3396, %v3395
    %v3435 = vpack.c.b16 %v3398, %v3397
    %v3436 = vpack.c.b16 %v3400, %v3399
    %v3437 = vpack.c.b16 %v3402, %v3401
    %v3438 = vpack.c.b16 %v3404, %v3403
    %v3439 = vpack.c.b16 %v3406, %v3405
    %v3440 = vpack.c.b16 %v3408, %v3407
    %3473 = vmatprep.subr.bf16.mxu0 0
    %3474 = vmatpush1.bf16.msra.mxu0 %v3409
    %3475 = vmatprep.subr.bf16.mxu0 0
    %3476 = vmatpush1.bf16.msra.mxu0 %v3410
    %3477 = vmatprep.subr.bf16.mxu0 0
    %3478 = vmatpush1.bf16.msra.mxu0 %v3411
    %3479 = vmatprep.subr.bf16.mxu0 0
    %3480 = vmatpush1.bf16.msra.mxu0 %v3412
    %3481 = vmatprep.subr.bf16.mxu0 0
    %3482 = vmatpush1.bf16.msra.mxu0 %v3413
    %3483 = vmatprep.subr.bf16.mxu0 0
    %3484 = vmatpush1.bf16.msra.mxu0 %v3414
    %3485 = vmatprep.subr.bf16.mxu0 0
    %3486 = vmatpush1.bf16.msra.mxu0 %v3415
    %3487 = vmatprep.subr.bf16.mxu0 0
    %3488 = vmatpush1.bf16.msra.mxu0 %v3416
    %3489 = vmatprep.subr.bf16.mxu0 0
    %3490 = vmatpush1.bf16.msra.mxu0 %v3417
    %3491 = vmatprep.subr.bf16.mxu0 0
    %3492 = vmatpush1.bf16.msra.mxu0 %v3418
    %3493 = vmatprep.subr.bf16.mxu0 0
    %3494 = vmatpush1.bf16.msra.mxu0 %v3419
    %3495 = vmatprep.subr.bf16.mxu0 0
    %3496 = vmatpush1.bf16.msra.mxu0 %v3420
    %3497 = vmatprep.subr.bf16.mxu0 0
    %3498 = vmatpush1.bf16.msra.mxu0 %v3421
    %3499 = vmatprep.subr.bf16.mxu0 0
    %3500 = vmatpush1.bf16.msra.mxu0 %v3422
    %3501 = vmatprep.subr.bf16.mxu0 0
    %3502 = vmatpush1.bf16.msra.mxu0 %v3423
    %3503 = vmatprep.subr.bf16.mxu0 0
    %3504 = vmatpush1.bf16.msra.mxu0 %v3424
    %3505 = vmatprep.mubr.bf16.mxu0 %v3209
    %3506 = vmatmul.mubr.bf16.gmra.mrb[0].mxu0 %v3208
    %v3507 = vpop.f32.mrb[0].mxu0
    %v3508 = vadd.f32 %v3280, %v3507
    %v3509 = vpop.f32.mrb[0].mxu0
    %v3510 = vpop.f32.mrb[0].mxu0
    %v3511 = vadd.f32 %v3280, %v3510
    %v3512 = vpop.f32.mrb[0].mxu0
    %3513 = vdwg.mxu0
    %3514 = vmatprep.subr.bf16.mxu0 0
    %3515 = vmatpush1.bf16.msra.mxu0 %v3425
    %3516 = vmatprep.subr.bf16.mxu0 0
    %3517 = vmatpush1.bf16.msra.mxu0 %v3426
    %3518 = vmatprep.subr.bf16.mxu0 0
    %3519 = vmatpush1.bf16.msra.mxu0 %v3427
    %3520 = vmatprep.subr.bf16.mxu0 0
    %3521 = vmatpush1.bf16.msra.mxu0 %v3428
    %3522 = vmatprep.subr.bf16.mxu0 0
    %3523 = vmatpush1.bf16.msra.mxu0 %v3429
    %3524 = vmatprep.subr.bf16.mxu0 0
    %3525 = vmatpush1.bf16.msra.mxu0 %v3430
    %3526 = vmatprep.subr.bf16.mxu0 0
    %3527 = vmatpush1.bf16.msra.mxu0 %v3431
    %3528 = vmatprep.subr.bf16.mxu0 0
    %3529 = vmatpush1.bf16.msra.mxu0 %v3432
    %3530 = vmatprep.subr.bf16.mxu0 0
    %3531 = vmatpush1.bf16.msra.mxu0 %v3433
    %3532 = vmatprep.subr.bf16.mxu0 0
    %3533 = vmatpush1.bf16.msra.mxu0 %v3434
    %3534 = vmatprep.subr.bf16.mxu0 0
    %3535 = vmatpush1.bf16.msra.mxu0 %v3435
    %3536 = vmatprep.subr.bf16.mxu0 0
    %3537 = vmatpush1.bf16.msra.mxu0 %v3436
    %3538 = vmatprep.subr.bf16.mxu0 0
    %3539 = vmatpush1.bf16.msra.mxu0 %v3437
    %3540 = vmatprep.subr.bf16.mxu0 0
    %3541 = vmatpush1.bf16.msra.mxu0 %v3438
    %3542 = vmatprep.subr.bf16.mxu0 0
    %3543 = vmatpush1.bf16.msra.mxu0 %v3439
    %3544 = vmatprep.subr.bf16.mxu0 0
    %3545 = vmatpush1.bf16.msra.mxu0 %v3440
    %3546 = vmatprep.mubr.bf16.mxu0 %v3211
    %3547 = vmatmul.mubr.bf16.gmra.mrb[0].mxu0 %v3210
    %v3548 = vpop.f32.mrb[0].mxu0
    %v3549 = vadd.f32 %v3508, %v3548
    %v3550 = vpop.f32.mrb[0].mxu0
    %v3551 = vpop.f32.mrb[0].mxu0
    %v3552 = vadd.f32 %v3511, %v3551
    %v3553 = vpop.f32.mrb[0].mxu0
    %3554 = vdwg.mxu0
    %v3555 = vmax.f32 %v3549, 0.0
    %v3556 = vmax.f32 %v3552, 0.0
    %v3559 = vcombine.high %v3555, %v3555
    %v3561 = vunpack.c.l.s4 1983009808
    %v3562 = vunpack.c.0.s8 %v3561
    %v3563 = vlaneseq
    %v3564 = vshrl.u32 %v3563, 7
    %v3565 = vsub.s32 %v3562, %v3564
    %v3566 = vrot.slane %v3555, %v3565
    %v3568 = vunpack.c.l.s4 1983009808
    %v3569 = vunpack.c.0.s8 %v3568
    %v3570 = vlaneseq
    %v3571 = vshrl.u32 %v3570, 7
    %v3572 = vsub.s32 %v3569, %v3571
    %v3573 = vrot.slane %v3559, %v3572
    %v3574 = vcombine.high %v3566, %v3566
    %v3575 = vcombine.high %v3573, %v3573
    %v3576 = vcombine.high %v3556, %v3556
    %v3578 = vunpack.c.l.s4 1983009808
    %v3579 = vunpack.c.0.s8 %v3578
    %v3580 = vlaneseq
    %v3581 = vshrl.u32 %v3580, 7
    %v3582 = vsub.s32 %v3579, %v3581
    %v3583 = vrot.slane %v3556, %v3582
    %v3585 = vunpack.c.l.s4 1983009808
    %v3586 = vunpack.c.0.s8 %v3585
    %v3587 = vlaneseq
    %v3588 = vshrl.u32 %v3587, 7
    %v3589 = vsub.s32 %v3586, %v3588
    %v3590 = vrot.slane %v3576, %v3589
    %v3591 = vcombine.high %v3583, %v3583
    %v3592 = vcombine.high %v3590, %v3590
    %s3601 = sld [smem:[#allocation5 + $0x2]]
    %v3602 = vld [vmem:[%s4 + $0x5] sm:$0x1]
    %v3603 = vlaneseq
    %v3604 = vshrl.u32 %v3603, 7
    %v3605 = vsub.s32 0, %v3604
    %v3606 = vrot.slane %v3602, %v3605
    %v3607 = vmul.f32 %v3606, 0.0
    %v3608 = vmul.f32 %v3566, %v3606
    %v3609 = vmul.f32 %v3574, %v3606
    %v3610 = vmul.f32 %v3573, %v3606
    %v3611 = vmul.f32 %v3575, %v3606
    %v3612 = vmul.f32 %v3583, %v3606
    %v3613 = vmul.f32 %v3591, %v3606
    %v3614 = vmul.f32 %v3590, %v3606
    %vm3615 = vcmask 254976
    %v3616 = vsel %vm3615, %v3607, 0.0
    %3617 = vadd.xlane.f32.xlu0 %v3616
    %v3618 = vpop.xlane.xlu0 %3617
    %v3619 = vsel %vm3615, %v3608, 0.0
    %3620 = vadd.xlane.f32.xlu0 %v3619
    %v3621 = vpop.xlane.xlu0 %3620
    %v3622 = vsel %vm3615, %v3609, 0.0
    %3623 = vadd.xlane.f32.xlu0 %v3622
    %v3624 = vpop.xlane.xlu0 %3623
    %v3625 = vsel %vm3615, %v3610, 0.0
    %3626 = vadd.xlane.f32.xlu0 %v3625
    %v3627 = vpop.xlane.xlu0 %3626
    %v3628 = vsel %vm3615, %v3611, 0.0
    %3629 = vadd.xlane.f32.xlu0 %v3628
    %v3630 = vpop.xlane.xlu0 %3629
    %v3631 = vsel %vm3615, %v3612, 0.0
    %3632 = vadd.xlane.f32.xlu0 %v3631
    %v3633 = vpop.xlane.xlu0 %3632
    %v3634 = vsel %vm3615, %v3613, 0.0
    %3635 = vadd.xlane.f32.xlu0 %v3634
    %v3636 = vpop.xlane.xlu0 %3635
    %v3637 = vsel %vm3615, %v3614, 0.0
    %3638 = vadd.xlane.f32.xlu0 %v3637
    %v3639 = vpop.xlane.xlu0 %3638
    %v3640 = vadd.f32 %v3618, 0.0
    %v3641 = vadd.f32 %v3621, 0.0
    %v3642 = vadd.f32 %v3624, 0.0
    %v3643 = vadd.f32 %v3627, 0.0
    %v3644 = vadd.f32 %v3630, 0.0
    %v3645 = vadd.f32 %v3633, 0.0
    %v3646 = vadd.f32 %v3636, 0.0
    %v3647 = vadd.f32 %v3639, 0.0
    %v3648 = vld [vmem:[%s4 + $0x6] sm:$0x1]
    %v3649 = vlaneseq
    %v3650 = vshrl.u32 %v3649, 7
    %v3651 = vsub.s32 0, %v3650
    %v3652 = vrot.slane %v3648, %v3651
    %v3653 = vmul.f32 %v3566, %v3652
    %v3654 = vmul.f32 %v3574, %v3652
    %v3655 = vmul.f32 %v3573, %v3652
    %v3656 = vmul.f32 %v3575, %v3652
    %v3657 = vmul.f32 %v3583, %v3652
    %v3658 = vmul.f32 %v3591, %v3652
    %v3659 = vmul.f32 %v3590, %v3652
    %v3660 = vmul.f32 %v3592, %v3652
    %v3661 = vsel %vm3615, %v3653, 0.0
    %3662 = vadd.xlane.f32.xlu0 %v3661
    %v3663 = vpop.xlane.xlu0 %3662
    %v3664 = vsel %vm3615, %v3654, 0.0
    %3665 = vadd.xlane.f32.xlu0 %v3664
    %v3666 = vpop.xlane.xlu0 %3665
    %v3667 = vsel %vm3615, %v3655, 0.0
    %3668 = vadd.xlane.f32.xlu0 %v3667
    %v3669 = vpop.xlane.xlu0 %3668
    %v3670 = vsel %vm3615, %v3656, 0.0
    %3671 = vadd.xlane.f32.xlu0 %v3670
    %v3672 = vpop.xlane.xlu0 %3671
    %v3673 = vsel %vm3615, %v3657, 0.0
    %3674 = vadd.xlane.f32.xlu0 %v3673
    %v3675 = vpop.xlane.xlu0 %3674
    %v3676 = vsel %vm3615, %v3658, 0.0
    %3677 = vadd.xlane.f32.xlu0 %v3676
    %v3678 = vpop.xlane.xlu0 %3677
    %v3679 = vsel %vm3615, %v3659, 0.0
    %3680 = vadd.xlane.f32.xlu0 %v3679
    %v3681 = vpop.xlane.xlu0 %3680
    %v3682 = vsel %vm3615, %v3660, 0.0
    %3683 = vadd.xlane.f32.xlu0 %v3682
    %v3684 = vpop.xlane.xlu0 %3683
    %v3685 = vadd.f32 %v3640, %v3663
    %v3686 = vadd.f32 %v3641, %v3666
    %v3687 = vadd.f32 %v3642, %v3669
    %v3688 = vadd.f32 %v3643, %v3672
    %v3689 = vadd.f32 %v3644, %v3675
    %v3690 = vadd.f32 %v3645, %v3678
    %v3691 = vadd.f32 %v3646, %v3681
    %v3692 = vadd.f32 %v3647, %v3684
    %v3693 = vld [vmem:[%s4 + $0x7] sm:$0x1]
    %v3694 = vlaneseq
    %v3695 = vshrl.u32 %v3694, 7
    %v3696 = vsub.s32 0, %v3695
    %v3697 = vrot.slane %v3693, %v3696
    %v3698 = vmul.f32 %v3574, %v3697
    %v3699 = vmul.f32 %v3573, %v3697
    %v3700 = vmul.f32 %v3575, %v3697
    %v3701 = vmul.f32 %v3583, %v3697
    %v3702 = vmul.f32 %v3591, %v3697
    %v3703 = vmul.f32 %v3590, %v3697
    %v3704 = vmul.f32 %v3592, %v3697
    %v3705 = vmul.f32 %v3697, 0.0
    %v3706 = vsel %vm3615, %v3698, 0.0
    %3707 = vadd.xlane.f32.xlu0 %v3706
    %v3708 = vpop.xlane.xlu0 %3707
    %v3709 = vsel %vm3615, %v3699, 0.0
    %3710 = vadd.xlane.f32.xlu0 %v3709
    %v3711 = vpop.xlane.xlu0 %3710
    %v3712 = vsel %vm3615, %v3700, 0.0
    %3713 = vadd.xlane.f32.xlu0 %v3712
    %v3714 = vpop.xlane.xlu0 %3713
    %v3715 = vsel %vm3615, %v3701, 0.0
    %3716 = vadd.xlane.f32.xlu0 %v3715
    %v3717 = vpop.xlane.xlu0 %3716
    %v3718 = vsel %vm3615, %v3702, 0.0
    %3719 = vadd.xlane.f32.xlu0 %v3718
    %v3720 = vpop.xlane.xlu0 %3719
    %v3721 = vsel %vm3615, %v3703, 0.0
    %3722 = vadd.xlane.f32.xlu0 %v3721
    %v3723 = vpop.xlane.xlu0 %3722
    %v3724 = vsel %vm3615, %v3704, 0.0
    %3725 = vadd.xlane.f32.xlu0 %v3724
    %v3726 = vpop.xlane.xlu0 %3725
    %v3727 = vsel %vm3615, %v3705, 0.0
    %3728 = vadd.xlane.f32.xlu0 %v3727
    %v3729 = vpop.xlane.xlu0 %3728
    %v3730 = vadd.f32 %v3685, %v3708
    %v3731 = vadd.f32 %v3686, %v3711
    %v3732 = vadd.f32 %v3687, %v3714
    %v3733 = vadd.f32 %v3688, %v3717
    %v3734 = vadd.f32 %v3689, %v3720
    %v3735 = vadd.f32 %v3690, %v3723
    %v3736 = vadd.f32 %v3691, %v3726
    %v3737 = vadd.f32 %v3692, %v3729
    %v3738 = vstv %s3601
    %v3739 = vadd.f32 %v3738, %v3730
    %v3740 = vadd.f32 %v3738, %v3731
    %v3741 = vadd.f32 %v3738, %v3732
    %v3742 = vadd.f32 %v3738, %v3733
    %v3743 = vadd.f32 %v3738, %v3734
    %v3744 = vadd.f32 %v3738, %v3735
    %v3745 = vadd.f32 %v3738, %v3736
    %v3746 = vadd.f32 %v3738, %v3737
    %v3747 = vmul.f32 %v3739, 4.0
    %v3748 = vmul.f32 %v3740, 4.0
    %v3749 = vmul.f32 %v3741, 4.0
    %v3750 = vmul.f32 %v3742, 4.0
    %v3751 = vmul.f32 %v3743, 4.0
    %v3752 = vmul.f32 %v3744, 4.0
    %v3753 = vmul.f32 %v3745, 4.0
    %v3754 = vmul.f32 %v3746, 4.0
    %v3755 = vxor.u32 %v3747, 2147483648
    %v3756 = vxor.u32 %v3748, 2147483648
    %v3757 = vxor.u32 %v3749, 2147483648
    %v3758 = vxor.u32 %v3750, 2147483648
    %v3759 = vxor.u32 %v3751, 2147483648
    %v3760 = vxor.u32 %v3752, 2147483648
    %v3761 = vxor.u32 %v3753, 2147483648
    %v3762 = vxor.u32 %v3754, 2147483648
    %v3763 = vmul.f32 %v3755, 1.442695
    %v3764 = vpow.pop %v3763
    %v3765 = vmul.f32 %v3756, 1.442695
    %v3766 = vpow.pop %v3765
    %v3767 = vmul.f32 %v3757, 1.442695
    %v3768 = vpow.pop %v3767
    %v3769 = vmul.f32 %v3758, 1.442695
    %v3770 = vpow.pop %v3769
    %v3771 = vmul.f32 %v3759, 1.442695
    %v3772 = vpow.pop %v3771
    %v3773 = vmul.f32 %v3760, 1.442695
    %v3774 = vpow.pop %v3773
    %v3775 = vmul.f32 %v3761, 1.442695
    %v3776 = vpow.pop %v3775
    %v3777 = vmul.f32 %v3762, 1.442695
    %v3778 = vpow.pop %v3777
    %v3779 = vadd.f32 %v3764, 1.0
    %v3780 = vadd.f32 %v3766, 1.0
    %v3781 = vadd.f32 %v3768, 1.0
    %v3782 = vadd.f32 %v3770, 1.0
    %v3783 = vadd.f32 %v3772, 1.0
    %v3784 = vadd.f32 %v3774, 1.0
    %v3785 = vadd.f32 %v3776, 1.0
    %v3786 = vadd.f32 %v3778, 1.0
    %v3787 = vrcp.pop %v3779
    %v3788 = vmul.f32 1.0, %v3787
    %v3789 = vrcp.pop %v3780
    %v3790 = vmul.f32 1.0, %v3789
    %v3791 = vrcp.pop %v3781
    %v3792 = vmul.f32 1.0, %v3791
    %v3793 = vrcp.pop %v3782
    %v3794 = vmul.f32 1.0, %v3793
    %v3795 = vrcp.pop %v3783
    %v3796 = vmul.f32 1.0, %v3795
    %v3797 = vrcp.pop %v3784
    %v3798 = vmul.f32 1.0, %v3797
    %v3799 = vrcp.pop %v3785
    %v3800 = vmul.f32 1.0, %v3799
    %v3801 = vrcp.pop %v3786
    %v3802 = vmul.f32 1.0, %v3801
    %v3803 = vround.ne.pseudo %v3788
    %v3804 = vround.ne.pseudo %v3790
    %v3805 = vround.ne.pseudo %v3792
    %v3806 = vround.ne.pseudo %v3794
    %v3807 = vround.ne.pseudo %v3796
    %v3808 = vround.ne.pseudo %v3798
    %v3809 = vround.ne.pseudo %v3800
    %v3810 = vround.ne.pseudo %v3802
    %v3811 = vmul.f32 %v3788, %v3803
    %v3812 = vmul.f32 %v3790, %v3804
    %v3813 = vmul.f32 %v3792, %v3805
    %v3814 = vmul.f32 %v3794, %v3806
    %v3815 = vmul.f32 %v3796, %v3807
    %v3816 = vmul.f32 %v3798, %v3808
    %v3817 = vmul.f32 %v3800, %v3809
    %v3818 = vmul.f32 %v3802, %v3810
    %v3819 = vmul.f32 %v3811, %v2784
    %v3820 = vmul.f32 %v3812, %v2785
    %v3821 = vmul.f32 %v3813, %v2786
    %v3822 = vmul.f32 %v3814, %v2787
    %v3823 = vmul.f32 %v3815, %v2788
    %v3824 = vmul.f32 %v3816, %v2789
    %v3825 = vmul.f32 %v3817, %v2790
    %v3826 = vmul.f32 %v3818, %v2791
    %v3827 = vsub.f32 1.0, %v3803
    %v3828 = vsub.f32 1.0, %v3804
    %v3829 = vsub.f32 1.0, %v3805
    %v3830 = vsub.f32 1.0, %v3806
    %v3831 = vsub.f32 1.0, %v3807
    %v3832 = vsub.f32 1.0, %v3808
    %v3833 = vsub.f32 1.0, %v3809
    %v3834 = vsub.f32 1.0, %v3810
    %v3835 = vmul.f32 %v3827, %v2876
    %v3836 = vmul.f32 %v3828, %v2877
    %v3837 = vmul.f32 %v3829, %v2878
    %v3838 = vmul.f32 %v3830, %v2879
    %v3839 = vmul.f32 %v3831, %v2880
    %v3840 = vmul.f32 %v3832, %v2881
    %v3841 = vmul.f32 %v3833, %v2882
    %v3842 = vmul.f32 %v3834, %v2883
    %v3843 = vadd.f32 %v3819, %v3835
    %v3844 = vadd.f32 %v3820, %v3836
    %v3845 = vadd.f32 %v3821, %v3837
    %v3846 = vadd.f32 %v3822, %v3838
    %v3847 = vadd.f32 %v3823, %v3839
    %v3848 = vadd.f32 %v3824, %v3840
    %v3849 = vadd.f32 %v3825, %v3841
    %v3850 = vadd.f32 %v3826, %v3842
    %v3859 = vcombine.low %v2784, %v2785
    %v3860 = vcombine.low %v2786, %v2787
    %v3862 = vunpack.c.l.s4 1983009808
    %v3863 = vunpack.c.0.s8 %v3862
    %v3864 = vlaneseq
    %v3865 = vshrl.u32 %v3864, 7
    %v3866 = vsub.s32 %v3863, %v3865
    %v3867 = vrot.slane %v3859, %v3866
    %v3869 = vunpack.c.l.s4 1983009808
    %v3870 = vunpack.c.0.s8 %v3869
    %v3871 = vlaneseq
    %v3872 = vshrl.u32 %v3871, 7
    %v3873 = vsub.s32 %v3870, %v3872
    %v3874 = vrot.slane %v3860, %v3873
    %v3875 = vcombine.low %v3867, %v3874
    %v3876 = vcombine.low %v2788, %v2789
    %v3877 = vcombine.low %v2790, %v2791
    %v3879 = vunpack.c.l.s4 1983009808
    %v3880 = vunpack.c.0.s8 %v3879
    %v3881 = vlaneseq
    %v3882 = vshrl.u32 %v3881, 7
    %v3883 = vsub.s32 %v3880, %v3882
    %v3884 = vrot.slane %v3876, %v3883
    %v3886 = vunpack.c.l.s4 1983009808
    %v3887 = vunpack.c.0.s8 %v3886
    %v3888 = vlaneseq
    %v3889 = vshrl.u32 %v3888, 7
    %v3890 = vsub.s32 %v3887, %v3889
    %v3891 = vrot.slane %v3877, %v3890
    %v3892 = vcombine.low %v3884, %v3891
    %3893 = vset.pattern.permute.xlu0 0
    %3894 = vperm.xlu0 %3893, %v3875
    %v3895 = vpop.permute.xlu0 %3894
    %3896 = vset.pattern.permute.xlu0 0
    %3897 = vperm.xlu0 %3896, %v3892
    %v3898 = vpop.permute.xlu0 %3897
    %v3899 = vlaneseq
    %v3900 = vand.u32 %v3899, 127
    %v3901 = vlaneseq
    %v3902 = vshrl.u32 %v3901, 7
    %v3903 = vsub.s32 %v3900, %v3902
    %v3904 = vrot.slane %v3895, %v3903
    %v3905 = vadd.s32 %v3900, 4294967288
    %v3906 = vlaneseq
    %v3907 = vshrl.u32 %v3906, 7
    %v3908 = vsub.s32 %v3905, %v3907
    %v3909 = vrot.slane %v3898, %v3908
    %vm3910 = vcmask 130112
    %v3911 = vsel %vm3910, %v3909, %v3904
    %v3921 = vcombine.low %v3739, %v3740
    %v3922 = vcombine.low %v3741, %v3742
    %v3924 = vunpack.c.l.s4 1983009808
    %v3925 = vunpack.c.0.s8 %v3924
    %v3926 = vlaneseq
    %v3927 = vshrl.u32 %v3926, 7
    %v3928 = vsub.s32 %v3925, %v3927
    %v3929 = vrot.slane %v3921, %v3928
    %v3931 = vunpack.c.l.s4 1983009808
    %v3932 = vunpack.c.0.s8 %v3931
    %v3933 = vlaneseq
    %v3934 = vshrl.u32 %v3933, 7
    %v3935 = vsub.s32 %v3932, %v3934
    %v3936 = vrot.slane %v3922, %v3935
    %v3937 = vcombine.low %v3929, %v3936
    %v3938 = vcombine.low %v3743, %v3744
    %v3939 = vcombine.low %v3745, %v3746
    %v3941 = vunpack.c.l.s4 1983009808
    %v3942 = vunpack.c.0.s8 %v3941
    %v3943 = vlaneseq
    %v3944 = vshrl.u32 %v3943, 7
    %v3945 = vsub.s32 %v3942, %v3944
    %v3946 = vrot.slane %v3938, %v3945
    %v3948 = vunpack.c.l.s4 1983009808
    %v3949 = vunpack.c.0.s8 %v3948
    %v3950 = vlaneseq
    %v3951 = vshrl.u32 %v3950, 7
    %v3952 = vsub.s32 %v3949, %v3951
    %v3953 = vrot.slane %v3939, %v3952
    %v3954 = vcombine.low %v3946, %v3953
    %3955 = vset.pattern.permute.xlu0 0
    %3956 = vperm.xlu0 %3955, %v3937
    %v3957 = vpop.permute.xlu0 %3956
    %3958 = vset.pattern.permute.xlu0 0
    %3959 = vperm.xlu0 %3958, %v3954
    %v3960 = vpop.permute.xlu0 %3959
    %v3961 = vlaneseq
    %v3962 = vshrl.u32 %v3961, 7
    %v3963 = vsub.s32 %v3900, %v3962
    %v3964 = vrot.slane %v3957, %v3963
    %v3965 = vlaneseq
    %v3966 = vshrl.u32 %v3965, 7
    %v3967 = vsub.s32 %v3905, %v3966
    %v3968 = vrot.slane %v3960, %v3967
    %v3969 = vsel %vm3910, %v3968, %v3964
    %v3979 = vcombine.low %v2876, %v2876
    %v3980 = vcombine.low %v2877, %v2878
    %v3982 = vunpack.c.l.s4 1983009808
    %v3983 = vunpack.c.0.s8 %v3982
    %v3984 = vlaneseq
    %v3985 = vshrl.u32 %v3984, 7
    %v3986 = vsub.s32 %v3983, %v3985
    %v3987 = vrot.slane %v3979, %v3986
    %v3989 = vunpack.c.l.s4 1983009808
    %v3990 = vunpack.c.0.s8 %v3989
    %v3991 = vlaneseq
    %v3992 = vshrl.u32 %v3991, 7
    %v3993 = vsub.s32 %v3990, %v3992
    %v3994 = vrot.slane %v3980, %v3993
    %v3995 = vcombine.low %v3987, %v3994
    %v3996 = vcombine.low %v2879, %v2880
    %v3997 = vcombine.low %v2881, %v2882
    %v3999 = vunpack.c.l.s4 1983009808
    %v4000 = vunpack.c.0.s8 %v3999
    %v4001 = vlaneseq
    %v4002 = vshrl.u32 %v4001, 7
    %v4003 = vsub.s32 %v4000, %v4002
    %v4004 = vrot.slane %v3996, %v4003
    %v4006 = vunpack.c.l.s4 1983009808
    %v4007 = vunpack.c.0.s8 %v4006
    %v4008 = vlaneseq
    %v4009 = vshrl.u32 %v4008, 7
    %v4010 = vsub.s32 %v4007, %v4009
    %v4011 = vrot.slane %v3997, %v4010
    %v4012 = vcombine.low %v4004, %v4011
    %v4014 = vunpack.c.l.s4 1983009808
    %v4015 = vunpack.c.0.s8 %v4014
    %v4016 = vlaneseq
    %v4017 = vshrl.u32 %v4016, 7
    %v4018 = vsub.s32 %v4015, %v4017
    %v4019 = vrot.slane %v2883, %v4018
    %4020 = vset.pattern.permute.xlu0 0
    %4021 = vperm.xlu0 %4020, %v3995
    %v4022 = vpop.permute.xlu0 %4021
    %4023 = vset.pattern.permute.xlu0 0
    %4024 = vperm.xlu0 %4023, %v4012
    %v4025 = vpop.permute.xlu0 %4024
    %4026 = vset.pattern.permute.xlu0 0
    %4027 = vperm.xlu0 %4026, %v4019
    %v4028 = vpop.permute.xlu0 %4027
    %v4029 = vadd.s32 %v3900, 2
    %v4030 = vlaneseq
    %v4031 = vshrl.u32 %v4030, 7
    %v4032 = vsub.s32 %v4029, %v4031
    %v4033 = vrot.slane %v4022, %v4032
    %v4034 = vadd.s32 %v3900, 4294967290
    %v4035 = vlaneseq
    %v4036 = vshrl.u32 %v4035, 7
    %v4037 = vsub.s32 %v4034, %v4036
    %v4038 = vrot.slane %v4025, %v4037
    %vm4039 = vcmask 113712
    %v4040 = vsel %vm4039, %v4038, %v4033
    %v4041 = vadd.s32 %v3900, 4294967282
    %v4042 = vlaneseq
    %v4043 = vshrl.u32 %v4042, 7
    %v4044 = vsub.s32 %v4041, %v4043
    %v4045 = vrot.slane %v4028, %v4044
    %vm4046 = vcmask 179312
    %v4047 = vsel %vm4046, %v4045, %v4040
    %v4057 = vcombine.low %v3843, %v3844
    %v4058 = vcombine.low %v3845, %v3846
    %v4060 = vunpack.c.l.s4 1983009808
    %v4061 = vunpack.c.0.s8 %v4060
    %v4062 = vlaneseq
    %v4063 = vshrl.u32 %v4062, 7
    %v4064 = vsub.s32 %v4061, %v4063
    %v4065 = vrot.slane %v4057, %v4064
    %v4067 = vunpack.c.l.s4 1983009808
    %v4068 = vunpack.c.0.s8 %v4067
    %v4069 = vlaneseq
    %v4070 = vshrl.u32 %v4069, 7
    %v4071 = vsub.s32 %v4068, %v4070
    %v4072 = vrot.slane %v4058, %v4071
    %v4073 = vcombine.low %v4065, %v4072
    %v4074 = vcombine.low %v3847, %v3848
    %v4075 = vcombine.low %v3849, %v3850
    %v4077 = vunpack.c.l.s4 1983009808
    %v4078 = vunpack.c.0.s8 %v4077
    %v4079 = vlaneseq
    %v4080 = vshrl.u32 %v4079, 7
    %v4081 = vsub.s32 %v4078, %v4080
    %v4082 = vrot.slane %v4074, %v4081
    %v4084 = vunpack.c.l.s4 1983009808
    %v4085 = vunpack.c.0.s8 %v4084
    %v4086 = vlaneseq
    %v4087 = vshrl.u32 %v4086, 7
    %v4088 = vsub.s32 %v4085, %v4087
    %v4089 = vrot.slane %v4075, %v4088
    %v4090 = vcombine.low %v4082, %v4089
    %4091 = vset.pattern.permute.xlu0 0
    %4092 = vperm.xlu0 %4091, %v4073
    %v4093 = vpop.permute.xlu0 %4092
    %4094 = vset.pattern.permute.xlu0 0
    %4095 = vperm.xlu0 %4094, %v4090
    %v4096 = vpop.permute.xlu0 %4095
    %v4097 = vlaneseq
    %v4098 = vshrl.u32 %v4097, 7
    %v4099 = vsub.s32 %v3900, %v4098
    %v4100 = vrot.slane %v4093, %v4099
    %v4101 = vlaneseq
    %v4102 = vshrl.u32 %v4101, 7
    %v4103 = vsub.s32 %v3905, %v4102
    %v4104 = vrot.slane %v4096, %v4103
    %v4105 = vsel %vm3910, %v4104, %v4100
    %vm4107 = vcmask 1040384
    %v4108 = vsel %vm4107, %v3911, %v3969
    %v4109 = vsel %vm2712, %v4108, %v4047
    %vm4110 = vcmask 1042432
    %v4111 = vsel %vm4110, %v4109, %v4105
    %vm4112 = vcmask 125952
    %4113 = vst.msk [vmem:[%s7] sm:$0xf] %vm4112, %v4111
    // Predicated region
    $region38: #{decoder_lstm_forward.1} parent=1 // pred_check
      _
    $region39: #{decoder_lstm_forward.1} parent=1 // pred_check_branch
      %4115 = sbr.rel (0) target = $region41
    $region40: #{decoder_lstm_forward.1} parent=1 // pred_region
      _
    $region41: #{decoder_lstm_forward.1} parent=1 // pred_fallthru
      _
    // Predicated region
    $region42: #{decoder_lstm_forward.1} parent=1 // pred_check
      _
    $region43: #{decoder_lstm_forward.1} parent=1 // pred_check_branch
      %4117 = sbr.rel (0) target = $region45
    $region44: #{decoder_lstm_forward.1} parent=1 // pred_region
      _
    $region45: #{decoder_lstm_forward.1} parent=1 // pred_fallthru
      _
    %4118 = vsyncpa [#allocation3], 1
    %4119 = vsyncpa [#allocation4], 1

</llo_original>
